<compile_context>
chip_gen: v7x
topology: tpu7x:2x2x1
jax: 0.10.0
libtpu: 0.0.40
codegen_flags: <defaults>
</compile_context>

<pallas_src>
import math

import jax
import jax.numpy as jnp
from jax import lax
from jax.experimental import pallas as pl
from jax.experimental.pallas import tpu as pltpu


# ----------------------------- Pallas kernel ------------------------------- #

def _make_encoder_kernel(num_layers, S, B_pad, H):
    """Fused bidirectional multi-layer LSTM kernel.

    Kernel refs (in order):
      inputs : x2d (S*B_pad, E), then per layer (wx (I,8H) bf16,
               wh (2,H,4H) bf16, bias (1,8H) f32)
      outputs: y2d (S*B_pad, 2H) f32
      scratch: xp (S*B_pad, 8H) f32, [act (S*B_pad, 2H) f32 if num_layers > 1]
    Gate column order inside each 4H block is (i, f, o, g); the 8H layout is
    [fwd 4H | bwd 4H].
    """
    G3 = 3 * H
    G4 = 4 * H
    n_w = 3 * num_layers

    if S <= 16:
        unroll = True
    else:
        unroll = next(u for u in (8, 4, 2, 1) if S % u == 0)

    def kernel(*refs):
        x_ref = refs[0]
        w_refs = refs[1:1 + n_w]
        y_ref = refs[1 + n_w]
        xp_ref = refs[2 + n_w]
        act_ref = refs[3 + n_w] if num_layers > 1 else None

        for l in range(num_layers):
            wx_ref, wh_ref, b_ref = w_refs[3 * l:3 * l + 3]
            in_ref = x_ref if l == 0 else act_ref
            tgt_ref = y_ref if l == num_layers - 1 else act_ref

            # Hoisted input projection for BOTH directions in ONE bf16 MXU
            # matmul (bias folded in).  x_in is fully consumed here, BEFORE
            # any store to act_ref below — load-bearing when in_ref == tgt_ref
            # (middle layers).
            x_in = in_ref[...]
            xp_ref[...] = jnp.dot(
                x_in.astype(jnp.bfloat16), wx_ref[...],
                preferred_element_type=jnp.float32) + b_ref[...]

            # Recurrent weights resident (bf16) for the whole time loop.
            wh_f = wh_ref[0]
            wh_b = wh_ref[1]

            def step(t, carry, wh_f=wh_f, wh_b=wh_b, tgt_ref=tgt_ref):
                h_f, c_f, h_b, c_b = carry
                row_f = pl.multiple_of(t * B_pad, B_pad)
                row_b = pl.multiple_of((S - 1 - t) * B_pad, B_pad)

                # Two independent recurrent matmuls (fwd at time t, bwd at
                # time S-1-t); bf16 operands, f32 accumulation.
                g_f = xp_ref[pl.ds(row_f, B_pad), pl.ds(0, G4)] + jnp.dot(
                    h_f.astype(jnp.bfloat16), wh_f,
                    preferred_element_type=jnp.float32)
                g_b = xp_ref[pl.ds(row_b, B_pad), pl.ds(G4, G4)] + jnp.dot(
                    h_b.astype(jnp.bfloat16), wh_b,
                    preferred_element_type=jnp.float32)

                # Gate nonlinearities: (i,f,o) sigmoid, g tanh — f32 VPU/EUP.
                s_f = jax.nn.sigmoid(g_f[:, :G3])
                s_b = jax.nn.sigmoid(g_b[:, :G3])
                cand_f = jnp.tanh(g_f[:, G3:])
                cand_b = jnp.tanh(g_b[:, G3:])

                c_f_new = s_f[:, H:2 * H] * c_f + s_f[:, :H] * cand_f
                c_b_new = s_b[:, H:2 * H] * c_b + s_b[:, :H] * cand_b
                h_f_new = s_f[:, 2 * H:G3] * jnp.tanh(c_f_new)
                h_b_new = s_b[:, 2 * H:G3] * jnp.tanh(c_b_new)

                # Direct store into the fwd/bwd column halves of the layer
                # output (no intermediate ydir slab / bulk copy).
                tgt_ref[pl.ds(row_f, B_pad), pl.ds(0, H)] = h_f_new
                tgt_ref[pl.ds(row_b, B_pad), pl.ds(H, H)] = h_b_new
                return h_f_new, c_f_new, h_b_new, c_b_new

            z = jnp.zeros((B_pad, H), jnp.float32)
            lax.fori_loop(0, S, step, (z, z, z, z), unroll=unroll)

    return kernel


# ------------------------- SharedEncoder forward ---------------------------- #

@jax.jit
def shared_encoder_forward(x, prepped):
    """Equivalent of SharedEncoder.forward(x) in eval mode.

    x: (S, B, embed_size) -> (S, B, 2*hidden_size)
    prepped: output of prepare_params (kernel-ready weights).
    """
    # dropout(p) is identity in eval mode.
    S, B, E = x.shape
    num_layers = len(prepped)
    H = prepped[0][1].shape[1]          # wh is (2, H, 4H)
    B_pad = ((B + 7) // 8) * 8          # sublane-pad the batch

    x = x.astype(jnp.float32)
    if B_pad != B:
        x = jnp.zeros((S, B_pad, E), jnp.float32).at[:, :B, :].set(x)
    x2d = x.reshape(S * B_pad, E)

    flat_w = [w for layer in prepped for w in layer]
    kernel = _make_encoder_kernel(num_layers, S, B_pad, H)

    scratch = [pltpu.VMEM((S * B_pad, 8 * H), jnp.float32)]      # projection slab
    if num_layers > 1:
        scratch.append(pltpu.VMEM((S * B_pad, 2 * H), jnp.float32))  # inter-layer act

    # Scoped-VMEM limit sized from the actual residency (2x headroom, capped).
    resident = S * B_pad * (E + 2 * H + 8 * H
                            + (2 * H if num_layers > 1 else 0)) * 4
    resident += sum(math.prod(w.shape) * jnp.dtype(w.dtype).itemsize
                    for w in flat_w)
    vmem_limit = int(min(64 << 20, max(16 << 20, 2 * resident + (2 << 20))))

    out2d = pl.pallas_call(
        kernel,
        out_shape=jax.ShapeDtypeStruct((S * B_pad, 2 * H), jnp.float32),
        in_specs=[pl.BlockSpec(memory_space=pltpu.MemorySpace.VMEM)]
                 * (1 + len(flat_w)),
        out_specs=pl.BlockSpec(memory_space=pltpu.MemorySpace.VMEM),
        scratch_shapes=scratch,
        compiler_params=pltpu.CompilerParams(vmem_limit_bytes=vmem_limit),
    )(x2d, *flat_w)

    return out2d.reshape(S, B_pad, 2 * H)[:, :B, :]


# --------------------------- Param preparation ------------------------------ #

def _gate_permute_rows(w, H):
    """Reorder gate blocks along axis 0 from PyTorch (i, f, g, o) to (i, f, o, g)."""
    return jnp.concatenate([w[0:H], w[H:2 * H], w[3 * H:4 * H], w[2 * H:3 * H]],
                           axis=0)


def prepare_params(params):
    """PyTorch-layout LSTM params -> kernel-ready tensors (done once).

    Per layer: (wx (I, 8H) bf16 [fwd|bwd gates], wh (2, H, 4H) bf16,
    bias (1, 8H) f32).  Gate columns permuted to (i, f, o, g), biases
    pre-summed, weights pre-transposed.
    """
    prepped = []
    for layer in params:
        wx_dirs, wh_dirs, b_dirs = [], [], []
        for sfx in ("f", "b"):
            w_ih = jnp.asarray(layer[f"w_ih_{sfx}"], jnp.float32)   # (4H, I)
            w_hh = jnp.asarray(layer[f"w_hh_{sfx}"], jnp.float32)   # (4H, H)
            bias = (jnp.asarray(layer[f"b_ih_{sfx}"], jnp.float32)
                    + jnp.asarray(layer[f"b_hh_{sfx}"], jnp.float32))
            H = w_hh.shape[1]
            wx_dirs.append(_gate_permute_rows(w_ih, H).T)           # (I, 4H)
            wh_dirs.append(_gate_permute_rows(w_hh, H).T)           # (H, 4H)
            b_dirs.append(_gate_permute_rows(bias, H))              # (4H,)
        wx = jnp.concatenate(wx_dirs, axis=1).astype(jnp.bfloat16)  # (I, 8H)
        wh = jnp.stack(wh_dirs, axis=0).astype(jnp.bfloat16)        # (2, H, 4H)
        b = jnp.concatenate(b_dirs, axis=0).reshape(1, 8 * H)       # (1, 8H) f32
        prepped.append((wx, wh, b.astype(jnp.float32)))
    return prepped


# ------------------------------ Reference ----------------------------------- #

def _ref_lstm_direction(x, w_ih, w_hh, b_ih, b_hh):
    H = w_hh.shape[1]
    B = x.shape[1]

    def step(carry, xt):
        h, c = carry
        gates = xt @ w_ih.T + b_ih + h @ w_hh.T + b_hh
        i, f, g, o = jnp.split(gates, 4, axis=-1)
        i = jax.nn.sigmoid(i)
        f = jax.nn.sigmoid(f)
        g = jnp.tanh(g)
        o = jax.nn.sigmoid(o)
        c = f * c + i * g
        h = o * jnp.tanh(c)
        return (h, c), h

    h0 = jnp.zeros((B, H), jnp.float32)
    c0 = jnp.zeros((B, H), jnp.float32)
    _, ys = lax.scan(step, (h0, c0), x)
    return ys


def _ref_forward(x, params):
    h = x
    for layer in params:
        fwd = _ref_lstm_direction(h, layer["w_ih_f"], layer["w_hh_f"],
                                  layer["b_ih_f"], layer["b_hh_f"])
        bwd = _ref_lstm_direction(h[::-1], layer["w_ih_b"], layer["w_hh_b"],
                                  layer["b_ih_b"], layer["b_hh_b"])[::-1]
        h = jnp.concatenate([fwd, bwd], axis=-1)
    return h


# ------------------------------- Params init -------------------------------- #

def init_params(key, embed_size, hidden_size, num_layers):
    """Deterministic init mirroring PyTorch nn.LSTM: U(-1/sqrt(H), 1/sqrt(H))."""
    k = 1.0 / jnp.sqrt(jnp.float32(hidden_size))
    params = []
    for layer in range(num_layers):
        in_sz = embed_size if layer == 0 else 2 * hidden_size
        layer_p = {}
        for suffix in ("f", "b"):  # forward / backward directions
            key, k1, k2, k3, k4 = jax.random.split(key, 5)
            layer_p[f"w_ih_{suffix}"] = jax.random.uniform(
                k1, (4 * hidden_size, in_sz), jnp.float32, -k, k)
            layer_p[f"w_hh_{suffix}"] = jax.random.uniform(
                k2, (4 * hidden_size, hidden_size), jnp.float32, -k, k)
            layer_p[f"b_ih_{suffix}"] = jax.random.uniform(
                k3, (4 * hidden_size,), jnp.float32, -k, k)
            layer_p[f"b_hh_{suffix}"] = jax.random.uniform(
                k4, (4 * hidden_size,), jnp.float32, -k, k)
        params.append(layer_p)
    return params


# --------------------------------- Main -------------------------------------- #

if __name__ == "__main__":
    embed_size = 32
    hidden_size = 32
    num_layers = 2
    seq_len = 8
    batch = 2

    key = jax.random.PRNGKey(0)
    key, kx = jax.random.split(key)
    x = jax.random.normal(kx, (seq_len, batch, embed_size), jnp.float32)
    params = init_params(key, embed_size, hidden_size, num_layers)
    prepped = prepare_params(params)   # transpose / permute / concat / bf16 once

    out = jax.block_until_ready(shared_encoder_forward(x, prepped))

    ref = jax.block_until_ready(_ref_forward(x, params))
    assert out.shape == (seq_len, batch, 2 * hidden_size), out.shape
    max_err = float(jnp.max(jnp.abs(out - ref)))
    # bf16 MXU operands (f32 accumulate / f32 elementwise) => looser tolerance.
    assert jnp.allclose(out, ref, atol=5e-2, rtol=5e-2), max_err

    print("KERNEL_OK")
</pallas_src>

<mosaic_0001>
module attributes {stable_mosaic.version = 11 : i64} {
  func.func @kernel(%arg0: memref<64x32xf32, #tpu.memory_space<vmem>>, %arg1: memref<32x256xbf16, #tpu.memory_space<vmem>>, %arg2: memref<2x32x128xbf16, #tpu.memory_space<vmem>>, %arg3: memref<1x256xf32, #tpu.memory_space<vmem>>, %arg4: memref<64x256xbf16, #tpu.memory_space<vmem>>, %arg5: memref<2x32x128xbf16, #tpu.memory_space<vmem>>, %arg6: memref<1x256xf32, #tpu.memory_space<vmem>>, %arg7: memref<64x64xf32, #tpu.memory_space<vmem>>, %arg8: memref<64x256xf32, #tpu.memory_space<vmem>>, %arg9: memref<64x64xf32, #tpu.memory_space<vmem>>) attributes {dimension_semantics = [], scalar_prefetch = 0 : i64, scratch_operands = 2 : i64, tpu.core_type = #tpu.core_type<tc>} {
    %c0 = arith.constant 0 : index
    %c0_0 = arith.constant 0 : index
    %0 = vector.load %arg0[%c0, %c0_0] : memref<64x32xf32, #tpu.memory_space<vmem>>, vector<64x32xf32>
    %1 = arith.truncf %0 : vector<64x32xf32> to vector<64x32xbf16>
    %c0_1 = arith.constant 0 : index
    %c0_2 = arith.constant 0 : index
    %2 = vector.load %arg1[%c0_1, %c0_2] : memref<32x256xbf16, #tpu.memory_space<vmem>>, vector<32x256xbf16>
    %cst = arith.constant dense<0.000000e+00> : vector<64x256xf32>
    %3 = tpu.matmul %1, %2, %cst {dimension_numbers = #tpu.dot_dimension_numbers<[1], [0], [0], [1], [0, 0, 1, 1], [], []>} : vector<64x32xbf16>, vector<32x256xbf16>, vector<64x256xf32> -> vector<64x256xf32>
    %c0_3 = arith.constant 0 : index
    %c0_4 = arith.constant 0 : index
    %4 = vector.load %arg3[%c0_3, %c0_4] : memref<1x256xf32, #tpu.memory_space<vmem>>, vector<1x256xf32>
    %5 = vector.broadcast %4 : vector<1x256xf32> to vector<64x256xf32>
    %6 = arith.addf %3, %5 : vector<64x256xf32>
    %c0_5 = arith.constant 0 : index
    %c0_6 = arith.constant 0 : index
    %7 = vector.load %arg8[%c0_5, %c0_6] : memref<64x256xf32, #tpu.memory_space<vmem>>, vector<64x256xf32>
    tpu.vector_store %arg8[%c0_5, %c0_6], %6 {strides = array<i32>} : memref<64x256xf32, #tpu.memory_space<vmem>>, vector<64x256xf32>,
    %c0_7 = arith.constant 0 : index
    %c0_8 = arith.constant 0 : index
    %c0_9 = arith.constant 0 : index
    %8 = vector.load %arg2[%c0_7, %c0_8, %c0_9] : memref<2x32x128xbf16, #tpu.memory_space<vmem>>, vector<1x32x128xbf16>
    %9 = vector.shape_cast %8 : vector<1x32x128xbf16> to vector<32x128xbf16>
    %c1 = arith.constant 1 : index
    %c0_10 = arith.constant 0 : index
    %c0_11 = arith.constant 0 : index
    %10 = vector.load %arg2[%c1, %c0_10, %c0_11] : memref<2x32x128xbf16, #tpu.memory_space<vmem>>, vector<1x32x128xbf16>
    %11 = vector.shape_cast %10 : vector<1x32x128xbf16> to vector<32x128xbf16>
    %cst_12 = arith.constant 0.000000e+00 : f32
    %12 = vector.broadcast %cst_12 : f32 to vector<8x32xf32>
    %c0_i32 = arith.constant 0 : i32
    %c8_i32 = arith.constant 8 : i32
    %13 = arith.muli %c0_i32, %c8_i32 : i32
    %14 = tpu.assume_multiple %13, 8 : i32
    %c7_i32 = arith.constant 7 : i32
    %15 = arith.subi %c7_i32, %c0_i32 : i32
    %c8_i32_13 = arith.constant 8 : i32
    %16 = arith.muli %15, %c8_i32_13 : i32
    %17 = tpu.assume_multiple %16, 8 : i32
    %18 = arith.index_cast %14 : i32 to index
    %c0_14 = arith.constant 0 : index
    %19 = vector.load %arg8[%18, %c0_14] : memref<64x256xf32, #tpu.memory_space<vmem>>, vector<8x128xf32>
    %20 = arith.truncf %12 : vector<8x32xf32> to vector<8x32xbf16>
    %cst_15 = arith.constant dense<0.000000e+00> : vector<8x128xf32>
    %21 = tpu.matmul %20, %9, %cst_15 {dimension_numbers = #tpu.dot_dimension_numbers<[1], [0], [0], [1], [0, 0, 1, 1], [], []>} : vector<8x32xbf16>, vector<32x128xbf16>, vector<8x128xf32> -> vector<8x128xf32>
    %22 = arith.addf %19, %21 : vector<8x128xf32>
    %23 = arith.index_cast %17 : i32 to index
    %c128 = arith.constant 128 : index
    %24 = vector.load %arg8[%23, %c128] : memref<64x256xf32, #tpu.memory_space<vmem>>, vector<8x128xf32>
    %25 = arith.truncf %12 : vector<8x32xf32> to vector<8x32xbf16>
    %cst_16 = arith.constant dense<0.000000e+00> : vector<8x128xf32>
    %26 = tpu.matmul %25, %11, %cst_16 {dimension_numbers = #tpu.dot_dimension_numbers<[1], [0], [0], [1], [0, 0, 1, 1], [], []>} : vector<8x32xbf16>, vector<32x128xbf16>, vector<8x128xf32> -> vector<8x128xf32>
    %27 = arith.addf %24, %26 : vector<8x128xf32>
    %28 = vector.extract_strided_slice %22 {offsets = [0, 0], sizes = [8, 96], strides = [1, 1]} : vector<8x128xf32> to vector<8x96xf32>
    %29 = arith.negf %28 : vector<8x96xf32>
    %30 = math.exp %29 : vector<8x96xf32>
    %cst_17 = arith.constant 1.000000e+00 : f32
    %31 = vector.broadcast %cst_17 : f32 to vector<8x96xf32>
    %32 = arith.addf %31, %30 : vector<8x96xf32>
    %33 = arith.divf %31, %32 : vector<8x96xf32>
    %34 = vector.extract_strided_slice %27 {offsets = [0, 0], sizes = [8, 96], strides = [1, 1]} : vector<8x128xf32> to vector<8x96xf32>
    %35 = arith.negf %34 : vector<8x96xf32>
    %36 = math.exp %35 : vector<8x96xf32>
    %cst_18 = arith.constant 1.000000e+00 : f32
    %37 = vector.broadcast %cst_18 : f32 to vector<8x96xf32>
    %38 = arith.addf %37, %36 : vector<8x96xf32>
    %39 = arith.divf %37, %38 : vector<8x96xf32>
    %40 = vector.extract_strided_slice %22 {offsets = [0, 96], sizes = [8, 32], strides = [1, 1]} : vector<8x128xf32> to vector<8x32xf32>
    %41 = math.tanh %40 : vector<8x32xf32>
    %42 = vector.extract_strided_slice %27 {offsets = [0, 96], sizes = [8, 32], strides = [1, 1]} : vector<8x128xf32> to vector<8x32xf32>
    %43 = math.tanh %42 : vector<8x32xf32>
    %44 = vector.extract_strided_slice %33 {offsets = [0, 32], sizes = [8, 32], strides = [1, 1]} : vector<8x96xf32> to vector<8x32xf32>
    %45 = arith.mulf %44, %12 : vector<8x32xf32>
    %46 = vector.extract_strided_slice %33 {offsets = [0, 0], sizes = [8, 32], strides = [1, 1]} : vector<8x96xf32> to vector<8x32xf32>
    %47 = arith.mulf %46, %41 : vector<8x32xf32>
    %48 = arith.addf %45, %47 : vector<8x32xf32>
    %49 = vector.extract_strided_slice %39 {offsets = [0, 32], sizes = [8, 32], strides = [1, 1]} : vector<8x96xf32> to vector<8x32xf32>
    %50 = arith.mulf %49, %12 : vector<8x32xf32>
    %51 = vector.extract_strided_slice %39 {offsets = [0, 0], sizes = [8, 32], strides = [1, 1]} : vector<8x96xf32> to vector<8x32xf32>
    %52 = arith.mulf %51, %43 : vector<8x32xf32>
    %53 = arith.addf %50, %52 : vector<8x32xf32>
    %54 = vector.extract_strided_slice %33 {offsets = [0, 64], sizes = [8, 32], strides = [1, 1]} : vector<8x96xf32> to vector<8x32xf32>
    %55 = math.tanh %48 : vector<8x32xf32>
    %56 = arith.mulf %54, %55 : vector<8x32xf32>
    %57 = vector.extract_strided_slice %39 {offsets = [0, 64], sizes = [8, 32], strides = [1, 1]} : vector<8x96xf32> to vector<8x32xf32>
    %58 = math.tanh %53 : vector<8x32xf32>
    %59 = arith.mulf %57, %58 : vector<8x32xf32>
    %60 = arith.index_cast %14 : i32 to index
    %c0_19 = arith.constant 0 : index
    %61 = vector.load %arg9[%60, %c0_19] : memref<64x64xf32, #tpu.memory_space<vmem>>, vector<8x32xf32>
    tpu.vector_store %arg9[%60, %c0_19], %56 {strides = array<i32>} : memref<64x64xf32, #tpu.memory_space<vmem>>, vector<8x32xf32>,
    %62 = arith.index_cast %17 : i32 to index
    %c32 = arith.constant 32 : index
    %63 = vector.load %arg9[%62, %c32] : memref<64x64xf32, #tpu.memory_space<vmem>>, vector<8x32xf32>
    tpu.vector_store %arg9[%62, %c32], %59 {strides = array<i32>} : memref<64x64xf32, #tpu.memory_space<vmem>>, vector<8x32xf32>,
    %c1_i32 = arith.constant 1 : i32
    %c8_i32_20 = arith.constant 8 : i32
    %64 = arith.muli %c1_i32, %c8_i32_20 : i32
    %65 = tpu.assume_multiple %64, 8 : i32
    %c7_i32_21 = arith.constant 7 : i32
    %66 = arith.subi %c7_i32_21, %c1_i32 : i32
    %c8_i32_22 = arith.constant 8 : i32
    %67 = arith.muli %66, %c8_i32_22 : i32
    %68 = tpu.assume_multiple %67, 8 : i32
    %69 = arith.index_cast %65 : i32 to index
    %c0_23 = arith.constant 0 : index
    %70 = vector.load %arg8[%69, %c0_23] : memref<64x256xf32, #tpu.memory_space<vmem>>, vector<8x128xf32>
    %71 = arith.truncf %56 : vector<8x32xf32> to vector<8x32xbf16>
    %cst_24 = arith.constant dense<0.000000e+00> : vector<8x128xf32>
    %72 = tpu.matmul %71, %9, %cst_24 {dimension_numbers = #tpu.dot_dimension_numbers<[1], [0], [0], [1], [0, 0, 1, 1], [], []>} : vector<8x32xbf16>, vector<32x128xbf16>, vector<8x128xf32> -> vector<8x128xf32>
    %73 = arith.addf %70, %72 : vector<8x128xf32>
    %74 = arith.index_cast %68 : i32 to index
    %c128_25 = arith.constant 128 : index
    %75 = vector.load %arg8[%74, %c128_25] : memref<64x256xf32, #tpu.memory_space<vmem>>, vector<8x128xf32>
    %76 = arith.truncf %59 : vector<8x32xf32> to vector<8x32xbf16>
    %cst_26 = arith.constant dense<0.000000e+00> : vector<8x128xf32>
    %77 = tpu.matmul %76, %11, %cst_26 {dimension_numbers = #tpu.dot_dimension_numbers<[1], [0], [0], [1], [0, 0, 1, 1], [], []>} : vector<8x32xbf16>, vector<32x128xbf16>, vector<8x128xf32> -> vector<8x128xf32>
    %78 = arith.addf %75, %77 : vector<8x128xf32>
    %79 = vector.extract_strided_slice %73 {offsets = [0, 0], sizes = [8, 96], strides = [1, 1]} : vector<8x128xf32> to vector<8x96xf32>
    %80 = arith.negf %79 : vector<8x96xf32>
    %81 = math.exp %80 : vector<8x96xf32>
    %cst_27 = arith.constant 1.000000e+00 : f32
    %82 = vector.broadcast %cst_27 : f32 to vector<8x96xf32>
    %83 = arith.addf %82, %81 : vector<8x96xf32>
    %84 = arith.divf %82, %83 : vector<8x96xf32>
    %85 = vector.extract_strided_slice %78 {offsets = [0, 0], sizes = [8, 96], strides = [1, 1]} : vector<8x128xf32> to vector<8x96xf32>
    %86 = arith.negf %85 : vector<8x96xf32>
    %87 = math.exp %86 : vector<8x96xf32>
    %cst_28 = arith.constant 1.000000e+00 : f32
    %88 = vector.broadcast %cst_28 : f32 to vector<8x96xf32>
    %89 = arith.addf %88, %87 : vector<8x96xf32>
    %90 = arith.divf %88, %89 : vector<8x96xf32>
    %91 = vector.extract_strided_slice %73 {offsets = [0, 96], sizes = [8, 32], strides = [1, 1]} : vector<8x128xf32> to vector<8x32xf32>
    %92 = math.tanh %91 : vector<8x32xf32>
    %93 = vector.extract_strided_slice %78 {offsets = [0, 96], sizes = [8, 32], strides = [1, 1]} : vector<8x128xf32> to vector<8x32xf32>
    %94 = math.tanh %93 : vector<8x32xf32>
    %95 = vector.extract_strided_slice %84 {offsets = [0, 32], sizes = [8, 32], strides = [1, 1]} : vector<8x96xf32> to vector<8x32xf32>
    %96 = arith.mulf %95, %48 : vector<8x32xf32>
    %97 = vector.extract_strided_slice %84 {offsets = [0, 0], sizes = [8, 32], strides = [1, 1]} : vector<8x96xf32> to vector<8x32xf32>
    %98 = arith.mulf %97, %92 : vector<8x32xf32>
    %99 = arith.addf %96, %98 : vector<8x32xf32>
    %100 = vector.extract_strided_slice %90 {offsets = [0, 32], sizes = [8, 32], strides = [1, 1]} : vector<8x96xf32> to vector<8x32xf32>
    %101 = arith.mulf %100, %53 : vector<8x32xf32>
    %102 = vector.extract_strided_slice %90 {offsets = [0, 0], sizes = [8, 32], strides = [1, 1]} : vector<8x96xf32> to vector<8x32xf32>
    %103 = arith.mulf %102, %94 : vector<8x32xf32>
    %104 = arith.addf %101, %103 : vector<8x32xf32>
    %105 = vector.extract_strided_slice %84 {offsets = [0, 64], sizes = [8, 32], strides = [1, 1]} : vector<8x96xf32> to vector<8x32xf32>
    %106 = math.tanh %99 : vector<8x32xf32>
    %107 = arith.mulf %105, %106 : vector<8x32xf32>
    %108 = vector.extract_strided_slice %90 {offsets = [0, 64], sizes = [8, 32], strides = [1, 1]} : vector<8x96xf32> to vector<8x32xf32>
    %109 = math.tanh %104 : vector<8x32xf32>
    %110 = arith.mulf %108, %109 : vector<8x32xf32>
    %111 = arith.index_cast %65 : i32 to index
    %c0_29 = arith.constant 0 : index
    %112 = vector.load %arg9[%111, %c0_29] : memref<64x64xf32, #tpu.memory_space<vmem>>, vector<8x32xf32>
    tpu.vector_store %arg9[%111, %c0_29], %107 {strides = array<i32>} : memref<64x64xf32, #tpu.memory_space<vmem>>, vector<8x32xf32>,
    %113 = arith.index_cast %68 : i32 to index
    %c32_30 = arith.constant 32 : index
    %114 = vector.load %arg9[%113, %c32_30] : memref<64x64xf32, #tpu.memory_space<vmem>>, vector<8x32xf32>
    tpu.vector_store %arg9[%113, %c32_30], %110 {strides = array<i32>} : memref<64x64xf32, #tpu.memory_space<vmem>>, vector<8x32xf32>,
    %c2_i32 = arith.constant 2 : i32
    %c8_i32_31 = arith.constant 8 : i32
    %115 = arith.muli %c2_i32, %c8_i32_31 : i32
    %116 = tpu.assume_multiple %115, 8 : i32
    %c7_i32_32 = arith.constant 7 : i32
    %117 = arith.subi %c7_i32_32, %c2_i32 : i32
    %c8_i32_33 = arith.constant 8 : i32
    %118 = arith.muli %117, %c8_i32_33 : i32
    %119 = tpu.assume_multiple %118, 8 : i32
    %120 = arith.index_cast %116 : i32 to index
    %c0_34 = arith.constant 0 : index
    %121 = vector.load %arg8[%120, %c0_34] : memref<64x256xf32, #tpu.memory_space<vmem>>, vector<8x128xf32>
    %122 = arith.truncf %107 : vector<8x32xf32> to vector<8x32xbf16>
    %cst_35 = arith.constant dense<0.000000e+00> : vector<8x128xf32>
    %123 = tpu.matmul %122, %9, %cst_35 {dimension_numbers = #tpu.dot_dimension_numbers<[1], [0], [0], [1], [0, 0, 1, 1], [], []>} : vector<8x32xbf16>, vector<32x128xbf16>, vector<8x128xf32> -> vector<8x128xf32>
    %124 = arith.addf %121, %123 : vector<8x128xf32>
    %125 = arith.index_cast %119 : i32 to index
    %c128_36 = arith.constant 128 : index
    %126 = vector.load %arg8[%125, %c128_36] : memref<64x256xf32, #tpu.memory_space<vmem>>, vector<8x128xf32>
    %127 = arith.truncf %110 : vector<8x32xf32> to vector<8x32xbf16>
    %cst_37 = arith.constant dense<0.000000e+00> : vector<8x128xf32>
    %128 = tpu.matmul %127, %11, %cst_37 {dimension_numbers = #tpu.dot_dimension_numbers<[1], [0], [0], [1], [0, 0, 1, 1], [], []>} : vector<8x32xbf16>, vector<32x128xbf16>, vector<8x128xf32> -> vector<8x128xf32>
    %129 = arith.addf %126, %128 : vector<8x128xf32>
    %130 = vector.extract_strided_slice %124 {offsets = [0, 0], sizes = [8, 96], strides = [1, 1]} : vector<8x128xf32> to vector<8x96xf32>
    %131 = arith.negf %130 : vector<8x96xf32>
    %132 = math.exp %131 : vector<8x96xf32>
    %cst_38 = arith.constant 1.000000e+00 : f32
    %133 = vector.broadcast %cst_38 : f32 to vector<8x96xf32>
    %134 = arith.addf %133, %132 : vector<8x96xf32>
    %135 = arith.divf %133, %134 : vector<8x96xf32>
    %136 = vector.extract_strided_slice %129 {offsets = [0, 0], sizes = [8, 96], strides = [1, 1]} : vector<8x128xf32> to vector<8x96xf32>
    %137 = arith.negf %136 : vector<8x96xf32>
    %138 = math.exp %137 : vector<8x96xf32>
    %cst_39 = arith.constant 1.000000e+00 : f32
    %139 = vector.broadcast %cst_39 : f32 to vector<8x96xf32>
    %140 = arith.addf %139, %138 : vector<8x96xf32>
    %141 = arith.divf %139, %140 : vector<8x96xf32>
    %142 = vector.extract_strided_slice %124 {offsets = [0, 96], sizes = [8, 32], strides = [1, 1]} : vector<8x128xf32> to vector<8x32xf32>
    %143 = math.tanh %142 : vector<8x32xf32>
    %144 = vector.extract_strided_slice %129 {offsets = [0, 96], sizes = [8, 32], strides = [1, 1]} : vector<8x128xf32> to vector<8x32xf32>
    %145 = math.tanh %144 : vector<8x32xf32>
    %146 = vector.extract_strided_slice %135 {offsets = [0, 32], sizes = [8, 32], strides = [1, 1]} : vector<8x96xf32> to vector<8x32xf32>
    %147 = arith.mulf %146, %99 : vector<8x32xf32>
    %148 = vector.extract_strided_slice %135 {offsets = [0, 0], sizes = [8, 32], strides = [1, 1]} : vector<8x96xf32> to vector<8x32xf32>
    %149 = arith.mulf %148, %143 : vector<8x32xf32>
    %150 = arith.addf %147, %149 : vector<8x32xf32>
    %151 = vector.extract_strided_slice %141 {offsets = [0, 32], sizes = [8, 32], strides = [1, 1]} : vector<8x96xf32> to vector<8x32xf32>
    %152 = arith.mulf %151, %104 : vector<8x32xf32>
    %153 = vector.extract_strided_slice %141 {offsets = [0, 0], sizes = [8, 32], strides = [1, 1]} : vector<8x96xf32> to vector<8x32xf32>
    %154 = arith.mulf %153, %145 : vector<8x32xf32>
    %155 = arith.addf %152, %154 : vector<8x32xf32>
    %156 = vector.extract_strided_slice %135 {offsets = [0, 64], sizes = [8, 32], strides = [1, 1]} : vector<8x96xf32> to vector<8x32xf32>
    %157 = math.tanh %150 : vector<8x32xf32>
    %158 = arith.mulf %156, %157 : vector<8x32xf32>
    %159 = vector.extract_strided_slice %141 {offsets = [0, 64], sizes = [8, 32], strides = [1, 1]} : vector<8x96xf32> to vector<8x32xf32>
    %160 = math.tanh %155 : vector<8x32xf32>
    %161 = arith.mulf %159, %160 : vector<8x32xf32>
    %162 = arith.index_cast %116 : i32 to index
    %c0_40 = arith.constant 0 : index
    %163 = vector.load %arg9[%162, %c0_40] : memref<64x64xf32, #tpu.memory_space<vmem>>, vector<8x32xf32>
    tpu.vector_store %arg9[%162, %c0_40], %158 {strides = array<i32>} : memref<64x64xf32, #tpu.memory_space<vmem>>, vector<8x32xf32>,
    %164 = arith.index_cast %119 : i32 to index
    %c32_41 = arith.constant 32 : index
    %165 = vector.load %arg9[%164, %c32_41] : memref<64x64xf32, #tpu.memory_space<vmem>>, vector<8x32xf32>
    tpu.vector_store %arg9[%164, %c32_41], %161 {strides = array<i32>} : memref<64x64xf32, #tpu.memory_space<vmem>>, vector<8x32xf32>,
    %c3_i32 = arith.constant 3 : i32
    %c8_i32_42 = arith.constant 8 : i32
    %166 = arith.muli %c3_i32, %c8_i32_42 : i32
    %167 = tpu.assume_multiple %166, 8 : i32
    %c7_i32_43 = arith.constant 7 : i32
    %168 = arith.subi %c7_i32_43, %c3_i32 : i32
    %c8_i32_44 = arith.constant 8 : i32
    %169 = arith.muli %168, %c8_i32_44 : i32
    %170 = tpu.assume_multiple %169, 8 : i32
    %171 = arith.index_cast %167 : i32 to index
    %c0_45 = arith.constant 0 : index
    %172 = vector.load %arg8[%171, %c0_45] : memref<64x256xf32, #tpu.memory_space<vmem>>, vector<8x128xf32>
    %173 = arith.truncf %158 : vector<8x32xf32> to vector<8x32xbf16>
    %cst_46 = arith.constant dense<0.000000e+00> : vector<8x128xf32>
    %174 = tpu.matmul %173, %9, %cst_46 {dimension_numbers = #tpu.dot_dimension_numbers<[1], [0], [0], [1], [0, 0, 1, 1], [], []>} : vector<8x32xbf16>, vector<32x128xbf16>, vector<8x128xf32> -> vector<8x128xf32>
    %175 = arith.addf %172, %174 : vector<8x128xf32>
    %176 = arith.index_cast %170 : i32 to index
    %c128_47 = arith.constant 128 : index
    %177 = vector.load %arg8[%176, %c128_47] : memref<64x256xf32, #tpu.memory_space<vmem>>, vector<8x128xf32>
    %178 = arith.truncf %161 : vector<8x32xf32> to vector<8x32xbf16>
    %cst_48 = arith.constant dense<0.000000e+00> : vector<8x128xf32>
    %179 = tpu.matmul %178, %11, %cst_48 {dimension_numbers = #tpu.dot_dimension_numbers<[1], [0], [0], [1], [0, 0, 1, 1], [], []>} : vector<8x32xbf16>, vector<32x128xbf16>, vector<8x128xf32> -> vector<8x128xf32>
    %180 = arith.addf %177, %179 : vector<8x128xf32>
    %181 = vector.extract_strided_slice %175 {offsets = [0, 0], sizes = [8, 96], strides = [1, 1]} : vector<8x128xf32> to vector<8x96xf32>
    %182 = arith.negf %181 : vector<8x96xf32>
    %183 = math.exp %182 : vector<8x96xf32>
    %cst_49 = arith.constant 1.000000e+00 : f32
    %184 = vector.broadcast %cst_49 : f32 to vector<8x96xf32>
    %185 = arith.addf %184, %183 : vector<8x96xf32>
    %186 = arith.divf %184, %185 : vector<8x96xf32>
    %187 = vector.extract_strided_slice %180 {offsets = [0, 0], sizes = [8, 96], strides = [1, 1]} : vector<8x128xf32> to vector<8x96xf32>
    %188 = arith.negf %187 : vector<8x96xf32>
    %189 = math.exp %188 : vector<8x96xf32>
    %cst_50 = arith.constant 1.000000e+00 : f32
    %190 = vector.broadcast %cst_50 : f32 to vector<8x96xf32>
    %191 = arith.addf %190, %189 : vector<8x96xf32>
    %192 = arith.divf %190, %191 : vector<8x96xf32>
    %193 = vector.extract_strided_slice %175 {offsets = [0, 96], sizes = [8, 32], strides = [1, 1]} : vector<8x128xf32> to vector<8x32xf32>
    %194 = math.tanh %193 : vector<8x32xf32>
    %195 = vector.extract_strided_slice %180 {offsets = [0, 96], sizes = [8, 32], strides = [1, 1]} : vector<8x128xf32> to vector<8x32xf32>
    %196 = math.tanh %195 : vector<8x32xf32>
    %197 = vector.extract_strided_slice %186 {offsets = [0, 32], sizes = [8, 32], strides = [1, 1]} : vector<8x96xf32> to vector<8x32xf32>
    %198 = arith.mulf %197, %150 : vector<8x32xf32>
    %199 = vector.extract_strided_slice %186 {offsets = [0, 0], sizes = [8, 32], strides = [1, 1]} : vector<8x96xf32> to vector<8x32xf32>
    %200 = arith.mulf %199, %194 : vector<8x32xf32>
    %201 = arith.addf %198, %200 : vector<8x32xf32>
    %202 = vector.extract_strided_slice %192 {offsets = [0, 32], sizes = [8, 32], strides = [1, 1]} : vector<8x96xf32> to vector<8x32xf32>
    %203 = arith.mulf %202, %155 : vector<8x32xf32>
    %204 = vector.extract_strided_slice %192 {offsets = [0, 0], sizes = [8, 32], strides = [1, 1]} : vector<8x96xf32> to vector<8x32xf32>
    %205 = arith.mulf %204, %196 : vector<8x32xf32>
    %206 = arith.addf %203, %205 : vector<8x32xf32>
    %207 = vector.extract_strided_slice %186 {offsets = [0, 64], sizes = [8, 32], strides = [1, 1]} : vector<8x96xf32> to vector<8x32xf32>
    %208 = math.tanh %201 : vector<8x32xf32>
    %209 = arith.mulf %207, %208 : vector<8x32xf32>
    %210 = vector.extract_strided_slice %192 {offsets = [0, 64], sizes = [8, 32], strides = [1, 1]} : vector<8x96xf32> to vector<8x32xf32>
    %211 = math.tanh %206 : vector<8x32xf32>
    %212 = arith.mulf %210, %211 : vector<8x32xf32>
    %213 = arith.index_cast %167 : i32 to index
    %c0_51 = arith.constant 0 : index
    %214 = vector.load %arg9[%213, %c0_51] : memref<64x64xf32, #tpu.memory_space<vmem>>, vector<8x32xf32>
    tpu.vector_store %arg9[%213, %c0_51], %209 {strides = array<i32>} : memref<64x64xf32, #tpu.memory_space<vmem>>, vector<8x32xf32>,
    %215 = arith.index_cast %170 : i32 to index
    %c32_52 = arith.constant 32 : index
    %216 = vector.load %arg9[%215, %c32_52] : memref<64x64xf32, #tpu.memory_space<vmem>>, vector<8x32xf32>
    tpu.vector_store %arg9[%215, %c32_52], %212 {strides = array<i32>} : memref<64x64xf32, #tpu.memory_space<vmem>>, vector<8x32xf32>,
    %c4_i32 = arith.constant 4 : i32
    %c8_i32_53 = arith.constant 8 : i32
    %217 = arith.muli %c4_i32, %c8_i32_53 : i32
    %218 = tpu.assume_multiple %217, 8 : i32
    %c7_i32_54 = arith.constant 7 : i32
    %219 = arith.subi %c7_i32_54, %c4_i32 : i32
    %c8_i32_55 = arith.constant 8 : i32
    %220 = arith.muli %219, %c8_i32_55 : i32
    %221 = tpu.assume_multiple %220, 8 : i32
    %222 = arith.index_cast %218 : i32 to index
    %c0_56 = arith.constant 0 : index
    %223 = vector.load %arg8[%222, %c0_56] : memref<64x256xf32, #tpu.memory_space<vmem>>, vector<8x128xf32>
    %224 = arith.truncf %209 : vector<8x32xf32> to vector<8x32xbf16>
    %cst_57 = arith.constant dense<0.000000e+00> : vector<8x128xf32>
    %225 = tpu.matmul %224, %9, %cst_57 {dimension_numbers = #tpu.dot_dimension_numbers<[1], [0], [0], [1], [0, 0, 1, 1], [], []>} : vector<8x32xbf16>, vector<32x128xbf16>, vector<8x128xf32> -> vector<8x128xf32>
    %226 = arith.addf %223, %225 : vector<8x128xf32>
    %227 = arith.index_cast %221 : i32 to index
    %c128_58 = arith.constant 128 : index
    %228 = vector.load %arg8[%227, %c128_58] : memref<64x256xf32, #tpu.memory_space<vmem>>, vector<8x128xf32>
    %229 = arith.truncf %212 : vector<8x32xf32> to vector<8x32xbf16>
    %cst_59 = arith.constant dense<0.000000e+00> : vector<8x128xf32>
    %230 = tpu.matmul %229, %11, %cst_59 {dimension_numbers = #tpu.dot_dimension_numbers<[1], [0], [0], [1], [0, 0, 1, 1], [], []>} : vector<8x32xbf16>, vector<32x128xbf16>, vector<8x128xf32> -> vector<8x128xf32>
    %231 = arith.addf %228, %230 : vector<8x128xf32>
    %232 = vector.extract_strided_slice %226 {offsets = [0, 0], sizes = [8, 96], strides = [1, 1]} : vector<8x128xf32> to vector<8x96xf32>
    %233 = arith.negf %232 : vector<8x96xf32>
    %234 = math.exp %233 : vector<8x96xf32>
    %cst_60 = arith.constant 1.000000e+00 : f32
    %235 = vector.broadcast %cst_60 : f32 to vector<8x96xf32>
    %236 = arith.addf %235, %234 : vector<8x96xf32>
    %237 = arith.divf %235, %236 : vector<8x96xf32>
    %238 = vector.extract_strided_slice %231 {offsets = [0, 0], sizes = [8, 96], strides = [1, 1]} : vector<8x128xf32> to vector<8x96xf32>
    %239 = arith.negf %238 : vector<8x96xf32>
    %240 = math.exp %239 : vector<8x96xf32>
    %cst_61 = arith.constant 1.000000e+00 : f32
    %241 = vector.broadcast %cst_61 : f32 to vector<8x96xf32>
    %242 = arith.addf %241, %240 : vector<8x96xf32>
    %243 = arith.divf %241, %242 : vector<8x96xf32>
    %244 = vector.extract_strided_slice %226 {offsets = [0, 96], sizes = [8, 32], strides = [1, 1]} : vector<8x128xf32> to vector<8x32xf32>
    %245 = math.tanh %244 : vector<8x32xf32>
    %246 = vector.extract_strided_slice %231 {offsets = [0, 96], sizes = [8, 32], strides = [1, 1]} : vector<8x128xf32> to vector<8x32xf32>
    %247 = math.tanh %246 : vector<8x32xf32>
    %248 = vector.extract_strided_slice %237 {offsets = [0, 32], sizes = [8, 32], strides = [1, 1]} : vector<8x96xf32> to vector<8x32xf32>
    %249 = arith.mulf %248, %201 : vector<8x32xf32>
    %250 = vector.extract_strided_slice %237 {offsets = [0, 0], sizes = [8, 32], strides = [1, 1]} : vector<8x96xf32> to vector<8x32xf32>
    %251 = arith.mulf %250, %245 : vector<8x32xf32>
    %252 = arith.addf %249, %251 : vector<8x32xf32>
    %253 = vector.extract_strided_slice %243 {offsets = [0, 32], sizes = [8, 32], strides = [1, 1]} : vector<8x96xf32> to vector<8x32xf32>
    %254 = arith.mulf %253, %206 : vector<8x32xf32>
    %255 = vector.extract_strided_slice %243 {offsets = [0, 0], sizes = [8, 32], strides = [1, 1]} : vector<8x96xf32> to vector<8x32xf32>
    %256 = arith.mulf %255, %247 : vector<8x32xf32>
    %257 = arith.addf %254, %256 : vector<8x32xf32>
    %258 = vector.extract_strided_slice %237 {offsets = [0, 64], sizes = [8, 32], strides = [1, 1]} : vector<8x96xf32> to vector<8x32xf32>
    %259 = math.tanh %252 : vector<8x32xf32>
    %260 = arith.mulf %258, %259 : vector<8x32xf32>
    %261 = vector.extract_strided_slice %243 {offsets = [0, 64], sizes = [8, 32], strides = [1, 1]} : vector<8x96xf32> to vector<8x32xf32>
    %262 = math.tanh %257 : vector<8x32xf32>
    %263 = arith.mulf %261, %262 : vector<8x32xf32>
    %264 = arith.index_cast %218 : i32 to index
    %c0_62 = arith.constant 0 : index
    %265 = vector.load %arg9[%264, %c0_62] : memref<64x64xf32, #tpu.memory_space<vmem>>, vector<8x32xf32>
    tpu.vector_store %arg9[%264, %c0_62], %260 {strides = array<i32>} : memref<64x64xf32, #tpu.memory_space<vmem>>, vector<8x32xf32>,
    %266 = arith.index_cast %221 : i32 to index
    %c32_63 = arith.constant 32 : index
    %267 = vector.load %arg9[%266, %c32_63] : memref<64x64xf32, #tpu.memory_space<vmem>>, vector<8x32xf32>
    tpu.vector_store %arg9[%266, %c32_63], %263 {strides = array<i32>} : memref<64x64xf32, #tpu.memory_space<vmem>>, vector<8x32xf32>,
    %c5_i32 = arith.constant 5 : i32
    %c8_i32_64 = arith.constant 8 : i32
    %268 = arith.muli %c5_i32, %c8_i32_64 : i32
    %269 = tpu.assume_multiple %268, 8 : i32
    %c7_i32_65 = arith.constant 7 : i32
    %270 = arith.subi %c7_i32_65, %c5_i32 : i32
    %c8_i32_66 = arith.constant 8 : i32
    %271 = arith.muli %270, %c8_i32_66 : i32
    %272 = tpu.assume_multiple %271, 8 : i32
    %273 = arith.index_cast %269 : i32 to index
    %c0_67 = arith.constant 0 : index
    %274 = vector.load %arg8[%273, %c0_67] : memref<64x256xf32, #tpu.memory_space<vmem>>, vector<8x128xf32>
    %275 = arith.truncf %260 : vector<8x32xf32> to vector<8x32xbf16>
    %cst_68 = arith.constant dense<0.000000e+00> : vector<8x128xf32>
    %276 = tpu.matmul %275, %9, %cst_68 {dimension_numbers = #tpu.dot_dimension_numbers<[1], [0], [0], [1], [0, 0, 1, 1], [], []>} : vector<8x32xbf16>, vector<32x128xbf16>, vector<8x128xf32> -> vector<8x128xf32>
    %277 = arith.addf %274, %276 : vector<8x128xf32>
    %278 = arith.index_cast %272 : i32 to index
    %c128_69 = arith.constant 128 : index
    %279 = vector.load %arg8[%278, %c128_69] : memref<64x256xf32, #tpu.memory_space<vmem>>, vector<8x128xf32>
    %280 = arith.truncf %263 : vector<8x32xf32> to vector<8x32xbf16>
    %cst_70 = arith.constant dense<0.000000e+00> : vector<8x128xf32>
    %281 = tpu.matmul %280, %11, %cst_70 {dimension_numbers = #tpu.dot_dimension_numbers<[1], [0], [0], [1], [0, 0, 1, 1], [], []>} : vector<8x32xbf16>, vector<32x128xbf16>, vector<8x128xf32> -> vector<8x128xf32>
    %282 = arith.addf %279, %281 : vector<8x128xf32>
    %283 = vector.extract_strided_slice %277 {offsets = [0, 0], sizes = [8, 96], strides = [1, 1]} : vector<8x128xf32> to vector<8x96xf32>
    %284 = arith.negf %283 : vector<8x96xf32>
    %285 = math.exp %284 : vector<8x96xf32>
    %cst_71 = arith.constant 1.000000e+00 : f32
    %286 = vector.broadcast %cst_71 : f32 to vector<8x96xf32>
    %287 = arith.addf %286, %285 : vector<8x96xf32>
    %288 = arith.divf %286, %287 : vector<8x96xf32>
    %289 = vector.extract_strided_slice %282 {offsets = [0, 0], sizes = [8, 96], strides = [1, 1]} : vector<8x128xf32> to vector<8x96xf32>
    %290 = arith.negf %289 : vector<8x96xf32>
    %291 = math.exp %290 : vector<8x96xf32>
    %cst_72 = arith.constant 1.000000e+00 : f32
    %292 = vector.broadcast %cst_72 : f32 to vector<8x96xf32>
    %293 = arith.addf %292, %291 : vector<8x96xf32>
    %294 = arith.divf %292, %293 : vector<8x96xf32>
    %295 = vector.extract_strided_slice %277 {offsets = [0, 96], sizes = [8, 32], strides = [1, 1]} : vector<8x128xf32> to vector<8x32xf32>
    %296 = math.tanh %295 : vector<8x32xf32>
    %297 = vector.extract_strided_slice %282 {offsets = [0, 96], sizes = [8, 32], strides = [1, 1]} : vector<8x128xf32> to vector<8x32xf32>
    %298 = math.tanh %297 : vector<8x32xf32>
    %299 = vector.extract_strided_slice %288 {offsets = [0, 32], sizes = [8, 32], strides = [1, 1]} : vector<8x96xf32> to vector<8x32xf32>
    %300 = arith.mulf %299, %252 : vector<8x32xf32>
    %301 = vector.extract_strided_slice %288 {offsets = [0, 0], sizes = [8, 32], strides = [1, 1]} : vector<8x96xf32> to vector<8x32xf32>
    %302 = arith.mulf %301, %296 : vector<8x32xf32>
    %303 = arith.addf %300, %302 : vector<8x32xf32>
    %304 = vector.extract_strided_slice %294 {offsets = [0, 32], sizes = [8, 32], strides = [1, 1]} : vector<8x96xf32> to vector<8x32xf32>
    %305 = arith.mulf %304, %257 : vector<8x32xf32>
    %306 = vector.extract_strided_slice %294 {offsets = [0, 0], sizes = [8, 32], strides = [1, 1]} : vector<8x96xf32> to vector<8x32xf32>
    %307 = arith.mulf %306, %298 : vector<8x32xf32>
    %308 = arith.addf %305, %307 : vector<8x32xf32>
    %309 = vector.extract_strided_slice %288 {offsets = [0, 64], sizes = [8, 32], strides = [1, 1]} : vector<8x96xf32> to vector<8x32xf32>
    %310 = math.tanh %303 : vector<8x32xf32>
    %311 = arith.mulf %309, %310 : vector<8x32xf32>
    %312 = vector.extract_strided_slice %294 {offsets = [0, 64], sizes = [8, 32], strides = [1, 1]} : vector<8x96xf32> to vector<8x32xf32>
    %313 = math.tanh %308 : vector<8x32xf32>
    %314 = arith.mulf %312, %313 : vector<8x32xf32>
    %315 = arith.index_cast %269 : i32 to index
    %c0_73 = arith.constant 0 : index
    %316 = vector.load %arg9[%315, %c0_73] : memref<64x64xf32, #tpu.memory_space<vmem>>, vector<8x32xf32>
    tpu.vector_store %arg9[%315, %c0_73], %311 {strides = array<i32>} : memref<64x64xf32, #tpu.memory_space<vmem>>, vector<8x32xf32>,
    %317 = arith.index_cast %272 : i32 to index
    %c32_74 = arith.constant 32 : index
    %318 = vector.load %arg9[%317, %c32_74] : memref<64x64xf32, #tpu.memory_space<vmem>>, vector<8x32xf32>
    tpu.vector_store %arg9[%317, %c32_74], %314 {strides = array<i32>} : memref<64x64xf32, #tpu.memory_space<vmem>>, vector<8x32xf32>,
    %c6_i32 = arith.constant 6 : i32
    %c8_i32_75 = arith.constant 8 : i32
    %319 = arith.muli %c6_i32, %c8_i32_75 : i32
    %320 = tpu.assume_multiple %319, 8 : i32
    %c7_i32_76 = arith.constant 7 : i32
    %321 = arith.subi %c7_i32_76, %c6_i32 : i32
    %c8_i32_77 = arith.constant 8 : i32
    %322 = arith.muli %321, %c8_i32_77 : i32
    %323 = tpu.assume_multiple %322, 8 : i32
    %324 = arith.index_cast %320 : i32 to index
    %c0_78 = arith.constant 0 : index
    %325 = vector.load %arg8[%324, %c0_78] : memref<64x256xf32, #tpu.memory_space<vmem>>, vector<8x128xf32>
    %326 = arith.truncf %311 : vector<8x32xf32> to vector<8x32xbf16>
    %cst_79 = arith.constant dense<0.000000e+00> : vector<8x128xf32>
    %327 = tpu.matmul %326, %9, %cst_79 {dimension_numbers = #tpu.dot_dimension_numbers<[1], [0], [0], [1], [0, 0, 1, 1], [], []>} : vector<8x32xbf16>, vector<32x128xbf16>, vector<8x128xf32> -> vector<8x128xf32>
    %328 = arith.addf %325, %327 : vector<8x128xf32>
    %329 = arith.index_cast %323 : i32 to index
    %c128_80 = arith.constant 128 : index
    %330 = vector.load %arg8[%329, %c128_80] : memref<64x256xf32, #tpu.memory_space<vmem>>, vector<8x128xf32>
    %331 = arith.truncf %314 : vector<8x32xf32> to vector<8x32xbf16>
    %cst_81 = arith.constant dense<0.000000e+00> : vector<8x128xf32>
    %332 = tpu.matmul %331, %11, %cst_81 {dimension_numbers = #tpu.dot_dimension_numbers<[1], [0], [0], [1], [0, 0, 1, 1], [], []>} : vector<8x32xbf16>, vector<32x128xbf16>, vector<8x128xf32> -> vector<8x128xf32>
    %333 = arith.addf %330, %332 : vector<8x128xf32>
    %334 = vector.extract_strided_slice %328 {offsets = [0, 0], sizes = [8, 96], strides = [1, 1]} : vector<8x128xf32> to vector<8x96xf32>
    %335 = arith.negf %334 : vector<8x96xf32>
    %336 = math.exp %335 : vector<8x96xf32>
    %cst_82 = arith.constant 1.000000e+00 : f32
    %337 = vector.broadcast %cst_82 : f32 to vector<8x96xf32>
    %338 = arith.addf %337, %336 : vector<8x96xf32>
    %339 = arith.divf %337, %338 : vector<8x96xf32>
    %340 = vector.extract_strided_slice %333 {offsets = [0, 0], sizes = [8, 96], strides = [1, 1]} : vector<8x128xf32> to vector<8x96xf32>
    %341 = arith.negf %340 : vector<8x96xf32>
    %342 = math.exp %341 : vector<8x96xf32>
    %cst_83 = arith.constant 1.000000e+00 : f32
    %343 = vector.broadcast %cst_83 : f32 to vector<8x96xf32>
    %344 = arith.addf %343, %342 : vector<8x96xf32>
    %345 = arith.divf %343, %344 : vector<8x96xf32>
    %346 = vector.extract_strided_slice %328 {offsets = [0, 96], sizes = [8, 32], strides = [1, 1]} : vector<8x128xf32> to vector<8x32xf32>
    %347 = math.tanh %346 : vector<8x32xf32>
    %348 = vector.extract_strided_slice %333 {offsets = [0, 96], sizes = [8, 32], strides = [1, 1]} : vector<8x128xf32> to vector<8x32xf32>
    %349 = math.tanh %348 : vector<8x32xf32>
    %350 = vector.extract_strided_slice %339 {offsets = [0, 32], sizes = [8, 32], strides = [1, 1]} : vector<8x96xf32> to vector<8x32xf32>
    %351 = arith.mulf %350, %303 : vector<8x32xf32>
    %352 = vector.extract_strided_slice %339 {offsets = [0, 0], sizes = [8, 32], strides = [1, 1]} : vector<8x96xf32> to vector<8x32xf32>
    %353 = arith.mulf %352, %347 : vector<8x32xf32>
    %354 = arith.addf %351, %353 : vector<8x32xf32>
    %355 = vector.extract_strided_slice %345 {offsets = [0, 32], sizes = [8, 32], strides = [1, 1]} : vector<8x96xf32> to vector<8x32xf32>
    %356 = arith.mulf %355, %308 : vector<8x32xf32>
    %357 = vector.extract_strided_slice %345 {offsets = [0, 0], sizes = [8, 32], strides = [1, 1]} : vector<8x96xf32> to vector<8x32xf32>
    %358 = arith.mulf %357, %349 : vector<8x32xf32>
    %359 = arith.addf %356, %358 : vector<8x32xf32>
    %360 = vector.extract_strided_slice %339 {offsets = [0, 64], sizes = [8, 32], strides = [1, 1]} : vector<8x96xf32> to vector<8x32xf32>
    %361 = math.tanh %354 : vector<8x32xf32>
    %362 = arith.mulf %360, %361 : vector<8x32xf32>
    %363 = vector.extract_strided_slice %345 {offsets = [0, 64], sizes = [8, 32], strides = [1, 1]} : vector<8x96xf32> to vector<8x32xf32>
    %364 = math.tanh %359 : vector<8x32xf32>
    %365 = arith.mulf %363, %364 : vector<8x32xf32>
    %366 = arith.index_cast %320 : i32 to index
    %c0_84 = arith.constant 0 : index
    %367 = vector.load %arg9[%366, %c0_84] : memref<64x64xf32, #tpu.memory_space<vmem>>, vector<8x32xf32>
    tpu.vector_store %arg9[%366, %c0_84], %362 {strides = array<i32>} : memref<64x64xf32, #tpu.memory_space<vmem>>, vector<8x32xf32>,
    %368 = arith.index_cast %323 : i32 to index
    %c32_85 = arith.constant 32 : index
    %369 = vector.load %arg9[%368, %c32_85] : memref<64x64xf32, #tpu.memory_space<vmem>>, vector<8x32xf32>
    tpu.vector_store %arg9[%368, %c32_85], %365 {strides = array<i32>} : memref<64x64xf32, #tpu.memory_space<vmem>>, vector<8x32xf32>,
    %c7_i32_86 = arith.constant 7 : i32
    %c8_i32_87 = arith.constant 8 : i32
    %370 = arith.muli %c7_i32_86, %c8_i32_87 : i32
    %371 = tpu.assume_multiple %370, 8 : i32
    %c7_i32_88 = arith.constant 7 : i32
    %372 = arith.subi %c7_i32_88, %c7_i32_86 : i32
    %c8_i32_89 = arith.constant 8 : i32
    %373 = arith.muli %372, %c8_i32_89 : i32
    %374 = tpu.assume_multiple %373, 8 : i32
    %375 = arith.index_cast %371 : i32 to index
    %c0_90 = arith.constant 0 : index
    %376 = vector.load %arg8[%375, %c0_90] : memref<64x256xf32, #tpu.memory_space<vmem>>, vector<8x128xf32>
    %377 = arith.truncf %362 : vector<8x32xf32> to vector<8x32xbf16>
    %cst_91 = arith.constant dense<0.000000e+00> : vector<8x128xf32>
    %378 = tpu.matmul %377, %9, %cst_91 {dimension_numbers = #tpu.dot_dimension_numbers<[1], [0], [0], [1], [0, 0, 1, 1], [], []>} : vector<8x32xbf16>, vector<32x128xbf16>, vector<8x128xf32> -> vector<8x128xf32>
    %379 = arith.addf %376, %378 : vector<8x128xf32>
    %380 = arith.index_cast %374 : i32 to index
    %c128_92 = arith.constant 128 : index
    %381 = vector.load %arg8[%380, %c128_92] : memref<64x256xf32, #tpu.memory_space<vmem>>, vector<8x128xf32>
    %382 = arith.truncf %365 : vector<8x32xf32> to vector<8x32xbf16>
    %cst_93 = arith.constant dense<0.000000e+00> : vector<8x128xf32>
    %383 = tpu.matmul %382, %11, %cst_93 {dimension_numbers = #tpu.dot_dimension_numbers<[1], [0], [0], [1], [0, 0, 1, 1], [], []>} : vector<8x32xbf16>, vector<32x128xbf16>, vector<8x128xf32> -> vector<8x128xf32>
    %384 = arith.addf %381, %383 : vector<8x128xf32>
    %385 = vector.extract_strided_slice %379 {offsets = [0, 0], sizes = [8, 96], strides = [1, 1]} : vector<8x128xf32> to vector<8x96xf32>
    %386 = arith.negf %385 : vector<8x96xf32>
    %387 = math.exp %386 : vector<8x96xf32>
    %cst_94 = arith.constant 1.000000e+00 : f32
    %388 = vector.broadcast %cst_94 : f32 to vector<8x96xf32>
    %389 = arith.addf %388, %387 : vector<8x96xf32>
    %390 = arith.divf %388, %389 : vector<8x96xf32>
    %391 = vector.extract_strided_slice %384 {offsets = [0, 0], sizes = [8, 96], strides = [1, 1]} : vector<8x128xf32> to vector<8x96xf32>
    %392 = arith.negf %391 : vector<8x96xf32>
    %393 = math.exp %392 : vector<8x96xf32>
    %cst_95 = arith.constant 1.000000e+00 : f32
    %394 = vector.broadcast %cst_95 : f32 to vector<8x96xf32>
    %395 = arith.addf %394, %393 : vector<8x96xf32>
    %396 = arith.divf %394, %395 : vector<8x96xf32>
    %397 = vector.extract_strided_slice %379 {offsets = [0, 96], sizes = [8, 32], strides = [1, 1]} : vector<8x128xf32> to vector<8x32xf32>
    %398 = math.tanh %397 : vector<8x32xf32>
    %399 = vector.extract_strided_slice %384 {offsets = [0, 96], sizes = [8, 32], strides = [1, 1]} : vector<8x128xf32> to vector<8x32xf32>
    %400 = math.tanh %399 : vector<8x32xf32>
    %401 = vector.extract_strided_slice %390 {offsets = [0, 32], sizes = [8, 32], strides = [1, 1]} : vector<8x96xf32> to vector<8x32xf32>
    %402 = arith.mulf %401, %354 : vector<8x32xf32>
    %403 = vector.extract_strided_slice %390 {offsets = [0, 0], sizes = [8, 32], strides = [1, 1]} : vector<8x96xf32> to vector<8x32xf32>
    %404 = arith.mulf %403, %398 : vector<8x32xf32>
    %405 = arith.addf %402, %404 : vector<8x32xf32>
    %406 = vector.extract_strided_slice %396 {offsets = [0, 32], sizes = [8, 32], strides = [1, 1]} : vector<8x96xf32> to vector<8x32xf32>
    %407 = arith.mulf %406, %359 : vector<8x32xf32>
    %408 = vector.extract_strided_slice %396 {offsets = [0, 0], sizes = [8, 32], strides = [1, 1]} : vector<8x96xf32> to vector<8x32xf32>
    %409 = arith.mulf %408, %400 : vector<8x32xf32>
    %410 = arith.addf %407, %409 : vector<8x32xf32>
    %411 = vector.extract_strided_slice %390 {offsets = [0, 64], sizes = [8, 32], strides = [1, 1]} : vector<8x96xf32> to vector<8x32xf32>
    %412 = math.tanh %405 : vector<8x32xf32>
    %413 = arith.mulf %411, %412 : vector<8x32xf32>
    %414 = vector.extract_strided_slice %396 {offsets = [0, 64], sizes = [8, 32], strides = [1, 1]} : vector<8x96xf32> to vector<8x32xf32>
    %415 = math.tanh %410 : vector<8x32xf32>
    %416 = arith.mulf %414, %415 : vector<8x32xf32>
    %417 = arith.index_cast %371 : i32 to index
    %c0_96 = arith.constant 0 : index
    %418 = vector.load %arg9[%417, %c0_96] : memref<64x64xf32, #tpu.memory_space<vmem>>, vector<8x32xf32>
    tpu.vector_store %arg9[%417, %c0_96], %413 {strides = array<i32>} : memref<64x64xf32, #tpu.memory_space<vmem>>, vector<8x32xf32>,
    %419 = arith.index_cast %374 : i32 to index
    %c32_97 = arith.constant 32 : index
    %420 = vector.load %arg9[%419, %c32_97] : memref<64x64xf32, #tpu.memory_space<vmem>>, vector<8x32xf32>
    tpu.vector_store %arg9[%419, %c32_97], %416 {strides = array<i32>} : memref<64x64xf32, #tpu.memory_space<vmem>>, vector<8x32xf32>,
    %c8_i32_98 = arith.constant 8 : i32
    %c0_99 = arith.constant 0 : index
    %c0_100 = arith.constant 0 : index
    %421 = vector.load %arg9[%c0_99, %c0_100] : memref<64x64xf32, #tpu.memory_space<vmem>>, vector<64x64xf32>
    %422 = arith.truncf %421 : vector<64x64xf32> to vector<64x64xbf16>
    %c0_101 = arith.constant 0 : index
    %c0_102 = arith.constant 0 : index
    %423 = vector.load %arg4[%c0_101, %c0_102] : memref<64x256xbf16, #tpu.memory_space<vmem>>, vector<64x256xbf16>
    %cst_103 = arith.constant dense<0.000000e+00> : vector<64x256xf32>
    %424 = tpu.matmul %422, %423, %cst_103 {dimension_numbers = #tpu.dot_dimension_numbers<[1], [0], [0], [1], [0, 0, 1, 1], [], []>} : vector<64x64xbf16>, vector<64x256xbf16>, vector<64x256xf32> -> vector<64x256xf32>
    %c0_104 = arith.constant 0 : index
    %c0_105 = arith.constant 0 : index
    %425 = vector.load %arg6[%c0_104, %c0_105] : memref<1x256xf32, #tpu.memory_space<vmem>>, vector<1x256xf32>
    %426 = vector.broadcast %425 : vector<1x256xf32> to vector<64x256xf32>
    %427 = arith.addf %424, %426 : vector<64x256xf32>
    %c0_106 = arith.constant 0 : index
    %c0_107 = arith.constant 0 : index
    %428 = vector.load %arg8[%c0_106, %c0_107] : memref<64x256xf32, #tpu.memory_space<vmem>>, vector<64x256xf32>
    tpu.vector_store %arg8[%c0_106, %c0_107], %427 {strides = array<i32>} : memref<64x256xf32, #tpu.memory_space<vmem>>, vector<64x256xf32>,
    %c0_108 = arith.constant 0 : index
    %c0_109 = arith.constant 0 : index
    %c0_110 = arith.constant 0 : index
    %429 = vector.load %arg5[%c0_108, %c0_109, %c0_110] : memref<2x32x128xbf16, #tpu.memory_space<vmem>>, vector<1x32x128xbf16>
    %430 = vector.shape_cast %429 : vector<1x32x128xbf16> to vector<32x128xbf16>
    %c1_111 = arith.constant 1 : index
    %c0_112 = arith.constant 0 : index
    %c0_113 = arith.constant 0 : index
    %431 = vector.load %arg5[%c1_111, %c0_112, %c0_113] : memref<2x32x128xbf16, #tpu.memory_space<vmem>>, vector<1x32x128xbf16>
    %432 = vector.shape_cast %431 : vector<1x32x128xbf16> to vector<32x128xbf16>
    %cst_114 = arith.constant 0.000000e+00 : f32
    %433 = vector.broadcast %cst_114 : f32 to vector<8x32xf32>
    %c0_i32_115 = arith.constant 0 : i32
    %c8_i32_116 = arith.constant 8 : i32
    %434 = arith.muli %c0_i32_115, %c8_i32_116 : i32
    %435 = tpu.assume_multiple %434, 8 : i32
    %c7_i32_117 = arith.constant 7 : i32
    %436 = arith.subi %c7_i32_117, %c0_i32_115 : i32
    %c8_i32_118 = arith.constant 8 : i32
    %437 = arith.muli %436, %c8_i32_118 : i32
    %438 = tpu.assume_multiple %437, 8 : i32
    %439 = arith.index_cast %435 : i32 to index
    %c0_119 = arith.constant 0 : index
    %440 = vector.load %arg8[%439, %c0_119] : memref<64x256xf32, #tpu.memory_space<vmem>>, vector<8x128xf32>
    %441 = arith.truncf %433 : vector<8x32xf32> to vector<8x32xbf16>
    %cst_120 = arith.constant dense<0.000000e+00> : vector<8x128xf32>
    %442 = tpu.matmul %441, %430, %cst_120 {dimension_numbers = #tpu.dot_dimension_numbers<[1], [0], [0], [1], [0, 0, 1, 1], [], []>} : vector<8x32xbf16>, vector<32x128xbf16>, vector<8x128xf32> -> vector<8x128xf32>
    %443 = arith.addf %440, %442 : vector<8x128xf32>
    %444 = arith.index_cast %438 : i32 to index
    %c128_121 = arith.constant 128 : index
    %445 = vector.load %arg8[%444, %c128_121] : memref<64x256xf32, #tpu.memory_space<vmem>>, vector<8x128xf32>
    %446 = arith.truncf %433 : vector<8x32xf32> to vector<8x32xbf16>
    %cst_122 = arith.constant dense<0.000000e+00> : vector<8x128xf32>
    %447 = tpu.matmul %446, %432, %cst_122 {dimension_numbers = #tpu.dot_dimension_numbers<[1], [0], [0], [1], [0, 0, 1, 1], [], []>} : vector<8x32xbf16>, vector<32x128xbf16>, vector<8x128xf32> -> vector<8x128xf32>
    %448 = arith.addf %445, %447 : vector<8x128xf32>
    %449 = vector.extract_strided_slice %443 {offsets = [0, 0], sizes = [8, 96], strides = [1, 1]} : vector<8x128xf32> to vector<8x96xf32>
    %450 = arith.negf %449 : vector<8x96xf32>
    %451 = math.exp %450 : vector<8x96xf32>
    %cst_123 = arith.constant 1.000000e+00 : f32
    %452 = vector.broadcast %cst_123 : f32 to vector<8x96xf32>
    %453 = arith.addf %452, %451 : vector<8x96xf32>
    %454 = arith.divf %452, %453 : vector<8x96xf32>
    %455 = vector.extract_strided_slice %448 {offsets = [0, 0], sizes = [8, 96], strides = [1, 1]} : vector<8x128xf32> to vector<8x96xf32>
    %456 = arith.negf %455 : vector<8x96xf32>
    %457 = math.exp %456 : vector<8x96xf32>
    %cst_124 = arith.constant 1.000000e+00 : f32
    %458 = vector.broadcast %cst_124 : f32 to vector<8x96xf32>
    %459 = arith.addf %458, %457 : vector<8x96xf32>
    %460 = arith.divf %458, %459 : vector<8x96xf32>
    %461 = vector.extract_strided_slice %443 {offsets = [0, 96], sizes = [8, 32], strides = [1, 1]} : vector<8x128xf32> to vector<8x32xf32>
    %462 = math.tanh %461 : vector<8x32xf32>
    %463 = vector.extract_strided_slice %448 {offsets = [0, 96], sizes = [8, 32], strides = [1, 1]} : vector<8x128xf32> to vector<8x32xf32>
    %464 = math.tanh %463 : vector<8x32xf32>
    %465 = vector.extract_strided_slice %454 {offsets = [0, 32], sizes = [8, 32], strides = [1, 1]} : vector<8x96xf32> to vector<8x32xf32>
    %466 = arith.mulf %465, %433 : vector<8x32xf32>
    %467 = vector.extract_strided_slice %454 {offsets = [0, 0], sizes = [8, 32], strides = [1, 1]} : vector<8x96xf32> to vector<8x32xf32>
    %468 = arith.mulf %467, %462 : vector<8x32xf32>
    %469 = arith.addf %466, %468 : vector<8x32xf32>
    %470 = vector.extract_strided_slice %460 {offsets = [0, 32], sizes = [8, 32], strides = [1, 1]} : vector<8x96xf32> to vector<8x32xf32>
    %471 = arith.mulf %470, %433 : vector<8x32xf32>
    %472 = vector.extract_strided_slice %460 {offsets = [0, 0], sizes = [8, 32], strides = [1, 1]} : vector<8x96xf32> to vector<8x32xf32>
    %473 = arith.mulf %472, %464 : vector<8x32xf32>
    %474 = arith.addf %471, %473 : vector<8x32xf32>
    %475 = vector.extract_strided_slice %454 {offsets = [0, 64], sizes = [8, 32], strides = [1, 1]} : vector<8x96xf32> to vector<8x32xf32>
    %476 = math.tanh %469 : vector<8x32xf32>
    %477 = arith.mulf %475, %476 : vector<8x32xf32>
    %478 = vector.extract_strided_slice %460 {offsets = [0, 64], sizes = [8, 32], strides = [1, 1]} : vector<8x96xf32> to vector<8x32xf32>
    %479 = math.tanh %474 : vector<8x32xf32>
    %480 = arith.mulf %478, %479 : vector<8x32xf32>
    %481 = arith.index_cast %435 : i32 to index
    %c0_125 = arith.constant 0 : index
    %482 = vector.load %arg7[%481, %c0_125] : memref<64x64xf32, #tpu.memory_space<vmem>>, vector<8x32xf32>
    tpu.vector_store %arg7[%481, %c0_125], %477 {strides = array<i32>} : memref<64x64xf32, #tpu.memory_space<vmem>>, vector<8x32xf32>,
    %483 = arith.index_cast %438 : i32 to index
    %c32_126 = arith.constant 32 : index
    %484 = vector.load %arg7[%483, %c32_126] : memref<64x64xf32, #tpu.memory_space<vmem>>, vector<8x32xf32>
    tpu.vector_store %arg7[%483, %c32_126], %480 {strides = array<i32>} : memref<64x64xf32, #tpu.memory_space<vmem>>, vector<8x32xf32>,
    %c1_i32_127 = arith.constant 1 : i32
    %c8_i32_128 = arith.constant 8 : i32
    %485 = arith.muli %c1_i32_127, %c8_i32_128 : i32
    %486 = tpu.assume_multiple %485, 8 : i32
    %c7_i32_129 = arith.constant 7 : i32
    %487 = arith.subi %c7_i32_129, %c1_i32_127 : i32
    %c8_i32_130 = arith.constant 8 : i32
    %488 = arith.muli %487, %c8_i32_130 : i32
    %489 = tpu.assume_multiple %488, 8 : i32
    %490 = arith.index_cast %486 : i32 to index
    %c0_131 = arith.constant 0 : index
    %491 = vector.load %arg8[%490, %c0_131] : memref<64x256xf32, #tpu.memory_space<vmem>>, vector<8x128xf32>
    %492 = arith.truncf %477 : vector<8x32xf32> to vector<8x32xbf16>
    %cst_132 = arith.constant dense<0.000000e+00> : vector<8x128xf32>
    %493 = tpu.matmul %492, %430, %cst_132 {dimension_numbers = #tpu.dot_dimension_numbers<[1], [0], [0], [1], [0, 0, 1, 1], [], []>} : vector<8x32xbf16>, vector<32x128xbf16>, vector<8x128xf32> -> vector<8x128xf32>
    %494 = arith.addf %491, %493 : vector<8x128xf32>
    %495 = arith.index_cast %489 : i32 to index
    %c128_133 = arith.constant 128 : index
    %496 = vector.load %arg8[%495, %c128_133] : memref<64x256xf32, #tpu.memory_space<vmem>>, vector<8x128xf32>
    %497 = arith.truncf %480 : vector<8x32xf32> to vector<8x32xbf16>
    %cst_134 = arith.constant dense<0.000000e+00> : vector<8x128xf32>
    %498 = tpu.matmul %497, %432, %cst_134 {dimension_numbers = #tpu.dot_dimension_numbers<[1], [0], [0], [1], [0, 0, 1, 1], [], []>} : vector<8x32xbf16>, vector<32x128xbf16>, vector<8x128xf32> -> vector<8x128xf32>
    %499 = arith.addf %496, %498 : vector<8x128xf32>
    %500 = vector.extract_strided_slice %494 {offsets = [0, 0], sizes = [8, 96], strides = [1, 1]} : vector<8x128xf32> to vector<8x96xf32>
    %501 = arith.negf %500 : vector<8x96xf32>
    %502 = math.exp %501 : vector<8x96xf32>
    %cst_135 = arith.constant 1.000000e+00 : f32
    %503 = vector.broadcast %cst_135 : f32 to vector<8x96xf32>
    %504 = arith.addf %503, %502 : vector<8x96xf32>
    %505 = arith.divf %503, %504 : vector<8x96xf32>
    %506 = vector.extract_strided_slice %499 {offsets = [0, 0], sizes = [8, 96], strides = [1, 1]} : vector<8x128xf32> to vector<8x96xf32>
    %507 = arith.negf %506 : vector<8x96xf32>
    %508 = math.exp %507 : vector<8x96xf32>
    %cst_136 = arith.constant 1.000000e+00 : f32
    %509 = vector.broadcast %cst_136 : f32 to vector<8x96xf32>
    %510 = arith.addf %509, %508 : vector<8x96xf32>
    %511 = arith.divf %509, %510 : vector<8x96xf32>
    %512 = vector.extract_strided_slice %494 {offsets = [0, 96], sizes = [8, 32], strides = [1, 1]} : vector<8x128xf32> to vector<8x32xf32>
    %513 = math.tanh %512 : vector<8x32xf32>
    %514 = vector.extract_strided_slice %499 {offsets = [0, 96], sizes = [8, 32], strides = [1, 1]} : vector<8x128xf32> to vector<8x32xf32>
    %515 = math.tanh %514 : vector<8x32xf32>
    %516 = vector.extract_strided_slice %505 {offsets = [0, 32], sizes = [8, 32], strides = [1, 1]} : vector<8x96xf32> to vector<8x32xf32>
    %517 = arith.mulf %516, %469 : vector<8x32xf32>
    %518 = vector.extract_strided_slice %505 {offsets = [0, 0], sizes = [8, 32], strides = [1, 1]} : vector<8x96xf32> to vector<8x32xf32>
    %519 = arith.mulf %518, %513 : vector<8x32xf32>
    %520 = arith.addf %517, %519 : vector<8x32xf32>
    %521 = vector.extract_strided_slice %511 {offsets = [0, 32], sizes = [8, 32], strides = [1, 1]} : vector<8x96xf32> to vector<8x32xf32>
    %522 = arith.mulf %521, %474 : vector<8x32xf32>
    %523 = vector.extract_strided_slice %511 {offsets = [0, 0], sizes = [8, 32], strides = [1, 1]} : vector<8x96xf32> to vector<8x32xf32>
    %524 = arith.mulf %523, %515 : vector<8x32xf32>
    %525 = arith.addf %522, %524 : vector<8x32xf32>
    %526 = vector.extract_strided_slice %505 {offsets = [0, 64], sizes = [8, 32], strides = [1, 1]} : vector<8x96xf32> to vector<8x32xf32>
    %527 = math.tanh %520 : vector<8x32xf32>
    %528 = arith.mulf %526, %527 : vector<8x32xf32>
    %529 = vector.extract_strided_slice %511 {offsets = [0, 64], sizes = [8, 32], strides = [1, 1]} : vector<8x96xf32> to vector<8x32xf32>
    %530 = math.tanh %525 : vector<8x32xf32>
    %531 = arith.mulf %529, %530 : vector<8x32xf32>
    %532 = arith.index_cast %486 : i32 to index
    %c0_137 = arith.constant 0 : index
    %533 = vector.load %arg7[%532, %c0_137] : memref<64x64xf32, #tpu.memory_space<vmem>>, vector<8x32xf32>
    tpu.vector_store %arg7[%532, %c0_137], %528 {strides = array<i32>} : memref<64x64xf32, #tpu.memory_space<vmem>>, vector<8x32xf32>,
    %534 = arith.index_cast %489 : i32 to index
    %c32_138 = arith.constant 32 : index
    %535 = vector.load %arg7[%534, %c32_138] : memref<64x64xf32, #tpu.memory_space<vmem>>, vector<8x32xf32>
    tpu.vector_store %arg7[%534, %c32_138], %531 {strides = array<i32>} : memref<64x64xf32, #tpu.memory_space<vmem>>, vector<8x32xf32>,
    %c2_i32_139 = arith.constant 2 : i32
    %c8_i32_140 = arith.constant 8 : i32
    %536 = arith.muli %c2_i32_139, %c8_i32_140 : i32
    %537 = tpu.assume_multiple %536, 8 : i32
    %c7_i32_141 = arith.constant 7 : i32
    %538 = arith.subi %c7_i32_141, %c2_i32_139 : i32
    %c8_i32_142 = arith.constant 8 : i32
    %539 = arith.muli %538, %c8_i32_142 : i32
    %540 = tpu.assume_multiple %539, 8 : i32
    %541 = arith.index_cast %537 : i32 to index
    %c0_143 = arith.constant 0 : index
    %542 = vector.load %arg8[%541, %c0_143] : memref<64x256xf32, #tpu.memory_space<vmem>>, vector<8x128xf32>
    %543 = arith.truncf %528 : vector<8x32xf32> to vector<8x32xbf16>
    %cst_144 = arith.constant dense<0.000000e+00> : vector<8x128xf32>
    %544 = tpu.matmul %543, %430, %cst_144 {dimension_numbers = #tpu.dot_dimension_numbers<[1], [0], [0], [1], [0, 0, 1, 1], [], []>} : vector<8x32xbf16>, vector<32x128xbf16>, vector<8x128xf32> -> vector<8x128xf32>
    %545 = arith.addf %542, %544 : vector<8x128xf32>
    %546 = arith.index_cast %540 : i32 to index
    %c128_145 = arith.constant 128 : index
    %547 = vector.load %arg8[%546, %c128_145] : memref<64x256xf32, #tpu.memory_space<vmem>>, vector<8x128xf32>
    %548 = arith.truncf %531 : vector<8x32xf32> to vector<8x32xbf16>
    %cst_146 = arith.constant dense<0.000000e+00> : vector<8x128xf32>
    %549 = tpu.matmul %548, %432, %cst_146 {dimension_numbers = #tpu.dot_dimension_numbers<[1], [0], [0], [1], [0, 0, 1, 1], [], []>} : vector<8x32xbf16>, vector<32x128xbf16>, vector<8x128xf32> -> vector<8x128xf32>
    %550 = arith.addf %547, %549 : vector<8x128xf32>
    %551 = vector.extract_strided_slice %545 {offsets = [0, 0], sizes = [8, 96], strides = [1, 1]} : vector<8x128xf32> to vector<8x96xf32>
    %552 = arith.negf %551 : vector<8x96xf32>
    %553 = math.exp %552 : vector<8x96xf32>
    %cst_147 = arith.constant 1.000000e+00 : f32
    %554 = vector.broadcast %cst_147 : f32 to vector<8x96xf32>
    %555 = arith.addf %554, %553 : vector<8x96xf32>
    %556 = arith.divf %554, %555 : vector<8x96xf32>
    %557 = vector.extract_strided_slice %550 {offsets = [0, 0], sizes = [8, 96], strides = [1, 1]} : vector<8x128xf32> to vector<8x96xf32>
    %558 = arith.negf %557 : vector<8x96xf32>
    %559 = math.exp %558 : vector<8x96xf32>
    %cst_148 = arith.constant 1.000000e+00 : f32
    %560 = vector.broadcast %cst_148 : f32 to vector<8x96xf32>
    %561 = arith.addf %560, %559 : vector<8x96xf32>
    %562 = arith.divf %560, %561 : vector<8x96xf32>
    %563 = vector.extract_strided_slice %545 {offsets = [0, 96], sizes = [8, 32], strides = [1, 1]} : vector<8x128xf32> to vector<8x32xf32>
    %564 = math.tanh %563 : vector<8x32xf32>
    %565 = vector.extract_strided_slice %550 {offsets = [0, 96], sizes = [8, 32], strides = [1, 1]} : vector<8x128xf32> to vector<8x32xf32>
    %566 = math.tanh %565 : vector<8x32xf32>
    %567 = vector.extract_strided_slice %556 {offsets = [0, 32], sizes = [8, 32], strides = [1, 1]} : vector<8x96xf32> to vector<8x32xf32>
    %568 = arith.mulf %567, %520 : vector<8x32xf32>
    %569 = vector.extract_strided_slice %556 {offsets = [0, 0], sizes = [8, 32], strides = [1, 1]} : vector<8x96xf32> to vector<8x32xf32>
    %570 = arith.mulf %569, %564 : vector<8x32xf32>
    %571 = arith.addf %568, %570 : vector<8x32xf32>
    %572 = vector.extract_strided_slice %562 {offsets = [0, 32], sizes = [8, 32], strides = [1, 1]} : vector<8x96xf32> to vector<8x32xf32>
    %573 = arith.mulf %572, %525 : vector<8x32xf32>
    %574 = vector.extract_strided_slice %562 {offsets = [0, 0], sizes = [8, 32], strides = [1, 1]} : vector<8x96xf32> to vector<8x32xf32>
    %575 = arith.mulf %574, %566 : vector<8x32xf32>
    %576 = arith.addf %573, %575 : vector<8x32xf32>
    %577 = vector.extract_strided_slice %556 {offsets = [0, 64], sizes = [8, 32], strides = [1, 1]} : vector<8x96xf32> to vector<8x32xf32>
    %578 = math.tanh %571 : vector<8x32xf32>
    %579 = arith.mulf %577, %578 : vector<8x32xf32>
    %580 = vector.extract_strided_slice %562 {offsets = [0, 64], sizes = [8, 32], strides = [1, 1]} : vector<8x96xf32> to vector<8x32xf32>
    %581 = math.tanh %576 : vector<8x32xf32>
    %582 = arith.mulf %580, %581 : vector<8x32xf32>
    %583 = arith.index_cast %537 : i32 to index
    %c0_149 = arith.constant 0 : index
    %584 = vector.load %arg7[%583, %c0_149] : memref<64x64xf32, #tpu.memory_space<vmem>>, vector<8x32xf32>
    tpu.vector_store %arg7[%583, %c0_149], %579 {strides = array<i32>} : memref<64x64xf32, #tpu.memory_space<vmem>>, vector<8x32xf32>,
    %585 = arith.index_cast %540 : i32 to index
    %c32_150 = arith.constant 32 : index
    %586 = vector.load %arg7[%585, %c32_150] : memref<64x64xf32, #tpu.memory_space<vmem>>, vector<8x32xf32>
    tpu.vector_store %arg7[%585, %c32_150], %582 {strides = array<i32>} : memref<64x64xf32, #tpu.memory_space<vmem>>, vector<8x32xf32>,
    %c3_i32_151 = arith.constant 3 : i32
    %c8_i32_152 = arith.constant 8 : i32
    %587 = arith.muli %c3_i32_151, %c8_i32_152 : i32
    %588 = tpu.assume_multiple %587, 8 : i32
    %c7_i32_153 = arith.constant 7 : i32
    %589 = arith.subi %c7_i32_153, %c3_i32_151 : i32
    %c8_i32_154 = arith.constant 8 : i32
    %590 = arith.muli %589, %c8_i32_154 : i32
    %591 = tpu.assume_multiple %590, 8 : i32
    %592 = arith.index_cast %588 : i32 to index
    %c0_155 = arith.constant 0 : index
    %593 = vector.load %arg8[%592, %c0_155] : memref<64x256xf32, #tpu.memory_space<vmem>>, vector<8x128xf32>
    %594 = arith.truncf %579 : vector<8x32xf32> to vector<8x32xbf16>
    %cst_156 = arith.constant dense<0.000000e+00> : vector<8x128xf32>
    %595 = tpu.matmul %594, %430, %cst_156 {dimension_numbers = #tpu.dot_dimension_numbers<[1], [0], [0], [1], [0, 0, 1, 1], [], []>} : vector<8x32xbf16>, vector<32x128xbf16>, vector<8x128xf32> -> vector<8x128xf32>
    %596 = arith.addf %593, %595 : vector<8x128xf32>
    %597 = arith.index_cast %591 : i32 to index
    %c128_157 = arith.constant 128 : index
    %598 = vector.load %arg8[%597, %c128_157] : memref<64x256xf32, #tpu.memory_space<vmem>>, vector<8x128xf32>
    %599 = arith.truncf %582 : vector<8x32xf32> to vector<8x32xbf16>
    %cst_158 = arith.constant dense<0.000000e+00> : vector<8x128xf32>
    %600 = tpu.matmul %599, %432, %cst_158 {dimension_numbers = #tpu.dot_dimension_numbers<[1], [0], [0], [1], [0, 0, 1, 1], [], []>} : vector<8x32xbf16>, vector<32x128xbf16>, vector<8x128xf32> -> vector<8x128xf32>
    %601 = arith.addf %598, %600 : vector<8x128xf32>
    %602 = vector.extract_strided_slice %596 {offsets = [0, 0], sizes = [8, 96], strides = [1, 1]} : vector<8x128xf32> to vector<8x96xf32>
    %603 = arith.negf %602 : vector<8x96xf32>
    %604 = math.exp %603 : vector<8x96xf32>
    %cst_159 = arith.constant 1.000000e+00 : f32
    %605 = vector.broadcast %cst_159 : f32 to vector<8x96xf32>
    %606 = arith.addf %605, %604 : vector<8x96xf32>
    %607 = arith.divf %605, %606 : vector<8x96xf32>
    %608 = vector.extract_strided_slice %601 {offsets = [0, 0], sizes = [8, 96], strides = [1, 1]} : vector<8x128xf32> to vector<8x96xf32>
    %609 = arith.negf %608 : vector<8x96xf32>
    %610 = math.exp %609 : vector<8x96xf32>
    %cst_160 = arith.constant 1.000000e+00 : f32
    %611 = vector.broadcast %cst_160 : f32 to vector<8x96xf32>
    %612 = arith.addf %611, %610 : vector<8x96xf32>
    %613 = arith.divf %611, %612 : vector<8x96xf32>
    %614 = vector.extract_strided_slice %596 {offsets = [0, 96], sizes = [8, 32], strides = [1, 1]} : vector<8x128xf32> to vector<8x32xf32>
    %615 = math.tanh %614 : vector<8x32xf32>
    %616 = vector.extract_strided_slice %601 {offsets = [0, 96], sizes = [8, 32], strides = [1, 1]} : vector<8x128xf32> to vector<8x32xf32>
    %617 = math.tanh %616 : vector<8x32xf32>
    %618 = vector.extract_strided_slice %607 {offsets = [0, 32], sizes = [8, 32], strides = [1, 1]} : vector<8x96xf32> to vector<8x32xf32>
    %619 = arith.mulf %618, %571 : vector<8x32xf32>
    %620 = vector.extract_strided_slice %607 {offsets = [0, 0], sizes = [8, 32], strides = [1, 1]} : vector<8x96xf32> to vector<8x32xf32>
    %621 = arith.mulf %620, %615 : vector<8x32xf32>
    %622 = arith.addf %619, %621 : vector<8x32xf32>
    %623 = vector.extract_strided_slice %613 {offsets = [0, 32], sizes = [8, 32], strides = [1, 1]} : vector<8x96xf32> to vector<8x32xf32>
    %624 = arith.mulf %623, %576 : vector<8x32xf32>
    %625 = vector.extract_strided_slice %613 {offsets = [0, 0], sizes = [8, 32], strides = [1, 1]} : vector<8x96xf32> to vector<8x32xf32>
    %626 = arith.mulf %625, %617 : vector<8x32xf32>
    %627 = arith.addf %624, %626 : vector<8x32xf32>
    %628 = vector.extract_strided_slice %607 {offsets = [0, 64], sizes = [8, 32], strides = [1, 1]} : vector<8x96xf32> to vector<8x32xf32>
    %629 = math.tanh %622 : vector<8x32xf32>
    %630 = arith.mulf %628, %629 : vector<8x32xf32>
    %631 = vector.extract_strided_slice %613 {offsets = [0, 64], sizes = [8, 32], strides = [1, 1]} : vector<8x96xf32> to vector<8x32xf32>
    %632 = math.tanh %627 : vector<8x32xf32>
    %633 = arith.mulf %631, %632 : vector<8x32xf32>
    %634 = arith.index_cast %588 : i32 to index
    %c0_161 = arith.constant 0 : index
    %635 = vector.load %arg7[%634, %c0_161] : memref<64x64xf32, #tpu.memory_space<vmem>>, vector<8x32xf32>
    tpu.vector_store %arg7[%634, %c0_161], %630 {strides = array<i32>} : memref<64x64xf32, #tpu.memory_space<vmem>>, vector<8x32xf32>,
    %636 = arith.index_cast %591 : i32 to index
    %c32_162 = arith.constant 32 : index
    %637 = vector.load %arg7[%636, %c32_162] : memref<64x64xf32, #tpu.memory_space<vmem>>, vector<8x32xf32>
    tpu.vector_store %arg7[%636, %c32_162], %633 {strides = array<i32>} : memref<64x64xf32, #tpu.memory_space<vmem>>, vector<8x32xf32>,
    %c4_i32_163 = arith.constant 4 : i32
    %c8_i32_164 = arith.constant 8 : i32
    %638 = arith.muli %c4_i32_163, %c8_i32_164 : i32
    %639 = tpu.assume_multiple %638, 8 : i32
    %c7_i32_165 = arith.constant 7 : i32
    %640 = arith.subi %c7_i32_165, %c4_i32_163 : i32
    %c8_i32_166 = arith.constant 8 : i32
    %641 = arith.muli %640, %c8_i32_166 : i32
    %642 = tpu.assume_multiple %641, 8 : i32
    %643 = arith.index_cast %639 : i32 to index
    %c0_167 = arith.constant 0 : index
    %644 = vector.load %arg8[%643, %c0_167] : memref<64x256xf32, #tpu.memory_space<vmem>>, vector<8x128xf32>
    %645 = arith.truncf %630 : vector<8x32xf32> to vector<8x32xbf16>
    %cst_168 = arith.constant dense<0.000000e+00> : vector<8x128xf32>
    %646 = tpu.matmul %645, %430, %cst_168 {dimension_numbers = #tpu.dot_dimension_numbers<[1], [0], [0], [1], [0, 0, 1, 1], [], []>} : vector<8x32xbf16>, vector<32x128xbf16>, vector<8x128xf32> -> vector<8x128xf32>
    %647 = arith.addf %644, %646 : vector<8x128xf32>
    %648 = arith.index_cast %642 : i32 to index
    %c128_169 = arith.constant 128 : index
    %649 = vector.load %arg8[%648, %c128_169] : memref<64x256xf32, #tpu.memory_space<vmem>>, vector<8x128xf32>
    %650 = arith.truncf %633 : vector<8x32xf32> to vector<8x32xbf16>
    %cst_170 = arith.constant dense<0.000000e+00> : vector<8x128xf32>
    %651 = tpu.matmul %650, %432, %cst_170 {dimension_numbers = #tpu.dot_dimension_numbers<[1], [0], [0], [1], [0, 0, 1, 1], [], []>} : vector<8x32xbf16>, vector<32x128xbf16>, vector<8x128xf32> -> vector<8x128xf32>
    %652 = arith.addf %649, %651 : vector<8x128xf32>
    %653 = vector.extract_strided_slice %647 {offsets = [0, 0], sizes = [8, 96], strides = [1, 1]} : vector<8x128xf32> to vector<8x96xf32>
    %654 = arith.negf %653 : vector<8x96xf32>
    %655 = math.exp %654 : vector<8x96xf32>
    %cst_171 = arith.constant 1.000000e+00 : f32
    %656 = vector.broadcast %cst_171 : f32 to vector<8x96xf32>
    %657 = arith.addf %656, %655 : vector<8x96xf32>
    %658 = arith.divf %656, %657 : vector<8x96xf32>
    %659 = vector.extract_strided_slice %652 {offsets = [0, 0], sizes = [8, 96], strides = [1, 1]} : vector<8x128xf32> to vector<8x96xf32>
    %660 = arith.negf %659 : vector<8x96xf32>
    %661 = math.exp %660 : vector<8x96xf32>
    %cst_172 = arith.constant 1.000000e+00 : f32
    %662 = vector.broadcast %cst_172 : f32 to vector<8x96xf32>
    %663 = arith.addf %662, %661 : vector<8x96xf32>
    %664 = arith.divf %662, %663 : vector<8x96xf32>
    %665 = vector.extract_strided_slice %647 {offsets = [0, 96], sizes = [8, 32], strides = [1, 1]} : vector<8x128xf32> to vector<8x32xf32>
    %666 = math.tanh %665 : vector<8x32xf32>
    %667 = vector.extract_strided_slice %652 {offsets = [0, 96], sizes = [8, 32], strides = [1, 1]} : vector<8x128xf32> to vector<8x32xf32>
    %668 = math.tanh %667 : vector<8x32xf32>
    %669 = vector.extract_strided_slice %658 {offsets = [0, 32], sizes = [8, 32], strides = [1, 1]} : vector<8x96xf32> to vector<8x32xf32>
    %670 = arith.mulf %669, %622 : vector<8x32xf32>
    %671 = vector.extract_strided_slice %658 {offsets = [0, 0], sizes = [8, 32], strides = [1, 1]} : vector<8x96xf32> to vector<8x32xf32>
    %672 = arith.mulf %671, %666 : vector<8x32xf32>
    %673 = arith.addf %670, %672 : vector<8x32xf32>
    %674 = vector.extract_strided_slice %664 {offsets = [0, 32], sizes = [8, 32], strides = [1, 1]} : vector<8x96xf32> to vector<8x32xf32>
    %675 = arith.mulf %674, %627 : vector<8x32xf32>
    %676 = vector.extract_strided_slice %664 {offsets = [0, 0], sizes = [8, 32], strides = [1, 1]} : vector<8x96xf32> to vector<8x32xf32>
    %677 = arith.mulf %676, %668 : vector<8x32xf32>
    %678 = arith.addf %675, %677 : vector<8x32xf32>
    %679 = vector.extract_strided_slice %658 {offsets = [0, 64], sizes = [8, 32], strides = [1, 1]} : vector<8x96xf32> to vector<8x32xf32>
    %680 = math.tanh %673 : vector<8x32xf32>
    %681 = arith.mulf %679, %680 : vector<8x32xf32>
    %682 = vector.extract_strided_slice %664 {offsets = [0, 64], sizes = [8, 32], strides = [1, 1]} : vector<8x96xf32> to vector<8x32xf32>
    %683 = math.tanh %678 : vector<8x32xf32>
    %684 = arith.mulf %682, %683 : vector<8x32xf32>
    %685 = arith.index_cast %639 : i32 to index
    %c0_173 = arith.constant 0 : index
    %686 = vector.load %arg7[%685, %c0_173] : memref<64x64xf32, #tpu.memory_space<vmem>>, vector<8x32xf32>
    tpu.vector_store %arg7[%685, %c0_173], %681 {strides = array<i32>} : memref<64x64xf32, #tpu.memory_space<vmem>>, vector<8x32xf32>,
    %687 = arith.index_cast %642 : i32 to index
    %c32_174 = arith.constant 32 : index
    %688 = vector.load %arg7[%687, %c32_174] : memref<64x64xf32, #tpu.memory_space<vmem>>, vector<8x32xf32>
    tpu.vector_store %arg7[%687, %c32_174], %684 {strides = array<i32>} : memref<64x64xf32, #tpu.memory_space<vmem>>, vector<8x32xf32>,
    %c5_i32_175 = arith.constant 5 : i32
    %c8_i32_176 = arith.constant 8 : i32
    %689 = arith.muli %c5_i32_175, %c8_i32_176 : i32
    %690 = tpu.assume_multiple %689, 8 : i32
    %c7_i32_177 = arith.constant 7 : i32
    %691 = arith.subi %c7_i32_177, %c5_i32_175 : i32
    %c8_i32_178 = arith.constant 8 : i32
    %692 = arith.muli %691, %c8_i32_178 : i32
    %693 = tpu.assume_multiple %692, 8 : i32
    %694 = arith.index_cast %690 : i32 to index
    %c0_179 = arith.constant 0 : index
    %695 = vector.load %arg8[%694, %c0_179] : memref<64x256xf32, #tpu.memory_space<vmem>>, vector<8x128xf32>
    %696 = arith.truncf %681 : vector<8x32xf32> to vector<8x32xbf16>
    %cst_180 = arith.constant dense<0.000000e+00> : vector<8x128xf32>
    %697 = tpu.matmul %696, %430, %cst_180 {dimension_numbers = #tpu.dot_dimension_numbers<[1], [0], [0], [1], [0, 0, 1, 1], [], []>} : vector<8x32xbf16>, vector<32x128xbf16>, vector<8x128xf32> -> vector<8x128xf32>
    %698 = arith.addf %695, %697 : vector<8x128xf32>
    %699 = arith.index_cast %693 : i32 to index
    %c128_181 = arith.constant 128 : index
    %700 = vector.load %arg8[%699, %c128_181] : memref<64x256xf32, #tpu.memory_space<vmem>>, vector<8x128xf32>
    %701 = arith.truncf %684 : vector<8x32xf32> to vector<8x32xbf16>
    %cst_182 = arith.constant dense<0.000000e+00> : vector<8x128xf32>
    %702 = tpu.matmul %701, %432, %cst_182 {dimension_numbers = #tpu.dot_dimension_numbers<[1], [0], [0], [1], [0, 0, 1, 1], [], []>} : vector<8x32xbf16>, vector<32x128xbf16>, vector<8x128xf32> -> vector<8x128xf32>
    %703 = arith.addf %700, %702 : vector<8x128xf32>
    %704 = vector.extract_strided_slice %698 {offsets = [0, 0], sizes = [8, 96], strides = [1, 1]} : vector<8x128xf32> to vector<8x96xf32>
    %705 = arith.negf %704 : vector<8x96xf32>
    %706 = math.exp %705 : vector<8x96xf32>
    %cst_183 = arith.constant 1.000000e+00 : f32
    %707 = vector.broadcast %cst_183 : f32 to vector<8x96xf32>
    %708 = arith.addf %707, %706 : vector<8x96xf32>
    %709 = arith.divf %707, %708 : vector<8x96xf32>
    %710 = vector.extract_strided_slice %703 {offsets = [0, 0], sizes = [8, 96], strides = [1, 1]} : vector<8x128xf32> to vector<8x96xf32>
    %711 = arith.negf %710 : vector<8x96xf32>
    %712 = math.exp %711 : vector<8x96xf32>
    %cst_184 = arith.constant 1.000000e+00 : f32
    %713 = vector.broadcast %cst_184 : f32 to vector<8x96xf32>
    %714 = arith.addf %713, %712 : vector<8x96xf32>
    %715 = arith.divf %713, %714 : vector<8x96xf32>
    %716 = vector.extract_strided_slice %698 {offsets = [0, 96], sizes = [8, 32], strides = [1, 1]} : vector<8x128xf32> to vector<8x32xf32>
    %717 = math.tanh %716 : vector<8x32xf32>
    %718 = vector.extract_strided_slice %703 {offsets = [0, 96], sizes = [8, 32], strides = [1, 1]} : vector<8x128xf32> to vector<8x32xf32>
    %719 = math.tanh %718 : vector<8x32xf32>
    %720 = vector.extract_strided_slice %709 {offsets = [0, 32], sizes = [8, 32], strides = [1, 1]} : vector<8x96xf32> to vector<8x32xf32>
    %721 = arith.mulf %720, %673 : vector<8x32xf32>
    %722 = vector.extract_strided_slice %709 {offsets = [0, 0], sizes = [8, 32], strides = [1, 1]} : vector<8x96xf32> to vector<8x32xf32>
    %723 = arith.mulf %722, %717 : vector<8x32xf32>
    %724 = arith.addf %721, %723 : vector<8x32xf32>
    %725 = vector.extract_strided_slice %715 {offsets = [0, 32], sizes = [8, 32], strides = [1, 1]} : vector<8x96xf32> to vector<8x32xf32>
    %726 = arith.mulf %725, %678 : vector<8x32xf32>
    %727 = vector.extract_strided_slice %715 {offsets = [0, 0], sizes = [8, 32], strides = [1, 1]} : vector<8x96xf32> to vector<8x32xf32>
    %728 = arith.mulf %727, %719 : vector<8x32xf32>
    %729 = arith.addf %726, %728 : vector<8x32xf32>
    %730 = vector.extract_strided_slice %709 {offsets = [0, 64], sizes = [8, 32], strides = [1, 1]} : vector<8x96xf32> to vector<8x32xf32>
    %731 = math.tanh %724 : vector<8x32xf32>
    %732 = arith.mulf %730, %731 : vector<8x32xf32>
    %733 = vector.extract_strided_slice %715 {offsets = [0, 64], sizes = [8, 32], strides = [1, 1]} : vector<8x96xf32> to vector<8x32xf32>
    %734 = math.tanh %729 : vector<8x32xf32>
    %735 = arith.mulf %733, %734 : vector<8x32xf32>
    %736 = arith.index_cast %690 : i32 to index
    %c0_185 = arith.constant 0 : index
    %737 = vector.load %arg7[%736, %c0_185] : memref<64x64xf32, #tpu.memory_space<vmem>>, vector<8x32xf32>
    tpu.vector_store %arg7[%736, %c0_185], %732 {strides = array<i32>} : memref<64x64xf32, #tpu.memory_space<vmem>>, vector<8x32xf32>,
    %738 = arith.index_cast %693 : i32 to index
    %c32_186 = arith.constant 32 : index
    %739 = vector.load %arg7[%738, %c32_186] : memref<64x64xf32, #tpu.memory_space<vmem>>, vector<8x32xf32>
    tpu.vector_store %arg7[%738, %c32_186], %735 {strides = array<i32>} : memref<64x64xf32, #tpu.memory_space<vmem>>, vector<8x32xf32>,
    %c6_i32_187 = arith.constant 6 : i32
    %c8_i32_188 = arith.constant 8 : i32
    %740 = arith.muli %c6_i32_187, %c8_i32_188 : i32
    %741 = tpu.assume_multiple %740, 8 : i32
    %c7_i32_189 = arith.constant 7 : i32
    %742 = arith.subi %c7_i32_189, %c6_i32_187 : i32
    %c8_i32_190 = arith.constant 8 : i32
    %743 = arith.muli %742, %c8_i32_190 : i32
    %744 = tpu.assume_multiple %743, 8 : i32
    %745 = arith.index_cast %741 : i32 to index
    %c0_191 = arith.constant 0 : index
    %746 = vector.load %arg8[%745, %c0_191] : memref<64x256xf32, #tpu.memory_space<vmem>>, vector<8x128xf32>
    %747 = arith.truncf %732 : vector<8x32xf32> to vector<8x32xbf16>
    %cst_192 = arith.constant dense<0.000000e+00> : vector<8x128xf32>
    %748 = tpu.matmul %747, %430, %cst_192 {dimension_numbers = #tpu.dot_dimension_numbers<[1], [0], [0], [1], [0, 0, 1, 1], [], []>} : vector<8x32xbf16>, vector<32x128xbf16>, vector<8x128xf32> -> vector<8x128xf32>
    %749 = arith.addf %746, %748 : vector<8x128xf32>
    %750 = arith.index_cast %744 : i32 to index
    %c128_193 = arith.constant 128 : index
    %751 = vector.load %arg8[%750, %c128_193] : memref<64x256xf32, #tpu.memory_space<vmem>>, vector<8x128xf32>
    %752 = arith.truncf %735 : vector<8x32xf32> to vector<8x32xbf16>
    %cst_194 = arith.constant dense<0.000000e+00> : vector<8x128xf32>
    %753 = tpu.matmul %752, %432, %cst_194 {dimension_numbers = #tpu.dot_dimension_numbers<[1], [0], [0], [1], [0, 0, 1, 1], [], []>} : vector<8x32xbf16>, vector<32x128xbf16>, vector<8x128xf32> -> vector<8x128xf32>
    %754 = arith.addf %751, %753 : vector<8x128xf32>
    %755 = vector.extract_strided_slice %749 {offsets = [0, 0], sizes = [8, 96], strides = [1, 1]} : vector<8x128xf32> to vector<8x96xf32>
    %756 = arith.negf %755 : vector<8x96xf32>
    %757 = math.exp %756 : vector<8x96xf32>
    %cst_195 = arith.constant 1.000000e+00 : f32
    %758 = vector.broadcast %cst_195 : f32 to vector<8x96xf32>
    %759 = arith.addf %758, %757 : vector<8x96xf32>
    %760 = arith.divf %758, %759 : vector<8x96xf32>
    %761 = vector.extract_strided_slice %754 {offsets = [0, 0], sizes = [8, 96], strides = [1, 1]} : vector<8x128xf32> to vector<8x96xf32>
    %762 = arith.negf %761 : vector<8x96xf32>
    %763 = math.exp %762 : vector<8x96xf32>
    %cst_196 = arith.constant 1.000000e+00 : f32
    %764 = vector.broadcast %cst_196 : f32 to vector<8x96xf32>
    %765 = arith.addf %764, %763 : vector<8x96xf32>
    %766 = arith.divf %764, %765 : vector<8x96xf32>
    %767 = vector.extract_strided_slice %749 {offsets = [0, 96], sizes = [8, 32], strides = [1, 1]} : vector<8x128xf32> to vector<8x32xf32>
    %768 = math.tanh %767 : vector<8x32xf32>
    %769 = vector.extract_strided_slice %754 {offsets = [0, 96], sizes = [8, 32], strides = [1, 1]} : vector<8x128xf32> to vector<8x32xf32>
    %770 = math.tanh %769 : vector<8x32xf32>
    %771 = vector.extract_strided_slice %760 {offsets = [0, 32], sizes = [8, 32], strides = [1, 1]} : vector<8x96xf32> to vector<8x32xf32>
    %772 = arith.mulf %771, %724 : vector<8x32xf32>
    %773 = vector.extract_strided_slice %760 {offsets = [0, 0], sizes = [8, 32], strides = [1, 1]} : vector<8x96xf32> to vector<8x32xf32>
    %774 = arith.mulf %773, %768 : vector<8x32xf32>
    %775 = arith.addf %772, %774 : vector<8x32xf32>
    %776 = vector.extract_strided_slice %766 {offsets = [0, 32], sizes = [8, 32], strides = [1, 1]} : vector<8x96xf32> to vector<8x32xf32>
    %777 = arith.mulf %776, %729 : vector<8x32xf32>
    %778 = vector.extract_strided_slice %766 {offsets = [0, 0], sizes = [8, 32], strides = [1, 1]} : vector<8x96xf32> to vector<8x32xf32>
    %779 = arith.mulf %778, %770 : vector<8x32xf32>
    %780 = arith.addf %777, %779 : vector<8x32xf32>
    %781 = vector.extract_strided_slice %760 {offsets = [0, 64], sizes = [8, 32], strides = [1, 1]} : vector<8x96xf32> to vector<8x32xf32>
    %782 = math.tanh %775 : vector<8x32xf32>
    %783 = arith.mulf %781, %782 : vector<8x32xf32>
    %784 = vector.extract_strided_slice %766 {offsets = [0, 64], sizes = [8, 32], strides = [1, 1]} : vector<8x96xf32> to vector<8x32xf32>
    %785 = math.tanh %780 : vector<8x32xf32>
    %786 = arith.mulf %784, %785 : vector<8x32xf32>
    %787 = arith.index_cast %741 : i32 to index
    %c0_197 = arith.constant 0 : index
    %788 = vector.load %arg7[%787, %c0_197] : memref<64x64xf32, #tpu.memory_space<vmem>>, vector<8x32xf32>
    tpu.vector_store %arg7[%787, %c0_197], %783 {strides = array<i32>} : memref<64x64xf32, #tpu.memory_space<vmem>>, vector<8x32xf32>,
    %789 = arith.index_cast %744 : i32 to index
    %c32_198 = arith.constant 32 : index
    %790 = vector.load %arg7[%789, %c32_198] : memref<64x64xf32, #tpu.memory_space<vmem>>, vector<8x32xf32>
    tpu.vector_store %arg7[%789, %c32_198], %786 {strides = array<i32>} : memref<64x64xf32, #tpu.memory_space<vmem>>, vector<8x32xf32>,
    %c7_i32_199 = arith.constant 7 : i32
    %c8_i32_200 = arith.constant 8 : i32
    %791 = arith.muli %c7_i32_199, %c8_i32_200 : i32
    %792 = tpu.assume_multiple %791, 8 : i32
    %c7_i32_201 = arith.constant 7 : i32
    %793 = arith.subi %c7_i32_201, %c7_i32_199 : i32
    %c8_i32_202 = arith.constant 8 : i32
    %794 = arith.muli %793, %c8_i32_202 : i32
    %795 = tpu.assume_multiple %794, 8 : i32
    %796 = arith.index_cast %792 : i32 to index
    %c0_203 = arith.constant 0 : index
    %797 = vector.load %arg8[%796, %c0_203] : memref<64x256xf32, #tpu.memory_space<vmem>>, vector<8x128xf32>
    %798 = arith.truncf %783 : vector<8x32xf32> to vector<8x32xbf16>
    %cst_204 = arith.constant dense<0.000000e+00> : vector<8x128xf32>
    %799 = tpu.matmul %798, %430, %cst_204 {dimension_numbers = #tpu.dot_dimension_numbers<[1], [0], [0], [1], [0, 0, 1, 1], [], []>} : vector<8x32xbf16>, vector<32x128xbf16>, vector<8x128xf32> -> vector<8x128xf32>
    %800 = arith.addf %797, %799 : vector<8x128xf32>
    %801 = arith.index_cast %795 : i32 to index
    %c128_205 = arith.constant 128 : index
    %802 = vector.load %arg8[%801, %c128_205] : memref<64x256xf32, #tpu.memory_space<vmem>>, vector<8x128xf32>
    %803 = arith.truncf %786 : vector<8x32xf32> to vector<8x32xbf16>
    %cst_206 = arith.constant dense<0.000000e+00> : vector<8x128xf32>
    %804 = tpu.matmul %803, %432, %cst_206 {dimension_numbers = #tpu.dot_dimension_numbers<[1], [0], [0], [1], [0, 0, 1, 1], [], []>} : vector<8x32xbf16>, vector<32x128xbf16>, vector<8x128xf32> -> vector<8x128xf32>
    %805 = arith.addf %802, %804 : vector<8x128xf32>
    %806 = vector.extract_strided_slice %800 {offsets = [0, 0], sizes = [8, 96], strides = [1, 1]} : vector<8x128xf32> to vector<8x96xf32>
    %807 = arith.negf %806 : vector<8x96xf32>
    %808 = math.exp %807 : vector<8x96xf32>
    %cst_207 = arith.constant 1.000000e+00 : f32
    %809 = vector.broadcast %cst_207 : f32 to vector<8x96xf32>
    %810 = arith.addf %809, %808 : vector<8x96xf32>
    %811 = arith.divf %809, %810 : vector<8x96xf32>
    %812 = vector.extract_strided_slice %805 {offsets = [0, 0], sizes = [8, 96], strides = [1, 1]} : vector<8x128xf32> to vector<8x96xf32>
    %813 = arith.negf %812 : vector<8x96xf32>
    %814 = math.exp %813 : vector<8x96xf32>
    %cst_208 = arith.constant 1.000000e+00 : f32
    %815 = vector.broadcast %cst_208 : f32 to vector<8x96xf32>
    %816 = arith.addf %815, %814 : vector<8x96xf32>
    %817 = arith.divf %815, %816 : vector<8x96xf32>
    %818 = vector.extract_strided_slice %800 {offsets = [0, 96], sizes = [8, 32], strides = [1, 1]} : vector<8x128xf32> to vector<8x32xf32>
    %819 = math.tanh %818 : vector<8x32xf32>
    %820 = vector.extract_strided_slice %805 {offsets = [0, 96], sizes = [8, 32], strides = [1, 1]} : vector<8x128xf32> to vector<8x32xf32>
    %821 = math.tanh %820 : vector<8x32xf32>
    %822 = vector.extract_strided_slice %811 {offsets = [0, 32], sizes = [8, 32], strides = [1, 1]} : vector<8x96xf32> to vector<8x32xf32>
    %823 = arith.mulf %822, %775 : vector<8x32xf32>
    %824 = vector.extract_strided_slice %811 {offsets = [0, 0], sizes = [8, 32], strides = [1, 1]} : vector<8x96xf32> to vector<8x32xf32>
    %825 = arith.mulf %824, %819 : vector<8x32xf32>
    %826 = arith.addf %823, %825 : vector<8x32xf32>
    %827 = vector.extract_strided_slice %817 {offsets = [0, 32], sizes = [8, 32], strides = [1, 1]} : vector<8x96xf32> to vector<8x32xf32>
    %828 = arith.mulf %827, %780 : vector<8x32xf32>
    %829 = vector.extract_strided_slice %817 {offsets = [0, 0], sizes = [8, 32], strides = [1, 1]} : vector<8x96xf32> to vector<8x32xf32>
    %830 = arith.mulf %829, %821 : vector<8x32xf32>
    %831 = arith.addf %828, %830 : vector<8x32xf32>
    %832 = vector.extract_strided_slice %811 {offsets = [0, 64], sizes = [8, 32], strides = [1, 1]} : vector<8x96xf32> to vector<8x32xf32>
    %833 = math.tanh %826 : vector<8x32xf32>
    %834 = arith.mulf %832, %833 : vector<8x32xf32>
    %835 = vector.extract_strided_slice %817 {offsets = [0, 64], sizes = [8, 32], strides = [1, 1]} : vector<8x96xf32> to vector<8x32xf32>
    %836 = math.tanh %831 : vector<8x32xf32>
    %837 = arith.mulf %835, %836 : vector<8x32xf32>
    %838 = arith.index_cast %792 : i32 to index
    %c0_209 = arith.constant 0 : index
    %839 = vector.load %arg7[%838, %c0_209] : memref<64x64xf32, #tpu.memory_space<vmem>>, vector<8x32xf32>
    tpu.vector_store %arg7[%838, %c0_209], %834 {strides = array<i32>} : memref<64x64xf32, #tpu.memory_space<vmem>>, vector<8x32xf32>,
    %840 = arith.index_cast %795 : i32 to index
    %c32_210 = arith.constant 32 : index
    %841 = vector.load %arg7[%840, %c32_210] : memref<64x64xf32, #tpu.memory_space<vmem>>, vector<8x32xf32>
    tpu.vector_store %arg7[%840, %c32_210], %837 {strides = array<i32>} : memref<64x64xf32, #tpu.memory_space<vmem>>, vector<8x32xf32>,
    %c8_i32_211 = arith.constant 8 : i32
    return
  }
}

</mosaic_0001>

<llo_original>
// kernel: shared_encoder_forward.1
$region0: #{shared_encoder_forward.1}
  #allocation0 [shape = 'u32[]', space=smem, size = 0x4, offset = 0x4, fixed_abs, tag = 'smem constant byte address 0x4 - core index']
  #allocation1 [shape = 'u32[144,128]{1,0:T(1,128)}', space=vmem, size = 0x12000, scoped, tag = 'internal scratch']
  #allocation2 [shape = 'f32[64,256]{1,0:T(8,128)}', space=vmem, size = 0x10000, scoped, tag = 'scratch operand']
  #allocation3 [shape = 'f32[64,64]{1,0:T(8,128)}', space=vmem, size = 0x8000, scoped, tag = 'scratch operand']
  %s0 = inlined_call_operand.vmem [shape: f32[64,32], index: 0, kind: input, shape index: {}]
  %s1 = inlined_call_operand.hbm [shape: bf16[32,256], index: 1, kind: input, shape index: {}]
  %s2 = inlined_call_operand.hbm [shape: bf16[2,32,128], index: 2, kind: input, shape index: {}]
  %s3 = inlined_call_operand.vmem [shape: f32[1,256], index: 3, kind: input, shape index: {}]
  %s4 = inlined_call_operand.vmem [shape: bf16[64,256], index: 4, kind: input, shape index: {}]
  %s5 = inlined_call_operand.vmem [shape: bf16[2,32,128], index: 5, kind: input, shape index: {}]
  %s6 = inlined_call_operand.vmem [shape: f32[1,256], index: 6, kind: input, shape index: {}]
  %s7 = inlined_call_operand.vmem [shape: f32[64,64], index: 7, kind: output, shape index: {}]
  %s8 = sld [smem:[#allocation0]]
  $region46: #{shared_encoder_forward.1} parent=0
    _
  %s10 = ssub.s32 1, %s8
  %s11 = scalar_select 0, %s10, %s8
  $region1: #{shared_encoder_forward.1} parent=0
    #allocation4 [shape = 'u8[16384]{0}', space=vmem, size = 0x4000, scoped, tag = 'input window, operand 1, single buffered']
    #allocation5 [shape = 's32[1]{0}', space=sflag, size = 0x4, scoped, tag = 'scoped memory for shared_encoder_forward.1']
    #allocation6 [shape = 'u8[16384]{0}', space=vmem, size = 0x4000, scoped, tag = 'input window, operand 2, single buffered']
    #allocation7 [shape = 's32[1]{0}', space=sflag, size = 0x4, scoped, tag = 'scoped memory for shared_encoder_forward.1']
    %12 = vsyncpa [#allocation5], 0
    %13 = vsyncpa [#allocation7], 0
    // Predicated region
    $region2: #{shared_encoder_forward.1} parent=1 // pred_check
      _
    $region3: #{shared_encoder_forward.1} parent=1 // pred_check_branch
      %15 = sbr.rel (0) target = $region5
    $region4: #{shared_encoder_forward.1} parent=1 // pred_region
      _
    $region5: #{shared_encoder_forward.1} parent=1 // pred_fallthru
      _
    // Predicated region
    $region6: #{shared_encoder_forward.1} parent=1 // pred_check
      _
    $region7: #{shared_encoder_forward.1} parent=1 // pred_check_branch
      %17 = sbr.rel (0) target = $region9
    $region8: #{shared_encoder_forward.1} parent=1 // pred_region
      %s19 = ssub.s32 512, 512
      %20 = vsyncadd [#allocation5], %s19
      %s21 = sshll.u32 [#allocation4], 4
      %s22 = int_to_ptr.vmem [resolvable:$true] %s21
      %27 = dma.hbm_to_vmem [thread:$0]  %s1, 512, %s22, [#allocation5], 128, 128, 8
    $region9: #{shared_encoder_forward.1} parent=1 // pred_fallthru
      _
    // Predicated region
    $region10: #{shared_encoder_forward.1} parent=1 // pred_check
      _
    $region11: #{shared_encoder_forward.1} parent=1 // pred_check_branch
      %29 = sbr.rel (0) target = $region13
    $region12: #{shared_encoder_forward.1} parent=1 // pred_region
      %s31 = ssub.s32 512, 512
      %32 = vsyncadd [#allocation7], %s31
      %s33 = sshll.u32 [#allocation6], 4
      %s34 = int_to_ptr.vmem [resolvable:$true] %s33
      %39 = dma.hbm_to_vmem [thread:$0]  %s2, 512, %s34, [#allocation7], 64, 64, 4
    $region13: #{shared_encoder_forward.1} parent=1 // pred_fallthru
      _
    // Predicated region
    $region14: #{shared_encoder_forward.1} parent=1 // pred_check
      _
    $region15: #{shared_encoder_forward.1} parent=1 // pred_check_branch
      %41 = sbr.rel (0) target = $region17
    $region16: #{shared_encoder_forward.1} parent=1 // pred_region
      _
    $region17: #{shared_encoder_forward.1} parent=1 // pred_fallthru
      _
    // Predicated region
    $region18: #{shared_encoder_forward.1} parent=1 // pred_check
      _
    $region19: #{shared_encoder_forward.1} parent=1 // pred_check_branch
      %43 = sbr.rel (0) target = $region21
    $region20: #{shared_encoder_forward.1} parent=1 // pred_region
      _
    $region21: #{shared_encoder_forward.1} parent=1 // pred_fallthru
      _
    // Predicated region
    $region22: #{shared_encoder_forward.1} parent=1 // pred_check
      _
    $region23: #{shared_encoder_forward.1} parent=1 // pred_check_branch
      %45 = sbr.rel (0) target = $region25
    $region24: #{shared_encoder_forward.1} parent=1 // pred_region
      _
    $region25: #{shared_encoder_forward.1} parent=1 // pred_fallthru
      _
    // Predicated region
    $region26: #{shared_encoder_forward.1} parent=1 // pred_check
      _
    $region27: #{shared_encoder_forward.1} parent=1 // pred_check_branch
      %47 = sbr.rel (0) target = $region29
    $region28: #{shared_encoder_forward.1} parent=1 // pred_region
      _
    $region29: #{shared_encoder_forward.1} parent=1 // pred_fallthru
      _
    // Predicated region
    $region30: #{shared_encoder_forward.1} parent=1 // pred_check
      _
    $region31: #{shared_encoder_forward.1} parent=1 // pred_check_branch
      %49 = sbr.rel (0) target = $region33
    $region32: #{shared_encoder_forward.1} parent=1 // pred_region
      %50 = dma.done [#allocation5], 512
    $region33: #{shared_encoder_forward.1} parent=1 // pred_fallthru
      _
    // Predicated region
    $region34: #{shared_encoder_forward.1} parent=1 // pred_check
      _
    $region35: #{shared_encoder_forward.1} parent=1 // pred_check_branch
      %52 = sbr.rel (0) target = $region37
    $region36: #{shared_encoder_forward.1} parent=1 // pred_region
      %53 = dma.done [#allocation7], 512
    $region37: #{shared_encoder_forward.1} parent=1 // pred_fallthru
      _
    %v55 = vld [vmem:[%s0] sm:$0xff]
    %v56 = vld [vmem:[%s0 + $0x8] sm:$0xff]
    %v57 = vld [vmem:[%s0 + $0x10] sm:$0xff]
    %v58 = vld [vmem:[%s0 + $0x18] sm:$0xff]
    %v59 = vld [vmem:[%s0 + $0x20] sm:$0xff]
    %v60 = vld [vmem:[%s0 + $0x28] sm:$0xff]
    %v61 = vld [vmem:[%s0 + $0x30] sm:$0xff]
    %v62 = vld [vmem:[%s0 + $0x38] sm:$0xff]
    %v63 = vpack.c.bf16 %v56, %v55
    %v64 = vpack.c.bf16 %v58, %v57
    %v65 = vpack.c.bf16 %v60, %v59
    %v66 = vpack.c.bf16 %v62, %v61
    %v67 = vld [vmem:[#allocation4] sm:$0xff]
    %v68 = vld [vmem:[#allocation4 + $0x8] sm:$0xff]
    %v69 = vld [vmem:[#allocation4 + $0x10] sm:$0xff]
    %v70 = vld [vmem:[#allocation4 + $0x18] sm:$0xff]
    %v71 = vld [vmem:[%s3] sm:$0x3]
    %v73 = vlaneseq
    %v74 = vshrl.u32 %v73, 7
    %v75 = vsub.s32 0, %v74
    %v76 = vrot.slane %v71, %v75
    %v77 = vlaneseq
    %v78 = vshrl.u32 %v77, 7
    %v79 = vsub.s32 1, %v78
    %v80 = vrot.slane %v71, %v79
    %v87 = vunpack.c.l.b16 %v67
    %v88 = vunpack.c.h.b16 %v67
    %v89 = vunpack.c.l.b16 %v68
    %v90 = vunpack.c.h.b16 %v68
    %v91 = vunpack.c.l.b16 %v69
    %v92 = vunpack.c.h.b16 %v69
    %v93 = vunpack.c.l.b16 %v70
    %v94 = vunpack.c.h.b16 %v70
    %v95 = vpack.c.b16 %v89, %v87
    %v96 = vpack.c.b16 %v90, %v88
    %v97 = vpack.c.b16 %v93, %v91
    %v98 = vpack.c.b16 %v94, %v92
    %vm103 = vcmask 261120
    %v105 = vsel %vm103, %v63, 0
    %v108 = vsel %vm103, %v64, 0
    %v111 = vsel %vm103, %v65, 0
    %v114 = vsel %vm103, %v66, 0
    %116 = vmatprep.subr.bf16.mxu0 %v96
    %117 = vmatpush1.bf16.msra.mxu0 %v95
    %118 = vmatprep.subr.bf16.mxu0 %v98
    %119 = vmatpush1.bf16.msra.mxu0 %v97
    %120 = vmatprep.subr.bf16.mxu0 0
    %121 = vmatpush1.bf16.msra.mxu0 0
    %122 = vmatprep.subr.bf16.mxu0 0
    %123 = vmatpush1.bf16.msra.mxu0 0
    %124 = vmatprep.subr.bf16.mxu0 0
    %125 = vmatpush1.bf16.msra.mxu0 0
    %126 = vmatprep.subr.bf16.mxu0 0
    %127 = vmatpush1.bf16.msra.mxu0 0
    %128 = vmatprep.subr.bf16.mxu0 0
    %129 = vmatpush1.bf16.msra.mxu0 0
    %130 = vmatprep.subr.bf16.mxu0 0
    %131 = vmatpush1.bf16.msra.mxu0 0
    %132 = vmatprep.subr.bf16.mxu0 0
    %133 = vmatpush1.bf16.msra.mxu0 0
    %134 = vmatprep.subr.bf16.mxu0 0
    %135 = vmatpush1.bf16.msra.mxu0 0
    %136 = vmatprep.subr.bf16.mxu0 0
    %137 = vmatpush1.bf16.msra.mxu0 0
    %138 = vmatprep.subr.bf16.mxu0 0
    %139 = vmatpush1.bf16.msra.mxu0 0
    %140 = vmatprep.subr.bf16.mxu0 0
    %141 = vmatpush1.bf16.msra.mxu0 0
    %142 = vmatprep.subr.bf16.mxu0 0
    %143 = vmatpush1.bf16.msra.mxu0 0
    %144 = vmatprep.subr.bf16.mxu0 0
    %145 = vmatpush1.bf16.msra.mxu0 0
    %146 = vmatprep.subr.bf16.mxu0 0
    %147 = vmatpush1.bf16.msra.mxu0 0
    %148 = vmatprep.mubr.bf16.mxu0 0
    %149 = vmatmul.mubr.bf16.gmra.mrb[0].mxu0 %v105
    %v150 = vpop.f32.mrb[0].mxu0
    %v151 = vadd.f32 %v76, %v150
    %v152 = vpop.f32.mrb[0].mxu0
    %v153 = vadd.f32 %v80, %v152
    %v154 = vpop.f32.mrb[0].mxu0
    %v155 = vadd.f32 %v76, %v154
    %v156 = vpop.f32.mrb[0].mxu0
    %v157 = vadd.f32 %v80, %v156
    %158 = vmatprep.mubr.bf16.mxu0 0
    %159 = vmatmul.mubr.bf16.gmra.mrb[0].mxu0 %v108
    %v160 = vpop.f32.mrb[0].mxu0
    %v161 = vadd.f32 %v76, %v160
    %v162 = vpop.f32.mrb[0].mxu0
    %v163 = vadd.f32 %v80, %v162
    %v164 = vpop.f32.mrb[0].mxu0
    %v165 = vadd.f32 %v76, %v164
    %v166 = vpop.f32.mrb[0].mxu0
    %v167 = vadd.f32 %v80, %v166
    %168 = vmatprep.mubr.bf16.mxu0 0
    %169 = vmatmul.mubr.bf16.gmra.mrb[0].mxu0 %v111
    %v170 = vpop.f32.mrb[0].mxu0
    %v171 = vadd.f32 %v76, %v170
    %v172 = vpop.f32.mrb[0].mxu0
    %v173 = vadd.f32 %v80, %v172
    %v174 = vpop.f32.mrb[0].mxu0
    %v175 = vadd.f32 %v76, %v174
    %v176 = vpop.f32.mrb[0].mxu0
    %v177 = vadd.f32 %v80, %v176
    %178 = vmatprep.mubr.bf16.mxu0 0
    %179 = vmatmul.mubr.bf16.gmra.mrb[0].mxu0 %v114
    %v180 = vpop.f32.mrb[0].mxu0
    %v181 = vadd.f32 %v76, %v180
    %v182 = vpop.f32.mrb[0].mxu0
    %v183 = vadd.f32 %v80, %v182
    %v184 = vpop.f32.mrb[0].mxu0
    %v185 = vadd.f32 %v76, %v184
    %v186 = vpop.f32.mrb[0].mxu0
    %v187 = vadd.f32 %v80, %v186
    %188 = vdwg.mxu0
    %189 = vst [vmem:[#allocation2] sm:$0xff] %v151
    %190 = vst [vmem:[#allocation2 + $0x8] sm:$0xff] %v153
    %191 = vst [vmem:[#allocation2 + $0x10] sm:$0xff] %v155
    %192 = vst [vmem:[#allocation2 + $0x18] sm:$0xff] %v157
    %193 = vst [vmem:[#allocation2 + $0x20] sm:$0xff] %v161
    %194 = vst [vmem:[#allocation2 + $0x28] sm:$0xff] %v163
    %195 = vst [vmem:[#allocation2 + $0x30] sm:$0xff] %v165
    %196 = vst [vmem:[#allocation2 + $0x38] sm:$0xff] %v167
    %197 = vst [vmem:[#allocation2 + $0x40] sm:$0xff] %v171
    %198 = vst [vmem:[#allocation2 + $0x48] sm:$0xff] %v173
    %199 = vst [vmem:[#allocation2 + $0x50] sm:$0xff] %v175
    %200 = vst [vmem:[#allocation2 + $0x58] sm:$0xff] %v177
    %201 = vst [vmem:[#allocation2 + $0x60] sm:$0xff] %v181
    %202 = vst [vmem:[#allocation2 + $0x68] sm:$0xff] %v183
    %203 = vst [vmem:[#allocation2 + $0x70] sm:$0xff] %v185
    %204 = vst [vmem:[#allocation2 + $0x78] sm:$0xff] %v187
    %v205 = vld [vmem:[#allocation6] sm:$0xf]
    %v206 = vld [vmem:[#allocation6 + $0x4] sm:$0xf]
    %v207 = vld [vmem:[#allocation6 + $0x8] sm:$0xf]
    %v208 = vld [vmem:[#allocation6 + $0xc] sm:$0xf]
    %s209 = scalar_lea.vmem [#allocation6], 16
    %v210 = vld [vmem:[%s209] sm:$0xf]
    %v211 = vld [vmem:[%s209 + $0x4] sm:$0xf]
    %v212 = vld [vmem:[%s209 + $0x8] sm:$0xf]
    %v213 = vld [vmem:[%s209 + $0xc] sm:$0xf]
    %s214 = smul.u32 0, 2
    %s215 = smul.addr %s214, 8
    %s216 = scalar_lea.vmem [#allocation2], %s215
    %v217 = vld [vmem:[%s216] sm:$0xff]
    %v222 = vunpack.c.l.b16 %v205
    %v223 = vunpack.c.l.b16 %v206
    %v224 = vunpack.c.l.b16 %v207
    %v225 = vunpack.c.l.b16 %v208
    %v226 = vpack.c.b16 %v223, %v222
    %v227 = vpack.c.b16 %v225, %v224
    %v231 = vsel %vm103, 0, 0
    %233 = vmatprep.subr.bf16.mxu0 0
    %234 = vmatpush1.bf16.msra.mxu0 %v226
    %235 = vmatprep.subr.bf16.mxu0 0
    %236 = vmatpush1.bf16.msra.mxu0 %v227
    %237 = vmatprep.subr.bf16.mxu0 0
    %238 = vmatpush1.bf16.msra.mxu0 0
    %239 = vmatprep.subr.bf16.mxu0 0
    %240 = vmatpush1.bf16.msra.mxu0 0
    %241 = vmatprep.subr.bf16.mxu0 0
    %242 = vmatpush1.bf16.msra.mxu0 0
    %243 = vmatprep.subr.bf16.mxu0 0
    %244 = vmatpush1.bf16.msra.mxu0 0
    %245 = vmatprep.subr.bf16.mxu0 0
    %246 = vmatpush1.bf16.msra.mxu0 0
    %247 = vmatprep.subr.bf16.mxu0 0
    %248 = vmatpush1.bf16.msra.mxu0 0
    %249 = vmatprep.subr.bf16.mxu0 0
    %250 = vmatpush1.bf16.msra.mxu0 0
    %251 = vmatprep.subr.bf16.mxu0 0
    %252 = vmatpush1.bf16.msra.mxu0 0
    %253 = vmatprep.subr.bf16.mxu0 0
    %254 = vmatpush1.bf16.msra.mxu0 0
    %255 = vmatprep.subr.bf16.mxu0 0
    %256 = vmatpush1.bf16.msra.mxu0 0
    %257 = vmatprep.subr.bf16.mxu0 0
    %258 = vmatpush1.bf16.msra.mxu0 0
    %259 = vmatprep.subr.bf16.mxu0 0
    %260 = vmatpush1.bf16.msra.mxu0 0
    %261 = vmatprep.subr.bf16.mxu0 0
    %262 = vmatpush1.bf16.msra.mxu0 0
    %263 = vmatprep.subr.bf16.mxu0 0
    %264 = vmatpush1.bf16.msra.mxu0 0
    %265 = vmatprep.mubr.bf16.mxu0 0
    %266 = vmatmul.mubr.bf16.gmra.mrb[0].mxu0 %v231
    %v267 = vpop.f32.mrb[0].mxu0
    %v268 = vadd.f32 0.0, %v267
    %v269 = vpop.f32.mrb[0].mxu0
    %v270 = vpop.f32.mrb[0].mxu0
    %v271 = vpop.f32.mrb[0].mxu0
    %272 = vdwg.mxu0
    %v273 = vadd.f32 %v217, %v268
    %s274 = smul.u32 7, 2
    %s275 = smul.addr %s274, 8
    %s276 = scalar_lea.vmem [#allocation2], %s275
    %v277 = vld [vmem:[%s276 + $0x8] sm:$0xff]
    %v282 = vunpack.c.l.b16 %v210
    %v283 = vunpack.c.l.b16 %v211
    %v284 = vunpack.c.l.b16 %v212
    %v285 = vunpack.c.l.b16 %v213
    %v286 = vpack.c.b16 %v283, %v282
    %v287 = vpack.c.b16 %v285, %v284
    %290 = vmatprep.subr.bf16.mxu0 0
    %291 = vmatpush1.bf16.msra.mxu0 %v286
    %292 = vmatprep.subr.bf16.mxu0 0
    %293 = vmatpush1.bf16.msra.mxu0 %v287
    %294 = vmatprep.subr.bf16.mxu0 0
    %295 = vmatpush1.bf16.msra.mxu0 0
    %296 = vmatprep.subr.bf16.mxu0 0
    %297 = vmatpush1.bf16.msra.mxu0 0
    %298 = vmatprep.subr.bf16.mxu0 0
    %299 = vmatpush1.bf16.msra.mxu0 0
    %300 = vmatprep.subr.bf16.mxu0 0
    %301 = vmatpush1.bf16.msra.mxu0 0
    %302 = vmatprep.subr.bf16.mxu0 0
    %303 = vmatpush1.bf16.msra.mxu0 0
    %304 = vmatprep.subr.bf16.mxu0 0
    %305 = vmatpush1.bf16.msra.mxu0 0
    %306 = vmatprep.subr.bf16.mxu0 0
    %307 = vmatpush1.bf16.msra.mxu0 0
    %308 = vmatprep.subr.bf16.mxu0 0
    %309 = vmatpush1.bf16.msra.mxu0 0
    %310 = vmatprep.subr.bf16.mxu0 0
    %311 = vmatpush1.bf16.msra.mxu0 0
    %312 = vmatprep.subr.bf16.mxu0 0
    %313 = vmatpush1.bf16.msra.mxu0 0
    %314 = vmatprep.subr.bf16.mxu0 0
    %315 = vmatpush1.bf16.msra.mxu0 0
    %316 = vmatprep.subr.bf16.mxu0 0
    %317 = vmatpush1.bf16.msra.mxu0 0
    %318 = vmatprep.subr.bf16.mxu0 0
    %319 = vmatpush1.bf16.msra.mxu0 0
    %320 = vmatprep.subr.bf16.mxu0 0
    %321 = vmatpush1.bf16.msra.mxu0 0
    %322 = vmatprep.mubr.bf16.mxu0 0
    %323 = vmatmul.mubr.bf16.gmra.mrb[0].mxu0 %v231
    %v324 = vpop.f32.mrb[0].mxu0
    %v325 = vadd.f32 0.0, %v324
    %v326 = vpop.f32.mrb[0].mxu0
    %v327 = vpop.f32.mrb[0].mxu0
    %v328 = vpop.f32.mrb[0].mxu0
    %329 = vdwg.mxu0
    %v330 = vadd.f32 %v277, %v325
    %v331 = vxor.u32 %v273, 2147483648
    %v332 = vmul.f32 %v331, 1.442695
    %v333 = vpow.pop %v332
    %v334 = vadd.f32 %v333, 1.0
    %v335 = vrcp.pop %v334
    %v336 = vmul.f32 1.0, %v335
    %v337 = vxor.u32 %v330, 2147483648
    %v338 = vmul.f32 %v337, 1.442695
    %v339 = vpow.pop %v338
    %v340 = vadd.f32 %v339, 1.0
    %v341 = vrcp.pop %v340
    %v342 = vmul.f32 1.0, %v341
    %v343 = vtanh.pop %v273
    %v344 = vtanh.pop %v330
    %v345 = vmul.f32 %v336, 0.0
    %347 = vrot.lane.b32.xlu0 %v343, 32
    %v348 = vpop.permute.xlu0 %347
    %v350 = vmul.f32 %v336, %v348
    %352 = vrot.lane.b32.xlu0 %v350, 32
    %v353 = vpop.permute.xlu0 %352
    %v355 = vadd.f32 %v345, %v353
    %v356 = vmul.f32 %v342, 0.0
    %358 = vrot.lane.b32.xlu0 %v344, 32
    %v359 = vpop.permute.xlu0 %358
    %v361 = vmul.f32 %v342, %v359
    %363 = vrot.lane.b32.xlu0 %v361, 32
    %v364 = vpop.permute.xlu0 %363
    %v366 = vadd.f32 %v356, %v364
    %v367 = vtanh.pop %v355
    %369 = vrot.lane.b32.xlu0 %v367, 32
    %v370 = vpop.permute.xlu0 %369
    %v372 = vmul.f32 %v336, %v370
    %v373 = vtanh.pop %v366
    %375 = vrot.lane.b32.xlu0 %v373, 32
    %v376 = vpop.permute.xlu0 %375
    %v378 = vmul.f32 %v342, %v376
    %380 = vrot.lane.b32.xlu0 %v372, 64
    %v381 = vpop.permute.xlu0 %380
    %383 = vst.msk [vmem:[#allocation3] sm:$0xff] %vm103, %v381
    %385 = vrot.lane.b32.xlu0 %v378, 96
    %v386 = vpop.permute.xlu0 %385
    %s388 = scalar_lea.vmem [#allocation3], 56
    %vm389 = vcmask 523520
    %390 = vst.msk [vmem:[%s388] sm:$0xff] %vm389, %v386
    %s391 = smul.u32 1, 2
    %s392 = smul.addr %s391, 8
    %s393 = scalar_lea.vmem [#allocation2], %s392
    %v394 = vld [vmem:[%s393] sm:$0xff]
    %v395 = vpack.c.bf16 %v372, %v372
    %397 = vrot.lane.b32.xlu0 %v395, 64
    %v398 = vpop.permute.xlu0 %397
    %v400 = vsel %vm103, %v398, 0
    %402 = vmatprep.subr.bf16.mxu0 0
    %403 = vmatpush1.bf16.msra.mxu0 %v226
    %404 = vmatprep.subr.bf16.mxu0 0
    %405 = vmatpush1.bf16.msra.mxu0 %v227
    %406 = vmatprep.subr.bf16.mxu0 0
    %407 = vmatpush1.bf16.msra.mxu0 0
    %408 = vmatprep.subr.bf16.mxu0 0
    %409 = vmatpush1.bf16.msra.mxu0 0
    %410 = vmatprep.subr.bf16.mxu0 0
    %411 = vmatpush1.bf16.msra.mxu0 0
    %412 = vmatprep.subr.bf16.mxu0 0
    %413 = vmatpush1.bf16.msra.mxu0 0
    %414 = vmatprep.subr.bf16.mxu0 0
    %415 = vmatpush1.bf16.msra.mxu0 0
    %416 = vmatprep.subr.bf16.mxu0 0
    %417 = vmatpush1.bf16.msra.mxu0 0
    %418 = vmatprep.subr.bf16.mxu0 0
    %419 = vmatpush1.bf16.msra.mxu0 0
    %420 = vmatprep.subr.bf16.mxu0 0
    %421 = vmatpush1.bf16.msra.mxu0 0
    %422 = vmatprep.subr.bf16.mxu0 0
    %423 = vmatpush1.bf16.msra.mxu0 0
    %424 = vmatprep.subr.bf16.mxu0 0
    %425 = vmatpush1.bf16.msra.mxu0 0
    %426 = vmatprep.subr.bf16.mxu0 0
    %427 = vmatpush1.bf16.msra.mxu0 0
    %428 = vmatprep.subr.bf16.mxu0 0
    %429 = vmatpush1.bf16.msra.mxu0 0
    %430 = vmatprep.subr.bf16.mxu0 0
    %431 = vmatpush1.bf16.msra.mxu0 0
    %432 = vmatprep.subr.bf16.mxu0 0
    %433 = vmatpush1.bf16.msra.mxu0 0
    %434 = vmatprep.mubr.bf16.mxu0 0
    %435 = vmatmul.mubr.bf16.gmra.mrb[0].mxu0 %v400
    %v436 = vpop.f32.mrb[0].mxu0
    %v437 = vadd.f32 0.0, %v436
    %v438 = vpop.f32.mrb[0].mxu0
    %v439 = vpop.f32.mrb[0].mxu0
    %v440 = vpop.f32.mrb[0].mxu0
    %441 = vdwg.mxu0
    %v442 = vadd.f32 %v394, %v437
    %s443 = smul.u32 6, 2
    %s444 = smul.addr %s443, 8
    %s445 = scalar_lea.vmem [#allocation2], %s444
    %v446 = vld [vmem:[%s445 + $0x8] sm:$0xff]
    %v447 = vpack.c.bf16 %v378, %v378
    %449 = vrot.lane.b32.xlu0 %v447, 64
    %v450 = vpop.permute.xlu0 %449
    %v452 = vsel %vm103, %v450, 0
    %454 = vmatprep.subr.bf16.mxu0 0
    %455 = vmatpush1.bf16.msra.mxu0 %v286
    %456 = vmatprep.subr.bf16.mxu0 0
    %457 = vmatpush1.bf16.msra.mxu0 %v287
    %458 = vmatprep.subr.bf16.mxu0 0
    %459 = vmatpush1.bf16.msra.mxu0 0
    %460 = vmatprep.subr.bf16.mxu0 0
    %461 = vmatpush1.bf16.msra.mxu0 0
    %462 = vmatprep.subr.bf16.mxu0 0
    %463 = vmatpush1.bf16.msra.mxu0 0
    %464 = vmatprep.subr.bf16.mxu0 0
    %465 = vmatpush1.bf16.msra.mxu0 0
    %466 = vmatprep.subr.bf16.mxu0 0
    %467 = vmatpush1.bf16.msra.mxu0 0
    %468 = vmatprep.subr.bf16.mxu0 0
    %469 = vmatpush1.bf16.msra.mxu0 0
    %470 = vmatprep.subr.bf16.mxu0 0
    %471 = vmatpush1.bf16.msra.mxu0 0
    %472 = vmatprep.subr.bf16.mxu0 0
    %473 = vmatpush1.bf16.msra.mxu0 0
    %474 = vmatprep.subr.bf16.mxu0 0
    %475 = vmatpush1.bf16.msra.mxu0 0
    %476 = vmatprep.subr.bf16.mxu0 0
    %477 = vmatpush1.bf16.msra.mxu0 0
    %478 = vmatprep.subr.bf16.mxu0 0
    %479 = vmatpush1.bf16.msra.mxu0 0
    %480 = vmatprep.subr.bf16.mxu0 0
    %481 = vmatpush1.bf16.msra.mxu0 0
    %482 = vmatprep.subr.bf16.mxu0 0
    %483 = vmatpush1.bf16.msra.mxu0 0
    %484 = vmatprep.subr.bf16.mxu0 0
    %485 = vmatpush1.bf16.msra.mxu0 0
    %486 = vmatprep.mubr.bf16.mxu0 0
    %487 = vmatmul.mubr.bf16.gmra.mrb[0].mxu0 %v452
    %v488 = vpop.f32.mrb[0].mxu0
    %v489 = vadd.f32 0.0, %v488
    %v490 = vpop.f32.mrb[0].mxu0
    %v491 = vpop.f32.mrb[0].mxu0
    %v492 = vpop.f32.mrb[0].mxu0
    %493 = vdwg.mxu0
    %v494 = vadd.f32 %v446, %v489
    %v495 = vxor.u32 %v442, 2147483648
    %v496 = vmul.f32 %v495, 1.442695
    %v497 = vpow.pop %v496
    %v498 = vadd.f32 %v497, 1.0
    %v499 = vrcp.pop %v498
    %v500 = vmul.f32 1.0, %v499
    %v501 = vxor.u32 %v494, 2147483648
    %v502 = vmul.f32 %v501, 1.442695
    %v503 = vpow.pop %v502
    %v504 = vadd.f32 %v503, 1.0
    %v505 = vrcp.pop %v504
    %v506 = vmul.f32 1.0, %v505
    %v507 = vtanh.pop %v442
    %v508 = vtanh.pop %v494
    %v509 = vmul.f32 %v500, %v355
    %511 = vrot.lane.b32.xlu0 %v507, 32
    %v512 = vpop.permute.xlu0 %511
    %v514 = vmul.f32 %v500, %v512
    %516 = vrot.lane.b32.xlu0 %v514, 32
    %v517 = vpop.permute.xlu0 %516
    %v519 = vadd.f32 %v509, %v517
    %v520 = vmul.f32 %v506, %v366
    %522 = vrot.lane.b32.xlu0 %v508, 32
    %v523 = vpop.permute.xlu0 %522
    %v525 = vmul.f32 %v506, %v523
    %527 = vrot.lane.b32.xlu0 %v525, 32
    %v528 = vpop.permute.xlu0 %527
    %v530 = vadd.f32 %v520, %v528
    %v531 = vtanh.pop %v519
    %533 = vrot.lane.b32.xlu0 %v531, 32
    %v534 = vpop.permute.xlu0 %533
    %v536 = vmul.f32 %v500, %v534
    %v537 = vtanh.pop %v530
    %539 = vrot.lane.b32.xlu0 %v537, 32
    %v540 = vpop.permute.xlu0 %539
    %v542 = vmul.f32 %v506, %v540
    %544 = vrot.lane.b32.xlu0 %v536, 64
    %v545 = vpop.permute.xlu0 %544
    %s547 = scalar_lea.vmem [#allocation3], 8
    %548 = vst.msk [vmem:[%s547] sm:$0xff] %vm103, %v545
    %550 = vrot.lane.b32.xlu0 %v542, 96
    %v551 = vpop.permute.xlu0 %550
    %s553 = scalar_lea.vmem [#allocation3], 48
    %554 = vst.msk [vmem:[%s553] sm:$0xff] %vm389, %v551
    %s555 = smul.u32 2, 2
    %s556 = smul.addr %s555, 8
    %s557 = scalar_lea.vmem [#allocation2], %s556
    %v558 = vld [vmem:[%s557] sm:$0xff]
    %v559 = vpack.c.bf16 %v536, %v536
    %561 = vrot.lane.b32.xlu0 %v559, 64
    %v562 = vpop.permute.xlu0 %561
    %v564 = vsel %vm103, %v562, 0
    %566 = vmatprep.subr.bf16.mxu0 0
    %567 = vmatpush1.bf16.msra.mxu0 %v226
    %568 = vmatprep.subr.bf16.mxu0 0
    %569 = vmatpush1.bf16.msra.mxu0 %v227
    %570 = vmatprep.subr.bf16.mxu0 0
    %571 = vmatpush1.bf16.msra.mxu0 0
    %572 = vmatprep.subr.bf16.mxu0 0
    %573 = vmatpush1.bf16.msra.mxu0 0
    %574 = vmatprep.subr.bf16.mxu0 0
    %575 = vmatpush1.bf16.msra.mxu0 0
    %576 = vmatprep.subr.bf16.mxu0 0
    %577 = vmatpush1.bf16.msra.mxu0 0
    %578 = vmatprep.subr.bf16.mxu0 0
    %579 = vmatpush1.bf16.msra.mxu0 0
    %580 = vmatprep.subr.bf16.mxu0 0
    %581 = vmatpush1.bf16.msra.mxu0 0
    %582 = vmatprep.subr.bf16.mxu0 0
    %583 = vmatpush1.bf16.msra.mxu0 0
    %584 = vmatprep.subr.bf16.mxu0 0
    %585 = vmatpush1.bf16.msra.mxu0 0
    %586 = vmatprep.subr.bf16.mxu0 0
    %587 = vmatpush1.bf16.msra.mxu0 0
    %588 = vmatprep.subr.bf16.mxu0 0
    %589 = vmatpush1.bf16.msra.mxu0 0
    %590 = vmatprep.subr.bf16.mxu0 0
    %591 = vmatpush1.bf16.msra.mxu0 0
    %592 = vmatprep.subr.bf16.mxu0 0
    %593 = vmatpush1.bf16.msra.mxu0 0
    %594 = vmatprep.subr.bf16.mxu0 0
    %595 = vmatpush1.bf16.msra.mxu0 0
    %596 = vmatprep.subr.bf16.mxu0 0
    %597 = vmatpush1.bf16.msra.mxu0 0
    %598 = vmatprep.mubr.bf16.mxu0 0
    %599 = vmatmul.mubr.bf16.gmra.mrb[0].mxu0 %v564
    %v600 = vpop.f32.mrb[0].mxu0
    %v601 = vadd.f32 0.0, %v600
    %v602 = vpop.f32.mrb[0].mxu0
    %v603 = vpop.f32.mrb[0].mxu0
    %v604 = vpop.f32.mrb[0].mxu0
    %605 = vdwg.mxu0
    %v606 = vadd.f32 %v558, %v601
    %s607 = smul.u32 5, 2
    %s608 = smul.addr %s607, 8
    %s609 = scalar_lea.vmem [#allocation2], %s608
    %v610 = vld [vmem:[%s609 + $0x8] sm:$0xff]
    %v611 = vpack.c.bf16 %v542, %v542
    %613 = vrot.lane.b32.xlu0 %v611, 64
    %v614 = vpop.permute.xlu0 %613
    %v616 = vsel %vm103, %v614, 0
    %618 = vmatprep.subr.bf16.mxu0 0
    %619 = vmatpush1.bf16.msra.mxu0 %v286
    %620 = vmatprep.subr.bf16.mxu0 0
    %621 = vmatpush1.bf16.msra.mxu0 %v287
    %622 = vmatprep.subr.bf16.mxu0 0
    %623 = vmatpush1.bf16.msra.mxu0 0
    %624 = vmatprep.subr.bf16.mxu0 0
    %625 = vmatpush1.bf16.msra.mxu0 0
    %626 = vmatprep.subr.bf16.mxu0 0
    %627 = vmatpush1.bf16.msra.mxu0 0
    %628 = vmatprep.subr.bf16.mxu0 0
    %629 = vmatpush1.bf16.msra.mxu0 0
    %630 = vmatprep.subr.bf16.mxu0 0
    %631 = vmatpush1.bf16.msra.mxu0 0
    %632 = vmatprep.subr.bf16.mxu0 0
    %633 = vmatpush1.bf16.msra.mxu0 0
    %634 = vmatprep.subr.bf16.mxu0 0
    %635 = vmatpush1.bf16.msra.mxu0 0
    %636 = vmatprep.subr.bf16.mxu0 0
    %637 = vmatpush1.bf16.msra.mxu0 0
    %638 = vmatprep.subr.bf16.mxu0 0
    %639 = vmatpush1.bf16.msra.mxu0 0
    %640 = vmatprep.subr.bf16.mxu0 0
    %641 = vmatpush1.bf16.msra.mxu0 0
    %642 = vmatprep.subr.bf16.mxu0 0
    %643 = vmatpush1.bf16.msra.mxu0 0
    %644 = vmatprep.subr.bf16.mxu0 0
    %645 = vmatpush1.bf16.msra.mxu0 0
    %646 = vmatprep.subr.bf16.mxu0 0
    %647 = vmatpush1.bf16.msra.mxu0 0
    %648 = vmatprep.subr.bf16.mxu0 0
    %649 = vmatpush1.bf16.msra.mxu0 0
    %650 = vmatprep.mubr.bf16.mxu0 0
    %651 = vmatmul.mubr.bf16.gmra.mrb[0].mxu0 %v616
    %v652 = vpop.f32.mrb[0].mxu0
    %v653 = vadd.f32 0.0, %v652
    %v654 = vpop.f32.mrb[0].mxu0
    %v655 = vpop.f32.mrb[0].mxu0
    %v656 = vpop.f32.mrb[0].mxu0
    %657 = vdwg.mxu0
    %v658 = vadd.f32 %v610, %v653
    %v659 = vxor.u32 %v606, 2147483648
    %v660 = vmul.f32 %v659, 1.442695
    %v661 = vpow.pop %v660
    %v662 = vadd.f32 %v661, 1.0
    %v663 = vrcp.pop %v662
    %v664 = vmul.f32 1.0, %v663
    %v665 = vxor.u32 %v658, 2147483648
    %v666 = vmul.f32 %v665, 1.442695
    %v667 = vpow.pop %v666
    %v668 = vadd.f32 %v667, 1.0
    %v669 = vrcp.pop %v668
    %v670 = vmul.f32 1.0, %v669
    %v671 = vtanh.pop %v606
    %v672 = vtanh.pop %v658
    %v673 = vmul.f32 %v664, %v519
    %675 = vrot.lane.b32.xlu0 %v671, 32
    %v676 = vpop.permute.xlu0 %675
    %v678 = vmul.f32 %v664, %v676
    %680 = vrot.lane.b32.xlu0 %v678, 32
    %v681 = vpop.permute.xlu0 %680
    %v683 = vadd.f32 %v673, %v681
    %v684 = vmul.f32 %v670, %v530
    %686 = vrot.lane.b32.xlu0 %v672, 32
    %v687 = vpop.permute.xlu0 %686
    %v689 = vmul.f32 %v670, %v687
    %691 = vrot.lane.b32.xlu0 %v689, 32
    %v692 = vpop.permute.xlu0 %691
    %v694 = vadd.f32 %v684, %v692
    %v695 = vtanh.pop %v683
    %697 = vrot.lane.b32.xlu0 %v695, 32
    %v698 = vpop.permute.xlu0 %697
    %v700 = vmul.f32 %v664, %v698
    %v701 = vtanh.pop %v694
    %703 = vrot.lane.b32.xlu0 %v701, 32
    %v704 = vpop.permute.xlu0 %703
    %v706 = vmul.f32 %v670, %v704
    %708 = vrot.lane.b32.xlu0 %v700, 64
    %v709 = vpop.permute.xlu0 %708
    %s711 = scalar_lea.vmem [#allocation3], 16
    %712 = vst.msk [vmem:[%s711] sm:$0xff] %vm103, %v709
    %714 = vrot.lane.b32.xlu0 %v706, 96
    %v715 = vpop.permute.xlu0 %714
    %s717 = scalar_lea.vmem [#allocation3], 40
    %718 = vst.msk [vmem:[%s717] sm:$0xff] %vm389, %v715
    %s719 = smul.u32 3, 2
    %s720 = smul.addr %s719, 8
    %s721 = scalar_lea.vmem [#allocation2], %s720
    %v722 = vld [vmem:[%s721] sm:$0xff]
    %v723 = vpack.c.bf16 %v700, %v700
    %725 = vrot.lane.b32.xlu0 %v723, 64
    %v726 = vpop.permute.xlu0 %725
    %v728 = vsel %vm103, %v726, 0
    %730 = vmatprep.subr.bf16.mxu0 0
    %731 = vmatpush1.bf16.msra.mxu0 %v226
    %732 = vmatprep.subr.bf16.mxu0 0
    %733 = vmatpush1.bf16.msra.mxu0 %v227
    %734 = vmatprep.subr.bf16.mxu0 0
    %735 = vmatpush1.bf16.msra.mxu0 0
    %736 = vmatprep.subr.bf16.mxu0 0
    %737 = vmatpush1.bf16.msra.mxu0 0
    %738 = vmatprep.subr.bf16.mxu0 0
    %739 = vmatpush1.bf16.msra.mxu0 0
    %740 = vmatprep.subr.bf16.mxu0 0
    %741 = vmatpush1.bf16.msra.mxu0 0
    %742 = vmatprep.subr.bf16.mxu0 0
    %743 = vmatpush1.bf16.msra.mxu0 0
    %744 = vmatprep.subr.bf16.mxu0 0
    %745 = vmatpush1.bf16.msra.mxu0 0
    %746 = vmatprep.subr.bf16.mxu0 0
    %747 = vmatpush1.bf16.msra.mxu0 0
    %748 = vmatprep.subr.bf16.mxu0 0
    %749 = vmatpush1.bf16.msra.mxu0 0
    %750 = vmatprep.subr.bf16.mxu0 0
    %751 = vmatpush1.bf16.msra.mxu0 0
    %752 = vmatprep.subr.bf16.mxu0 0
    %753 = vmatpush1.bf16.msra.mxu0 0
    %754 = vmatprep.subr.bf16.mxu0 0
    %755 = vmatpush1.bf16.msra.mxu0 0
    %756 = vmatprep.subr.bf16.mxu0 0
    %757 = vmatpush1.bf16.msra.mxu0 0
    %758 = vmatprep.subr.bf16.mxu0 0
    %759 = vmatpush1.bf16.msra.mxu0 0
    %760 = vmatprep.subr.bf16.mxu0 0
    %761 = vmatpush1.bf16.msra.mxu0 0
    %762 = vmatprep.mubr.bf16.mxu0 0
    %763 = vmatmul.mubr.bf16.gmra.mrb[0].mxu0 %v728
    %v764 = vpop.f32.mrb[0].mxu0
    %v765 = vadd.f32 0.0, %v764
    %v766 = vpop.f32.mrb[0].mxu0
    %v767 = vpop.f32.mrb[0].mxu0
    %v768 = vpop.f32.mrb[0].mxu0
    %769 = vdwg.mxu0
    %v770 = vadd.f32 %v722, %v765
    %s771 = smul.u32 4, 2
    %s772 = smul.addr %s771, 8
    %s773 = scalar_lea.vmem [#allocation2], %s772
    %v774 = vld [vmem:[%s773 + $0x8] sm:$0xff]
    %v775 = vpack.c.bf16 %v706, %v706
    %777 = vrot.lane.b32.xlu0 %v775, 64
    %v778 = vpop.permute.xlu0 %777
    %v780 = vsel %vm103, %v778, 0
    %782 = vmatprep.subr.bf16.mxu0 0
    %783 = vmatpush1.bf16.msra.mxu0 %v286
    %784 = vmatprep.subr.bf16.mxu0 0
    %785 = vmatpush1.bf16.msra.mxu0 %v287
    %786 = vmatprep.subr.bf16.mxu0 0
    %787 = vmatpush1.bf16.msra.mxu0 0
    %788 = vmatprep.subr.bf16.mxu0 0
    %789 = vmatpush1.bf16.msra.mxu0 0
    %790 = vmatprep.subr.bf16.mxu0 0
    %791 = vmatpush1.bf16.msra.mxu0 0
    %792 = vmatprep.subr.bf16.mxu0 0
    %793 = vmatpush1.bf16.msra.mxu0 0
    %794 = vmatprep.subr.bf16.mxu0 0
    %795 = vmatpush1.bf16.msra.mxu0 0
    %796 = vmatprep.subr.bf16.mxu0 0
    %797 = vmatpush1.bf16.msra.mxu0 0
    %798 = vmatprep.subr.bf16.mxu0 0
    %799 = vmatpush1.bf16.msra.mxu0 0
    %800 = vmatprep.subr.bf16.mxu0 0
    %801 = vmatpush1.bf16.msra.mxu0 0
    %802 = vmatprep.subr.bf16.mxu0 0
    %803 = vmatpush1.bf16.msra.mxu0 0
    %804 = vmatprep.subr.bf16.mxu0 0
    %805 = vmatpush1.bf16.msra.mxu0 0
    %806 = vmatprep.subr.bf16.mxu0 0
    %807 = vmatpush1.bf16.msra.mxu0 0
    %808 = vmatprep.subr.bf16.mxu0 0
    %809 = vmatpush1.bf16.msra.mxu0 0
    %810 = vmatprep.subr.bf16.mxu0 0
    %811 = vmatpush1.bf16.msra.mxu0 0
    %812 = vmatprep.subr.bf16.mxu0 0
    %813 = vmatpush1.bf16.msra.mxu0 0
    %814 = vmatprep.mubr.bf16.mxu0 0
    %815 = vmatmul.mubr.bf16.gmra.mrb[0].mxu0 %v780
    %v816 = vpop.f32.mrb[0].mxu0
    %v817 = vadd.f32 0.0, %v816
    %v818 = vpop.f32.mrb[0].mxu0
    %v819 = vpop.f32.mrb[0].mxu0
    %v820 = vpop.f32.mrb[0].mxu0
    %821 = vdwg.mxu0
    %v822 = vadd.f32 %v774, %v817
    %v823 = vxor.u32 %v770, 2147483648
    %v824 = vmul.f32 %v823, 1.442695
    %v825 = vpow.pop %v824
    %v826 = vadd.f32 %v825, 1.0
    %v827 = vrcp.pop %v826
    %v828 = vmul.f32 1.0, %v827
    %v829 = vxor.u32 %v822, 2147483648
    %v830 = vmul.f32 %v829, 1.442695
    %v831 = vpow.pop %v830
    %v832 = vadd.f32 %v831, 1.0
    %v833 = vrcp.pop %v832
    %v834 = vmul.f32 1.0, %v833
    %v835 = vtanh.pop %v770
    %v836 = vtanh.pop %v822
    %v837 = vmul.f32 %v828, %v683
    %839 = vrot.lane.b32.xlu0 %v835, 32
    %v840 = vpop.permute.xlu0 %839
    %v842 = vmul.f32 %v828, %v840
    %844 = vrot.lane.b32.xlu0 %v842, 32
    %v845 = vpop.permute.xlu0 %844
    %v847 = vadd.f32 %v837, %v845
    %v848 = vmul.f32 %v834, %v694
    %850 = vrot.lane.b32.xlu0 %v836, 32
    %v851 = vpop.permute.xlu0 %850
    %v853 = vmul.f32 %v834, %v851
    %855 = vrot.lane.b32.xlu0 %v853, 32
    %v856 = vpop.permute.xlu0 %855
    %v858 = vadd.f32 %v848, %v856
    %v859 = vtanh.pop %v847
    %861 = vrot.lane.b32.xlu0 %v859, 32
    %v862 = vpop.permute.xlu0 %861
    %v864 = vmul.f32 %v828, %v862
    %v865 = vtanh.pop %v858
    %867 = vrot.lane.b32.xlu0 %v865, 32
    %v868 = vpop.permute.xlu0 %867
    %v870 = vmul.f32 %v834, %v868
    %872 = vrot.lane.b32.xlu0 %v864, 64
    %v873 = vpop.permute.xlu0 %872
    %s875 = scalar_lea.vmem [#allocation3], 24
    %876 = vst.msk [vmem:[%s875] sm:$0xff] %vm103, %v873
    %878 = vrot.lane.b32.xlu0 %v870, 96
    %v879 = vpop.permute.xlu0 %878
    %s881 = scalar_lea.vmem [#allocation3], 32
    %882 = vst.msk [vmem:[%s881] sm:$0xff] %vm389, %v879
    %v883 = vld [vmem:[%s773] sm:$0xff]
    %v884 = vpack.c.bf16 %v864, %v864
    %886 = vrot.lane.b32.xlu0 %v884, 64
    %v887 = vpop.permute.xlu0 %886
    %v889 = vsel %vm103, %v887, 0
    %891 = vmatprep.subr.bf16.mxu0 0
    %892 = vmatpush1.bf16.msra.mxu0 %v226
    %893 = vmatprep.subr.bf16.mxu0 0
    %894 = vmatpush1.bf16.msra.mxu0 %v227
    %895 = vmatprep.subr.bf16.mxu0 0
    %896 = vmatpush1.bf16.msra.mxu0 0
    %897 = vmatprep.subr.bf16.mxu0 0
    %898 = vmatpush1.bf16.msra.mxu0 0
    %899 = vmatprep.subr.bf16.mxu0 0
    %900 = vmatpush1.bf16.msra.mxu0 0
    %901 = vmatprep.subr.bf16.mxu0 0
    %902 = vmatpush1.bf16.msra.mxu0 0
    %903 = vmatprep.subr.bf16.mxu0 0
    %904 = vmatpush1.bf16.msra.mxu0 0
    %905 = vmatprep.subr.bf16.mxu0 0
    %906 = vmatpush1.bf16.msra.mxu0 0
    %907 = vmatprep.subr.bf16.mxu0 0
    %908 = vmatpush1.bf16.msra.mxu0 0
    %909 = vmatprep.subr.bf16.mxu0 0
    %910 = vmatpush1.bf16.msra.mxu0 0
    %911 = vmatprep.subr.bf16.mxu0 0
    %912 = vmatpush1.bf16.msra.mxu0 0
    %913 = vmatprep.subr.bf16.mxu0 0
    %914 = vmatpush1.bf16.msra.mxu0 0
    %915 = vmatprep.subr.bf16.mxu0 0
    %916 = vmatpush1.bf16.msra.mxu0 0
    %917 = vmatprep.subr.bf16.mxu0 0
    %918 = vmatpush1.bf16.msra.mxu0 0
    %919 = vmatprep.subr.bf16.mxu0 0
    %920 = vmatpush1.bf16.msra.mxu0 0
    %921 = vmatprep.subr.bf16.mxu0 0
    %922 = vmatpush1.bf16.msra.mxu0 0
    %923 = vmatprep.mubr.bf16.mxu0 0
    %924 = vmatmul.mubr.bf16.gmra.mrb[0].mxu0 %v889
    %v925 = vpop.f32.mrb[0].mxu0
    %v926 = vadd.f32 0.0, %v925
    %v927 = vpop.f32.mrb[0].mxu0
    %v928 = vpop.f32.mrb[0].mxu0
    %v929 = vpop.f32.mrb[0].mxu0
    %930 = vdwg.mxu0
    %v931 = vadd.f32 %v883, %v926
    %v932 = vld [vmem:[%s721 + $0x8] sm:$0xff]
    %v933 = vpack.c.bf16 %v870, %v870
    %935 = vrot.lane.b32.xlu0 %v933, 64
    %v936 = vpop.permute.xlu0 %935
    %v938 = vsel %vm103, %v936, 0
    %940 = vmatprep.subr.bf16.mxu0 0
    %941 = vmatpush1.bf16.msra.mxu0 %v286
    %942 = vmatprep.subr.bf16.mxu0 0
    %943 = vmatpush1.bf16.msra.mxu0 %v287
    %944 = vmatprep.subr.bf16.mxu0 0
    %945 = vmatpush1.bf16.msra.mxu0 0
    %946 = vmatprep.subr.bf16.mxu0 0
    %947 = vmatpush1.bf16.msra.mxu0 0
    %948 = vmatprep.subr.bf16.mxu0 0
    %949 = vmatpush1.bf16.msra.mxu0 0
    %950 = vmatprep.subr.bf16.mxu0 0
    %951 = vmatpush1.bf16.msra.mxu0 0
    %952 = vmatprep.subr.bf16.mxu0 0
    %953 = vmatpush1.bf16.msra.mxu0 0
    %954 = vmatprep.subr.bf16.mxu0 0
    %955 = vmatpush1.bf16.msra.mxu0 0
    %956 = vmatprep.subr.bf16.mxu0 0
    %957 = vmatpush1.bf16.msra.mxu0 0
    %958 = vmatprep.subr.bf16.mxu0 0
    %959 = vmatpush1.bf16.msra.mxu0 0
    %960 = vmatprep.subr.bf16.mxu0 0
    %961 = vmatpush1.bf16.msra.mxu0 0
    %962 = vmatprep.subr.bf16.mxu0 0
    %963 = vmatpush1.bf16.msra.mxu0 0
    %964 = vmatprep.subr.bf16.mxu0 0
    %965 = vmatpush1.bf16.msra.mxu0 0
    %966 = vmatprep.subr.bf16.mxu0 0
    %967 = vmatpush1.bf16.msra.mxu0 0
    %968 = vmatprep.subr.bf16.mxu0 0
    %969 = vmatpush1.bf16.msra.mxu0 0
    %970 = vmatprep.subr.bf16.mxu0 0
    %971 = vmatpush1.bf16.msra.mxu0 0
    %972 = vmatprep.mubr.bf16.mxu0 0
    %973 = vmatmul.mubr.bf16.gmra.mrb[0].mxu0 %v938
    %v974 = vpop.f32.mrb[0].mxu0
    %v975 = vadd.f32 0.0, %v974
    %v976 = vpop.f32.mrb[0].mxu0
    %v977 = vpop.f32.mrb[0].mxu0
    %v978 = vpop.f32.mrb[0].mxu0
    %979 = vdwg.mxu0
    %v980 = vadd.f32 %v932, %v975
    %v981 = vxor.u32 %v931, 2147483648
    %v982 = vmul.f32 %v981, 1.442695
    %v983 = vpow.pop %v982
    %v984 = vadd.f32 %v983, 1.0
    %v985 = vrcp.pop %v984
    %v986 = vmul.f32 1.0, %v985
    %v987 = vxor.u32 %v980, 2147483648
    %v988 = vmul.f32 %v987, 1.442695
    %v989 = vpow.pop %v988
    %v990 = vadd.f32 %v989, 1.0
    %v991 = vrcp.pop %v990
    %v992 = vmul.f32 1.0, %v991
    %v993 = vtanh.pop %v931
    %v994 = vtanh.pop %v980
    %v995 = vmul.f32 %v986, %v847
    %997 = vrot.lane.b32.xlu0 %v993, 32
    %v998 = vpop.permute.xlu0 %997
    %v1000 = vmul.f32 %v986, %v998
    %1002 = vrot.lane.b32.xlu0 %v1000, 32
    %v1003 = vpop.permute.xlu0 %1002
    %v1005 = vadd.f32 %v995, %v1003
    %v1006 = vmul.f32 %v992, %v858
    %1008 = vrot.lane.b32.xlu0 %v994, 32
    %v1009 = vpop.permute.xlu0 %1008
    %v1011 = vmul.f32 %v992, %v1009
    %1013 = vrot.lane.b32.xlu0 %v1011, 32
    %v1014 = vpop.permute.xlu0 %1013
    %v1016 = vadd.f32 %v1006, %v1014
    %v1017 = vtanh.pop %v1005
    %1019 = vrot.lane.b32.xlu0 %v1017, 32
    %v1020 = vpop.permute.xlu0 %1019
    %v1022 = vmul.f32 %v986, %v1020
    %v1023 = vtanh.pop %v1016
    %1025 = vrot.lane.b32.xlu0 %v1023, 32
    %v1026 = vpop.permute.xlu0 %1025
    %v1028 = vmul.f32 %v992, %v1026
    %1030 = vrot.lane.b32.xlu0 %v1022, 64
    %v1031 = vpop.permute.xlu0 %1030
    %1033 = vst.msk [vmem:[%s881] sm:$0xff] %vm103, %v1031
    %1035 = vrot.lane.b32.xlu0 %v1028, 96
    %v1036 = vpop.permute.xlu0 %1035
    %1038 = vst.msk [vmem:[%s875] sm:$0xff] %vm389, %v1036
    %v1039 = vld [vmem:[%s609] sm:$0xff]
    %v1040 = vpack.c.bf16 %v1022, %v1022
    %1042 = vrot.lane.b32.xlu0 %v1040, 64
    %v1043 = vpop.permute.xlu0 %1042
    %v1045 = vsel %vm103, %v1043, 0
    %1047 = vmatprep.subr.bf16.mxu0 0
    %1048 = vmatpush1.bf16.msra.mxu0 %v226
    %1049 = vmatprep.subr.bf16.mxu0 0
    %1050 = vmatpush1.bf16.msra.mxu0 %v227
    %1051 = vmatprep.subr.bf16.mxu0 0
    %1052 = vmatpush1.bf16.msra.mxu0 0
    %1053 = vmatprep.subr.bf16.mxu0 0
    %1054 = vmatpush1.bf16.msra.mxu0 0
    %1055 = vmatprep.subr.bf16.mxu0 0
    %1056 = vmatpush1.bf16.msra.mxu0 0
    %1057 = vmatprep.subr.bf16.mxu0 0
    %1058 = vmatpush1.bf16.msra.mxu0 0
    %1059 = vmatprep.subr.bf16.mxu0 0
    %1060 = vmatpush1.bf16.msra.mxu0 0
    %1061 = vmatprep.subr.bf16.mxu0 0
    %1062 = vmatpush1.bf16.msra.mxu0 0
    %1063 = vmatprep.subr.bf16.mxu0 0
    %1064 = vmatpush1.bf16.msra.mxu0 0
    %1065 = vmatprep.subr.bf16.mxu0 0
    %1066 = vmatpush1.bf16.msra.mxu0 0
    %1067 = vmatprep.subr.bf16.mxu0 0
    %1068 = vmatpush1.bf16.msra.mxu0 0
    %1069 = vmatprep.subr.bf16.mxu0 0
    %1070 = vmatpush1.bf16.msra.mxu0 0
    %1071 = vmatprep.subr.bf16.mxu0 0
    %1072 = vmatpush1.bf16.msra.mxu0 0
    %1073 = vmatprep.subr.bf16.mxu0 0
    %1074 = vmatpush1.bf16.msra.mxu0 0
    %1075 = vmatprep.subr.bf16.mxu0 0
    %1076 = vmatpush1.bf16.msra.mxu0 0
    %1077 = vmatprep.subr.bf16.mxu0 0
    %1078 = vmatpush1.bf16.msra.mxu0 0
    %1079 = vmatprep.mubr.bf16.mxu0 0
    %1080 = vmatmul.mubr.bf16.gmra.mrb[0].mxu0 %v1045
    %v1081 = vpop.f32.mrb[0].mxu0
    %v1082 = vadd.f32 0.0, %v1081
    %v1083 = vpop.f32.mrb[0].mxu0
    %v1084 = vpop.f32.mrb[0].mxu0
    %v1085 = vpop.f32.mrb[0].mxu0
    %1086 = vdwg.mxu0
    %v1087 = vadd.f32 %v1039, %v1082
    %v1088 = vld [vmem:[%s557 + $0x8] sm:$0xff]
    %v1089 = vpack.c.bf16 %v1028, %v1028
    %1091 = vrot.lane.b32.xlu0 %v1089, 64
    %v1092 = vpop.permute.xlu0 %1091
    %v1094 = vsel %vm103, %v1092, 0
    %1096 = vmatprep.subr.bf16.mxu0 0
    %1097 = vmatpush1.bf16.msra.mxu0 %v286
    %1098 = vmatprep.subr.bf16.mxu0 0
    %1099 = vmatpush1.bf16.msra.mxu0 %v287
    %1100 = vmatprep.subr.bf16.mxu0 0
    %1101 = vmatpush1.bf16.msra.mxu0 0
    %1102 = vmatprep.subr.bf16.mxu0 0
    %1103 = vmatpush1.bf16.msra.mxu0 0
    %1104 = vmatprep.subr.bf16.mxu0 0
    %1105 = vmatpush1.bf16.msra.mxu0 0
    %1106 = vmatprep.subr.bf16.mxu0 0
    %1107 = vmatpush1.bf16.msra.mxu0 0
    %1108 = vmatprep.subr.bf16.mxu0 0
    %1109 = vmatpush1.bf16.msra.mxu0 0
    %1110 = vmatprep.subr.bf16.mxu0 0
    %1111 = vmatpush1.bf16.msra.mxu0 0
    %1112 = vmatprep.subr.bf16.mxu0 0
    %1113 = vmatpush1.bf16.msra.mxu0 0
    %1114 = vmatprep.subr.bf16.mxu0 0
    %1115 = vmatpush1.bf16.msra.mxu0 0
    %1116 = vmatprep.subr.bf16.mxu0 0
    %1117 = vmatpush1.bf16.msra.mxu0 0
    %1118 = vmatprep.subr.bf16.mxu0 0
    %1119 = vmatpush1.bf16.msra.mxu0 0
    %1120 = vmatprep.subr.bf16.mxu0 0
    %1121 = vmatpush1.bf16.msra.mxu0 0
    %1122 = vmatprep.subr.bf16.mxu0 0
    %1123 = vmatpush1.bf16.msra.mxu0 0
    %1124 = vmatprep.subr.bf16.mxu0 0
    %1125 = vmatpush1.bf16.msra.mxu0 0
    %1126 = vmatprep.subr.bf16.mxu0 0
    %1127 = vmatpush1.bf16.msra.mxu0 0
    %1128 = vmatprep.mubr.bf16.mxu0 0
    %1129 = vmatmul.mubr.bf16.gmra.mrb[0].mxu0 %v1094
    %v1130 = vpop.f32.mrb[0].mxu0
    %v1131 = vadd.f32 0.0, %v1130
    %v1132 = vpop.f32.mrb[0].mxu0
    %v1133 = vpop.f32.mrb[0].mxu0
    %v1134 = vpop.f32.mrb[0].mxu0
    %1135 = vdwg.mxu0
    %v1136 = vadd.f32 %v1088, %v1131
    %v1137 = vxor.u32 %v1087, 2147483648
    %v1138 = vmul.f32 %v1137, 1.442695
    %v1139 = vpow.pop %v1138
    %v1140 = vadd.f32 %v1139, 1.0
    %v1141 = vrcp.pop %v1140
    %v1142 = vmul.f32 1.0, %v1141
    %v1143 = vxor.u32 %v1136, 2147483648
    %v1144 = vmul.f32 %v1143, 1.442695
    %v1145 = vpow.pop %v1144
    %v1146 = vadd.f32 %v1145, 1.0
    %v1147 = vrcp.pop %v1146
    %v1148 = vmul.f32 1.0, %v1147
    %v1149 = vtanh.pop %v1087
    %v1150 = vtanh.pop %v1136
    %v1151 = vmul.f32 %v1142, %v1005
    %1153 = vrot.lane.b32.xlu0 %v1149, 32
    %v1154 = vpop.permute.xlu0 %1153
    %v1156 = vmul.f32 %v1142, %v1154
    %1158 = vrot.lane.b32.xlu0 %v1156, 32
    %v1159 = vpop.permute.xlu0 %1158
    %v1161 = vadd.f32 %v1151, %v1159
    %v1162 = vmul.f32 %v1148, %v1016
    %1164 = vrot.lane.b32.xlu0 %v1150, 32
    %v1165 = vpop.permute.xlu0 %1164
    %v1167 = vmul.f32 %v1148, %v1165
    %1169 = vrot.lane.b32.xlu0 %v1167, 32
    %v1170 = vpop.permute.xlu0 %1169
    %v1172 = vadd.f32 %v1162, %v1170
    %v1173 = vtanh.pop %v1161
    %1175 = vrot.lane.b32.xlu0 %v1173, 32
    %v1176 = vpop.permute.xlu0 %1175
    %v1178 = vmul.f32 %v1142, %v1176
    %v1179 = vtanh.pop %v1172
    %1181 = vrot.lane.b32.xlu0 %v1179, 32
    %v1182 = vpop.permute.xlu0 %1181
    %v1184 = vmul.f32 %v1148, %v1182
    %1186 = vrot.lane.b32.xlu0 %v1178, 64
    %v1187 = vpop.permute.xlu0 %1186
    %1189 = vst.msk [vmem:[%s717] sm:$0xff] %vm103, %v1187
    %1191 = vrot.lane.b32.xlu0 %v1184, 96
    %v1192 = vpop.permute.xlu0 %1191
    %1194 = vst.msk [vmem:[%s711] sm:$0xff] %vm389, %v1192
    %v1195 = vld [vmem:[%s445] sm:$0xff]
    %v1196 = vpack.c.bf16 %v1178, %v1178
    %1198 = vrot.lane.b32.xlu0 %v1196, 64
    %v1199 = vpop.permute.xlu0 %1198
    %v1201 = vsel %vm103, %v1199, 0
    %1203 = vmatprep.subr.bf16.mxu0 0
    %1204 = vmatpush1.bf16.msra.mxu0 %v226
    %1205 = vmatprep.subr.bf16.mxu0 0
    %1206 = vmatpush1.bf16.msra.mxu0 %v227
    %1207 = vmatprep.subr.bf16.mxu0 0
    %1208 = vmatpush1.bf16.msra.mxu0 0
    %1209 = vmatprep.subr.bf16.mxu0 0
    %1210 = vmatpush1.bf16.msra.mxu0 0
    %1211 = vmatprep.subr.bf16.mxu0 0
    %1212 = vmatpush1.bf16.msra.mxu0 0
    %1213 = vmatprep.subr.bf16.mxu0 0
    %1214 = vmatpush1.bf16.msra.mxu0 0
    %1215 = vmatprep.subr.bf16.mxu0 0
    %1216 = vmatpush1.bf16.msra.mxu0 0
    %1217 = vmatprep.subr.bf16.mxu0 0
    %1218 = vmatpush1.bf16.msra.mxu0 0
    %1219 = vmatprep.subr.bf16.mxu0 0
    %1220 = vmatpush1.bf16.msra.mxu0 0
    %1221 = vmatprep.subr.bf16.mxu0 0
    %1222 = vmatpush1.bf16.msra.mxu0 0
    %1223 = vmatprep.subr.bf16.mxu0 0
    %1224 = vmatpush1.bf16.msra.mxu0 0
    %1225 = vmatprep.subr.bf16.mxu0 0
    %1226 = vmatpush1.bf16.msra.mxu0 0
    %1227 = vmatprep.subr.bf16.mxu0 0
    %1228 = vmatpush1.bf16.msra.mxu0 0
    %1229 = vmatprep.subr.bf16.mxu0 0
    %1230 = vmatpush1.bf16.msra.mxu0 0
    %1231 = vmatprep.subr.bf16.mxu0 0
    %1232 = vmatpush1.bf16.msra.mxu0 0
    %1233 = vmatprep.subr.bf16.mxu0 0
    %1234 = vmatpush1.bf16.msra.mxu0 0
    %1235 = vmatprep.mubr.bf16.mxu0 0
    %1236 = vmatmul.mubr.bf16.gmra.mrb[0].mxu0 %v1201
    %v1237 = vpop.f32.mrb[0].mxu0
    %v1238 = vadd.f32 0.0, %v1237
    %v1239 = vpop.f32.mrb[0].mxu0
    %v1240 = vpop.f32.mrb[0].mxu0
    %v1241 = vpop.f32.mrb[0].mxu0
    %1242 = vdwg.mxu0
    %v1243 = vadd.f32 %v1195, %v1238
    %v1244 = vld [vmem:[%s393 + $0x8] sm:$0xff]
    %v1245 = vpack.c.bf16 %v1184, %v1184
    %1247 = vrot.lane.b32.xlu0 %v1245, 64
    %v1248 = vpop.permute.xlu0 %1247
    %v1250 = vsel %vm103, %v1248, 0
    %1252 = vmatprep.subr.bf16.mxu0 0
    %1253 = vmatpush1.bf16.msra.mxu0 %v286
    %1254 = vmatprep.subr.bf16.mxu0 0
    %1255 = vmatpush1.bf16.msra.mxu0 %v287
    %1256 = vmatprep.subr.bf16.mxu0 0
    %1257 = vmatpush1.bf16.msra.mxu0 0
    %1258 = vmatprep.subr.bf16.mxu0 0
    %1259 = vmatpush1.bf16.msra.mxu0 0
    %1260 = vmatprep.subr.bf16.mxu0 0
    %1261 = vmatpush1.bf16.msra.mxu0 0
    %1262 = vmatprep.subr.bf16.mxu0 0
    %1263 = vmatpush1.bf16.msra.mxu0 0
    %1264 = vmatprep.subr.bf16.mxu0 0
    %1265 = vmatpush1.bf16.msra.mxu0 0
    %1266 = vmatprep.subr.bf16.mxu0 0
    %1267 = vmatpush1.bf16.msra.mxu0 0
    %1268 = vmatprep.subr.bf16.mxu0 0
    %1269 = vmatpush1.bf16.msra.mxu0 0
    %1270 = vmatprep.subr.bf16.mxu0 0
    %1271 = vmatpush1.bf16.msra.mxu0 0
    %1272 = vmatprep.subr.bf16.mxu0 0
    %1273 = vmatpush1.bf16.msra.mxu0 0
    %1274 = vmatprep.subr.bf16.mxu0 0
    %1275 = vmatpush1.bf16.msra.mxu0 0
    %1276 = vmatprep.subr.bf16.mxu0 0
    %1277 = vmatpush1.bf16.msra.mxu0 0
    %1278 = vmatprep.subr.bf16.mxu0 0
    %1279 = vmatpush1.bf16.msra.mxu0 0
    %1280 = vmatprep.subr.bf16.mxu0 0
    %1281 = vmatpush1.bf16.msra.mxu0 0
    %1282 = vmatprep.subr.bf16.mxu0 0
    %1283 = vmatpush1.bf16.msra.mxu0 0
    %1284 = vmatprep.mubr.bf16.mxu0 0
    %1285 = vmatmul.mubr.bf16.gmra.mrb[0].mxu0 %v1250
    %v1286 = vpop.f32.mrb[0].mxu0
    %v1287 = vadd.f32 0.0, %v1286
    %v1288 = vpop.f32.mrb[0].mxu0
    %v1289 = vpop.f32.mrb[0].mxu0
    %v1290 = vpop.f32.mrb[0].mxu0
    %1291 = vdwg.mxu0
    %v1292 = vadd.f32 %v1244, %v1287
    %v1293 = vxor.u32 %v1243, 2147483648
    %v1294 = vmul.f32 %v1293, 1.442695
    %v1295 = vpow.pop %v1294
    %v1296 = vadd.f32 %v1295, 1.0
    %v1297 = vrcp.pop %v1296
    %v1298 = vmul.f32 1.0, %v1297
    %v1299 = vxor.u32 %v1292, 2147483648
    %v1300 = vmul.f32 %v1299, 1.442695
    %v1301 = vpow.pop %v1300
    %v1302 = vadd.f32 %v1301, 1.0
    %v1303 = vrcp.pop %v1302
    %v1304 = vmul.f32 1.0, %v1303
    %v1305 = vtanh.pop %v1243
    %v1306 = vtanh.pop %v1292
    %v1307 = vmul.f32 %v1298, %v1161
    %1309 = vrot.lane.b32.xlu0 %v1305, 32
    %v1310 = vpop.permute.xlu0 %1309
    %v1312 = vmul.f32 %v1298, %v1310
    %1314 = vrot.lane.b32.xlu0 %v1312, 32
    %v1315 = vpop.permute.xlu0 %1314
    %v1317 = vadd.f32 %v1307, %v1315
    %v1318 = vmul.f32 %v1304, %v1172
    %1320 = vrot.lane.b32.xlu0 %v1306, 32
    %v1321 = vpop.permute.xlu0 %1320
    %v1323 = vmul.f32 %v1304, %v1321
    %1325 = vrot.lane.b32.xlu0 %v1323, 32
    %v1326 = vpop.permute.xlu0 %1325
    %v1328 = vadd.f32 %v1318, %v1326
    %v1329 = vtanh.pop %v1317
    %1331 = vrot.lane.b32.xlu0 %v1329, 32
    %v1332 = vpop.permute.xlu0 %1331
    %v1334 = vmul.f32 %v1298, %v1332
    %v1335 = vtanh.pop %v1328
    %1337 = vrot.lane.b32.xlu0 %v1335, 32
    %v1338 = vpop.permute.xlu0 %1337
    %v1340 = vmul.f32 %v1304, %v1338
    %1342 = vrot.lane.b32.xlu0 %v1334, 64
    %v1343 = vpop.permute.xlu0 %1342
    %1345 = vst.msk [vmem:[%s553] sm:$0xff] %vm103, %v1343
    %1347 = vrot.lane.b32.xlu0 %v1340, 96
    %v1348 = vpop.permute.xlu0 %1347
    %1350 = vst.msk [vmem:[%s547] sm:$0xff] %vm389, %v1348
    %v1351 = vld [vmem:[%s276] sm:$0xff]
    %v1352 = vpack.c.bf16 %v1334, %v1334
    %1354 = vrot.lane.b32.xlu0 %v1352, 64
    %v1355 = vpop.permute.xlu0 %1354
    %v1357 = vsel %vm103, %v1355, 0
    %1359 = vmatprep.subr.bf16.mxu0 0
    %1360 = vmatpush1.bf16.msra.mxu0 %v226
    %1361 = vmatprep.subr.bf16.mxu0 0
    %1362 = vmatpush1.bf16.msra.mxu0 %v227
    %1363 = vmatprep.subr.bf16.mxu0 0
    %1364 = vmatpush1.bf16.msra.mxu0 0
    %1365 = vmatprep.subr.bf16.mxu0 0
    %1366 = vmatpush1.bf16.msra.mxu0 0
    %1367 = vmatprep.subr.bf16.mxu0 0
    %1368 = vmatpush1.bf16.msra.mxu0 0
    %1369 = vmatprep.subr.bf16.mxu0 0
    %1370 = vmatpush1.bf16.msra.mxu0 0
    %1371 = vmatprep.subr.bf16.mxu0 0
    %1372 = vmatpush1.bf16.msra.mxu0 0
    %1373 = vmatprep.subr.bf16.mxu0 0
    %1374 = vmatpush1.bf16.msra.mxu0 0
    %1375 = vmatprep.subr.bf16.mxu0 0
    %1376 = vmatpush1.bf16.msra.mxu0 0
    %1377 = vmatprep.subr.bf16.mxu0 0
    %1378 = vmatpush1.bf16.msra.mxu0 0
    %1379 = vmatprep.subr.bf16.mxu0 0
    %1380 = vmatpush1.bf16.msra.mxu0 0
    %1381 = vmatprep.subr.bf16.mxu0 0
    %1382 = vmatpush1.bf16.msra.mxu0 0
    %1383 = vmatprep.subr.bf16.mxu0 0
    %1384 = vmatpush1.bf16.msra.mxu0 0
    %1385 = vmatprep.subr.bf16.mxu0 0
    %1386 = vmatpush1.bf16.msra.mxu0 0
    %1387 = vmatprep.subr.bf16.mxu0 0
    %1388 = vmatpush1.bf16.msra.mxu0 0
    %1389 = vmatprep.subr.bf16.mxu0 0
    %1390 = vmatpush1.bf16.msra.mxu0 0
    %1391 = vmatprep.mubr.bf16.mxu0 0
    %1392 = vmatmul.mubr.bf16.gmra.mrb[0].mxu0 %v1357
    %v1393 = vpop.f32.mrb[0].mxu0
    %v1394 = vadd.f32 0.0, %v1393
    %v1395 = vpop.f32.mrb[0].mxu0
    %v1396 = vpop.f32.mrb[0].mxu0
    %v1397 = vpop.f32.mrb[0].mxu0
    %1398 = vdwg.mxu0
    %v1399 = vadd.f32 %v1351, %v1394
    %v1400 = vld [vmem:[%s216 + $0x8] sm:$0xff]
    %v1401 = vpack.c.bf16 %v1340, %v1340
    %1403 = vrot.lane.b32.xlu0 %v1401, 64
    %v1404 = vpop.permute.xlu0 %1403
    %v1406 = vsel %vm103, %v1404, 0
    %1408 = vmatprep.subr.bf16.mxu0 0
    %1409 = vmatpush1.bf16.msra.mxu0 %v286
    %1410 = vmatprep.subr.bf16.mxu0 0
    %1411 = vmatpush1.bf16.msra.mxu0 %v287
    %1412 = vmatprep.subr.bf16.mxu0 0
    %1413 = vmatpush1.bf16.msra.mxu0 0
    %1414 = vmatprep.subr.bf16.mxu0 0
    %1415 = vmatpush1.bf16.msra.mxu0 0
    %1416 = vmatprep.subr.bf16.mxu0 0
    %1417 = vmatpush1.bf16.msra.mxu0 0
    %1418 = vmatprep.subr.bf16.mxu0 0
    %1419 = vmatpush1.bf16.msra.mxu0 0
    %1420 = vmatprep.subr.bf16.mxu0 0
    %1421 = vmatpush1.bf16.msra.mxu0 0
    %1422 = vmatprep.subr.bf16.mxu0 0
    %1423 = vmatpush1.bf16.msra.mxu0 0
    %1424 = vmatprep.subr.bf16.mxu0 0
    %1425 = vmatpush1.bf16.msra.mxu0 0
    %1426 = vmatprep.subr.bf16.mxu0 0
    %1427 = vmatpush1.bf16.msra.mxu0 0
    %1428 = vmatprep.subr.bf16.mxu0 0
    %1429 = vmatpush1.bf16.msra.mxu0 0
    %1430 = vmatprep.subr.bf16.mxu0 0
    %1431 = vmatpush1.bf16.msra.mxu0 0
    %1432 = vmatprep.subr.bf16.mxu0 0
    %1433 = vmatpush1.bf16.msra.mxu0 0
    %1434 = vmatprep.subr.bf16.mxu0 0
    %1435 = vmatpush1.bf16.msra.mxu0 0
    %1436 = vmatprep.subr.bf16.mxu0 0
    %1437 = vmatpush1.bf16.msra.mxu0 0
    %1438 = vmatprep.subr.bf16.mxu0 0
    %1439 = vmatpush1.bf16.msra.mxu0 0
    %1440 = vmatprep.mubr.bf16.mxu0 0
    %1441 = vmatmul.mubr.bf16.gmra.mrb[0].mxu0 %v1406
    %v1442 = vpop.f32.mrb[0].mxu0
    %v1443 = vadd.f32 0.0, %v1442
    %v1444 = vpop.f32.mrb[0].mxu0
    %v1445 = vpop.f32.mrb[0].mxu0
    %v1446 = vpop.f32.mrb[0].mxu0
    %1447 = vdwg.mxu0
    %v1448 = vadd.f32 %v1400, %v1443
    %v1449 = vxor.u32 %v1399, 2147483648
    %v1450 = vmul.f32 %v1449, 1.442695
    %v1451 = vpow.pop %v1450
    %v1452 = vadd.f32 %v1451, 1.0
    %v1453 = vrcp.pop %v1452
    %v1454 = vmul.f32 1.0, %v1453
    %v1455 = vxor.u32 %v1448, 2147483648
    %v1456 = vmul.f32 %v1455, 1.442695
    %v1457 = vpow.pop %v1456
    %v1458 = vadd.f32 %v1457, 1.0
    %v1459 = vrcp.pop %v1458
    %v1460 = vmul.f32 1.0, %v1459
    %v1461 = vtanh.pop %v1399
    %v1462 = vtanh.pop %v1448
    %v1463 = vmul.f32 %v1454, %v1317
    %1465 = vrot.lane.b32.xlu0 %v1461, 32
    %v1466 = vpop.permute.xlu0 %1465
    %v1468 = vmul.f32 %v1454, %v1466
    %1470 = vrot.lane.b32.xlu0 %v1468, 32
    %v1471 = vpop.permute.xlu0 %1470
    %v1473 = vadd.f32 %v1463, %v1471
    %v1474 = vmul.f32 %v1460, %v1328
    %1476 = vrot.lane.b32.xlu0 %v1462, 32
    %v1477 = vpop.permute.xlu0 %1476
    %v1479 = vmul.f32 %v1460, %v1477
    %1481 = vrot.lane.b32.xlu0 %v1479, 32
    %v1482 = vpop.permute.xlu0 %1481
    %v1484 = vadd.f32 %v1474, %v1482
    %v1485 = vtanh.pop %v1473
    %1487 = vrot.lane.b32.xlu0 %v1485, 32
    %v1488 = vpop.permute.xlu0 %1487
    %v1490 = vmul.f32 %v1454, %v1488
    %v1491 = vtanh.pop %v1484
    %1493 = vrot.lane.b32.xlu0 %v1491, 32
    %v1494 = vpop.permute.xlu0 %1493
    %v1496 = vmul.f32 %v1460, %v1494
    %1498 = vrot.lane.b32.xlu0 %v1490, 64
    %v1499 = vpop.permute.xlu0 %1498
    %1501 = vst.msk [vmem:[%s388] sm:$0xff] %vm103, %v1499
    %1503 = vrot.lane.b32.xlu0 %v1496, 96
    %v1504 = vpop.permute.xlu0 %1503
    %1506 = vst.msk [vmem:[#allocation3] sm:$0xff] %vm389, %v1504
    %v1507 = vld [vmem:[#allocation3] sm:$0xff]
    %v1508 = vld [vmem:[#allocation3 + $0x8] sm:$0xff]
    %v1509 = vld [vmem:[#allocation3 + $0x10] sm:$0xff]
    %v1510 = vld [vmem:[#allocation3 + $0x18] sm:$0xff]
    %v1511 = vld [vmem:[#allocation3 + $0x20] sm:$0xff]
    %v1512 = vld [vmem:[#allocation3 + $0x28] sm:$0xff]
    %v1513 = vld [vmem:[#allocation3 + $0x30] sm:$0xff]
    %v1514 = vld [vmem:[#allocation3 + $0x38] sm:$0xff]
    %v1515 = vpack.c.bf16 %v1508, %v1507
    %v1516 = vpack.c.bf16 %v1510, %v1509
    %v1517 = vpack.c.bf16 %v1512, %v1511
    %v1518 = vpack.c.bf16 %v1514, %v1513
    %v1519 = vld [vmem:[%s4] sm:$0xff]
    %v1520 = vld [vmem:[%s4 + $0x8] sm:$0xff]
    %v1521 = vld [vmem:[%s4 + $0x10] sm:$0xff]
    %v1522 = vld [vmem:[%s4 + $0x18] sm:$0xff]
    %v1523 = vld [vmem:[%s4 + $0x20] sm:$0xff]
    %v1524 = vld [vmem:[%s4 + $0x28] sm:$0xff]
    %v1525 = vld [vmem:[%s4 + $0x30] sm:$0xff]
    %v1526 = vld [vmem:[%s4 + $0x38] sm:$0xff]
    %v1527 = vld [vmem:[%s6] sm:$0x3]
    %v1529 = vlaneseq
    %v1530 = vshrl.u32 %v1529, 7
    %v1531 = vsub.s32 0, %v1530
    %v1532 = vrot.slane %v1527, %v1531
    %v1533 = vlaneseq
    %v1534 = vshrl.u32 %v1533, 7
    %v1535 = vsub.s32 1, %v1534
    %v1536 = vrot.slane %v1527, %v1535
    %v1547 = vunpack.c.l.b16 %v1519
    %v1548 = vunpack.c.h.b16 %v1519
    %v1549 = vunpack.c.l.b16 %v1520
    %v1550 = vunpack.c.h.b16 %v1520
    %v1551 = vunpack.c.l.b16 %v1521
    %v1552 = vunpack.c.h.b16 %v1521
    %v1553 = vunpack.c.l.b16 %v1522
    %v1554 = vunpack.c.h.b16 %v1522
    %v1555 = vunpack.c.l.b16 %v1523
    %v1556 = vunpack.c.h.b16 %v1523
    %v1557 = vunpack.c.l.b16 %v1524
    %v1558 = vunpack.c.h.b16 %v1524
    %v1559 = vunpack.c.l.b16 %v1525
    %v1560 = vunpack.c.h.b16 %v1525
    %v1561 = vunpack.c.l.b16 %v1526
    %v1562 = vunpack.c.h.b16 %v1526
    %v1563 = vpack.c.b16 %v1549, %v1547
    %v1564 = vpack.c.b16 %v1550, %v1548
    %v1565 = vpack.c.b16 %v1553, %v1551
    %v1566 = vpack.c.b16 %v1554, %v1552
    %v1567 = vpack.c.b16 %v1557, %v1555
    %v1568 = vpack.c.b16 %v1558, %v1556
    %v1569 = vpack.c.b16 %v1561, %v1559
    %v1570 = vpack.c.b16 %v1562, %v1560
    %vm1579 = vcmask 523264
    %v1581 = vsel %vm1579, %v1515, 0
    %v1584 = vsel %vm1579, %v1516, 0
    %v1587 = vsel %vm1579, %v1517, 0
    %v1590 = vsel %vm1579, %v1518, 0
    %1592 = vmatprep.subr.bf16.mxu0 %v1564
    %1593 = vmatpush1.bf16.msra.mxu0 %v1563
    %1594 = vmatprep.subr.bf16.mxu0 %v1566
    %1595 = vmatpush1.bf16.msra.mxu0 %v1565
    %1596 = vmatprep.subr.bf16.mxu0 %v1568
    %1597 = vmatpush1.bf16.msra.mxu0 %v1567
    %1598 = vmatprep.subr.bf16.mxu0 %v1570
    %1599 = vmatpush1.bf16.msra.mxu0 %v1569
    %1600 = vmatprep.subr.bf16.mxu0 0
    %1601 = vmatpush1.bf16.msra.mxu0 0
    %1602 = vmatprep.subr.bf16.mxu0 0
    %1603 = vmatpush1.bf16.msra.mxu0 0
    %1604 = vmatprep.subr.bf16.mxu0 0
    %1605 = vmatpush1.bf16.msra.mxu0 0
    %1606 = vmatprep.subr.bf16.mxu0 0
    %1607 = vmatpush1.bf16.msra.mxu0 0
    %1608 = vmatprep.subr.bf16.mxu0 0
    %1609 = vmatpush1.bf16.msra.mxu0 0
    %1610 = vmatprep.subr.bf16.mxu0 0
    %1611 = vmatpush1.bf16.msra.mxu0 0
    %1612 = vmatprep.subr.bf16.mxu0 0
    %1613 = vmatpush1.bf16.msra.mxu0 0
    %1614 = vmatprep.subr.bf16.mxu0 0
    %1615 = vmatpush1.bf16.msra.mxu0 0
    %1616 = vmatprep.subr.bf16.mxu0 0
    %1617 = vmatpush1.bf16.msra.mxu0 0
    %1618 = vmatprep.subr.bf16.mxu0 0
    %1619 = vmatpush1.bf16.msra.mxu0 0
    %1620 = vmatprep.subr.bf16.mxu0 0
    %1621 = vmatpush1.bf16.msra.mxu0 0
    %1622 = vmatprep.subr.bf16.mxu0 0
    %1623 = vmatpush1.bf16.msra.mxu0 0
    %1624 = vmatprep.mubr.bf16.mxu0 0
    %1625 = vmatmul.mubr.bf16.gmra.mrb[0].mxu0 %v1581
    %v1626 = vpop.f32.mrb[0].mxu0
    %v1627 = vadd.f32 %v1532, %v1626
    %v1628 = vpop.f32.mrb[0].mxu0
    %v1629 = vadd.f32 %v1536, %v1628
    %v1630 = vpop.f32.mrb[0].mxu0
    %v1631 = vadd.f32 %v1532, %v1630
    %v1632 = vpop.f32.mrb[0].mxu0
    %v1633 = vadd.f32 %v1536, %v1632
    %1634 = vmatprep.mubr.bf16.mxu0 0
    %1635 = vmatmul.mubr.bf16.gmra.mrb[0].mxu0 %v1584
    %v1636 = vpop.f32.mrb[0].mxu0
    %v1637 = vadd.f32 %v1532, %v1636
    %v1638 = vpop.f32.mrb[0].mxu0
    %v1639 = vadd.f32 %v1536, %v1638
    %v1640 = vpop.f32.mrb[0].mxu0
    %v1641 = vadd.f32 %v1532, %v1640
    %v1642 = vpop.f32.mrb[0].mxu0
    %v1643 = vadd.f32 %v1536, %v1642
    %1644 = vmatprep.mubr.bf16.mxu0 0
    %1645 = vmatmul.mubr.bf16.gmra.mrb[0].mxu0 %v1587
    %v1646 = vpop.f32.mrb[0].mxu0
    %v1647 = vadd.f32 %v1532, %v1646
    %v1648 = vpop.f32.mrb[0].mxu0
    %v1649 = vadd.f32 %v1536, %v1648
    %v1650 = vpop.f32.mrb[0].mxu0
    %v1651 = vadd.f32 %v1532, %v1650
    %v1652 = vpop.f32.mrb[0].mxu0
    %v1653 = vadd.f32 %v1536, %v1652
    %1654 = vmatprep.mubr.bf16.mxu0 0
    %1655 = vmatmul.mubr.bf16.gmra.mrb[0].mxu0 %v1590
    %v1656 = vpop.f32.mrb[0].mxu0
    %v1657 = vadd.f32 %v1532, %v1656
    %v1658 = vpop.f32.mrb[0].mxu0
    %v1659 = vadd.f32 %v1536, %v1658
    %v1660 = vpop.f32.mrb[0].mxu0
    %v1661 = vadd.f32 %v1532, %v1660
    %v1662 = vpop.f32.mrb[0].mxu0
    %v1663 = vadd.f32 %v1536, %v1662
    %1664 = vdwg.mxu0
    %1665 = vst [vmem:[#allocation2] sm:$0xff] %v1627
    %1666 = vst [vmem:[#allocation2 + $0x8] sm:$0xff] %v1629
    %1667 = vst [vmem:[#allocation2 + $0x10] sm:$0xff] %v1631
    %1668 = vst [vmem:[#allocation2 + $0x18] sm:$0xff] %v1633
    %1669 = vst [vmem:[#allocation2 + $0x20] sm:$0xff] %v1637
    %1670 = vst [vmem:[#allocation2 + $0x28] sm:$0xff] %v1639
    %1671 = vst [vmem:[#allocation2 + $0x30] sm:$0xff] %v1641
    %1672 = vst [vmem:[#allocation2 + $0x38] sm:$0xff] %v1643
    %1673 = vst [vmem:[#allocation2 + $0x40] sm:$0xff] %v1647
    %1674 = vst [vmem:[#allocation2 + $0x48] sm:$0xff] %v1649
    %1675 = vst [vmem:[#allocation2 + $0x50] sm:$0xff] %v1651
    %1676 = vst [vmem:[#allocation2 + $0x58] sm:$0xff] %v1653
    %1677 = vst [vmem:[#allocation2 + $0x60] sm:$0xff] %v1657
    %1678 = vst [vmem:[#allocation2 + $0x68] sm:$0xff] %v1659
    %1679 = vst [vmem:[#allocation2 + $0x70] sm:$0xff] %v1661
    %1680 = vst [vmem:[#allocation2 + $0x78] sm:$0xff] %v1663
    %v1681 = vld [vmem:[%s5] sm:$0xf]
    %v1682 = vld [vmem:[%s5 + $0x4] sm:$0xf]
    %v1683 = vld [vmem:[%s5 + $0x8] sm:$0xf]
    %v1684 = vld [vmem:[%s5 + $0xc] sm:$0xf]
    %s1685 = scalar_lea.vmem %s5, 16
    %v1686 = vld [vmem:[%s1685] sm:$0xf]
    %v1687 = vld [vmem:[%s1685 + $0x4] sm:$0xf]
    %v1688 = vld [vmem:[%s1685 + $0x8] sm:$0xf]
    %v1689 = vld [vmem:[%s1685 + $0xc] sm:$0xf]
    %v1690 = vld [vmem:[%s216] sm:$0xff]
    %v1695 = vunpack.c.l.b16 %v1681
    %v1696 = vunpack.c.l.b16 %v1682
    %v1697 = vunpack.c.l.b16 %v1683
    %v1698 = vunpack.c.l.b16 %v1684
    %v1699 = vpack.c.b16 %v1696, %v1695
    %v1700 = vpack.c.b16 %v1698, %v1697
    %1703 = vmatprep.subr.bf16.mxu0 0
    %1704 = vmatpush1.bf16.msra.mxu0 %v1699
    %1705 = vmatprep.subr.bf16.mxu0 0
    %1706 = vmatpush1.bf16.msra.mxu0 %v1700
    %1707 = vmatprep.subr.bf16.mxu0 0
    %1708 = vmatpush1.bf16.msra.mxu0 0
    %1709 = vmatprep.subr.bf16.mxu0 0
    %1710 = vmatpush1.bf16.msra.mxu0 0
    %1711 = vmatprep.subr.bf16.mxu0 0
    %1712 = vmatpush1.bf16.msra.mxu0 0
    %1713 = vmatprep.subr.bf16.mxu0 0
    %1714 = vmatpush1.bf16.msra.mxu0 0
    %1715 = vmatprep.subr.bf16.mxu0 0
    %1716 = vmatpush1.bf16.msra.mxu0 0
    %1717 = vmatprep.subr.bf16.mxu0 0
    %1718 = vmatpush1.bf16.msra.mxu0 0
    %1719 = vmatprep.subr.bf16.mxu0 0
    %1720 = vmatpush1.bf16.msra.mxu0 0
    %1721 = vmatprep.subr.bf16.mxu0 0
    %1722 = vmatpush1.bf16.msra.mxu0 0
    %1723 = vmatprep.subr.bf16.mxu0 0
    %1724 = vmatpush1.bf16.msra.mxu0 0
    %1725 = vmatprep.subr.bf16.mxu0 0
    %1726 = vmatpush1.bf16.msra.mxu0 0
    %1727 = vmatprep.subr.bf16.mxu0 0
    %1728 = vmatpush1.bf16.msra.mxu0 0
    %1729 = vmatprep.subr.bf16.mxu0 0
    %1730 = vmatpush1.bf16.msra.mxu0 0
    %1731 = vmatprep.subr.bf16.mxu0 0
    %1732 = vmatpush1.bf16.msra.mxu0 0
    %1733 = vmatprep.subr.bf16.mxu0 0
    %1734 = vmatpush1.bf16.msra.mxu0 0
    %1735 = vmatprep.mubr.bf16.mxu0 0
    %1736 = vmatmul.mubr.bf16.gmra.mrb[0].mxu0 %v231
    %v1737 = vpop.f32.mrb[0].mxu0
    %v1738 = vadd.f32 0.0, %v1737
    %v1739 = vpop.f32.mrb[0].mxu0
    %v1740 = vpop.f32.mrb[0].mxu0
    %v1741 = vpop.f32.mrb[0].mxu0
    %1742 = vdwg.mxu0
    %v1743 = vadd.f32 %v1690, %v1738
    %v1744 = vld [vmem:[%s276 + $0x8] sm:$0xff]
    %v1749 = vunpack.c.l.b16 %v1686
    %v1750 = vunpack.c.l.b16 %v1687
    %v1751 = vunpack.c.l.b16 %v1688
    %v1752 = vunpack.c.l.b16 %v1689
    %v1753 = vpack.c.b16 %v1750, %v1749
    %v1754 = vpack.c.b16 %v1752, %v1751
    %1757 = vmatprep.subr.bf16.mxu0 0
    %1758 = vmatpush1.bf16.msra.mxu0 %v1753
    %1759 = vmatprep.subr.bf16.mxu0 0
    %1760 = vmatpush1.bf16.msra.mxu0 %v1754
    %1761 = vmatprep.subr.bf16.mxu0 0
    %1762 = vmatpush1.bf16.msra.mxu0 0
    %1763 = vmatprep.subr.bf16.mxu0 0
    %1764 = vmatpush1.bf16.msra.mxu0 0
    %1765 = vmatprep.subr.bf16.mxu0 0
    %1766 = vmatpush1.bf16.msra.mxu0 0
    %1767 = vmatprep.subr.bf16.mxu0 0
    %1768 = vmatpush1.bf16.msra.mxu0 0
    %1769 = vmatprep.subr.bf16.mxu0 0
    %1770 = vmatpush1.bf16.msra.mxu0 0
    %1771 = vmatprep.subr.bf16.mxu0 0
    %1772 = vmatpush1.bf16.msra.mxu0 0
    %1773 = vmatprep.subr.bf16.mxu0 0
    %1774 = vmatpush1.bf16.msra.mxu0 0
    %1775 = vmatprep.subr.bf16.mxu0 0
    %1776 = vmatpush1.bf16.msra.mxu0 0
    %1777 = vmatprep.subr.bf16.mxu0 0
    %1778 = vmatpush1.bf16.msra.mxu0 0
    %1779 = vmatprep.subr.bf16.mxu0 0
    %1780 = vmatpush1.bf16.msra.mxu0 0
    %1781 = vmatprep.subr.bf16.mxu0 0
    %1782 = vmatpush1.bf16.msra.mxu0 0
    %1783 = vmatprep.subr.bf16.mxu0 0
    %1784 = vmatpush1.bf16.msra.mxu0 0
    %1785 = vmatprep.subr.bf16.mxu0 0
    %1786 = vmatpush1.bf16.msra.mxu0 0
    %1787 = vmatprep.subr.bf16.mxu0 0
    %1788 = vmatpush1.bf16.msra.mxu0 0
    %1789 = vmatprep.mubr.bf16.mxu0 0
    %1790 = vmatmul.mubr.bf16.gmra.mrb[0].mxu0 %v231
    %v1791 = vpop.f32.mrb[0].mxu0
    %v1792 = vadd.f32 0.0, %v1791
    %v1793 = vpop.f32.mrb[0].mxu0
    %v1794 = vpop.f32.mrb[0].mxu0
    %v1795 = vpop.f32.mrb[0].mxu0
    %1796 = vdwg.mxu0
    %v1797 = vadd.f32 %v1744, %v1792
    %v1798 = vxor.u32 %v1743, 2147483648
    %v1799 = vmul.f32 %v1798, 1.442695
    %v1800 = vpow.pop %v1799
    %v1801 = vadd.f32 %v1800, 1.0
    %v1802 = vrcp.pop %v1801
    %v1803 = vmul.f32 1.0, %v1802
    %v1804 = vxor.u32 %v1797, 2147483648
    %v1805 = vmul.f32 %v1804, 1.442695
    %v1806 = vpow.pop %v1805
    %v1807 = vadd.f32 %v1806, 1.0
    %v1808 = vrcp.pop %v1807
    %v1809 = vmul.f32 1.0, %v1808
    %v1810 = vtanh.pop %v1743
    %v1811 = vtanh.pop %v1797
    %v1812 = vmul.f32 %v1803, 0.0
    %1814 = vrot.lane.b32.xlu0 %v1810, 32
    %v1815 = vpop.permute.xlu0 %1814
    %v1817 = vmul.f32 %v1803, %v1815
    %1819 = vrot.lane.b32.xlu0 %v1817, 32
    %v1820 = vpop.permute.xlu0 %1819
    %v1822 = vadd.f32 %v1812, %v1820
    %v1823 = vmul.f32 %v1809, 0.0
    %1825 = vrot.lane.b32.xlu0 %v1811, 32
    %v1826 = vpop.permute.xlu0 %1825
    %v1828 = vmul.f32 %v1809, %v1826
    %1830 = vrot.lane.b32.xlu0 %v1828, 32
    %v1831 = vpop.permute.xlu0 %1830
    %v1833 = vadd.f32 %v1823, %v1831
    %v1834 = vtanh.pop %v1822
    %1836 = vrot.lane.b32.xlu0 %v1834, 32
    %v1837 = vpop.permute.xlu0 %1836
    %v1839 = vmul.f32 %v1803, %v1837
    %v1840 = vtanh.pop %v1833
    %1842 = vrot.lane.b32.xlu0 %v1840, 32
    %v1843 = vpop.permute.xlu0 %1842
    %v1845 = vmul.f32 %v1809, %v1843
    %1847 = vrot.lane.b32.xlu0 %v1839, 64
    %v1848 = vpop.permute.xlu0 %1847
    %1850 = vst.msk [vmem:[%s7] sm:$0xff] %vm103, %v1848
    %1852 = vrot.lane.b32.xlu0 %v1845, 96
    %v1853 = vpop.permute.xlu0 %1852
    %s1855 = scalar_lea.vmem %s7, 56
    %1856 = vst.msk [vmem:[%s1855] sm:$0xff] %vm389, %v1853
    %v1857 = vld [vmem:[%s393] sm:$0xff]
    %v1858 = vpack.c.bf16 %v1839, %v1839
    %1860 = vrot.lane.b32.xlu0 %v1858, 64
    %v1861 = vpop.permute.xlu0 %1860
    %v1863 = vsel %vm103, %v1861, 0
    %1865 = vmatprep.subr.bf16.mxu0 0
    %1866 = vmatpush1.bf16.msra.mxu0 %v1699
    %1867 = vmatprep.subr.bf16.mxu0 0
    %1868 = vmatpush1.bf16.msra.mxu0 %v1700
    %1869 = vmatprep.subr.bf16.mxu0 0
    %1870 = vmatpush1.bf16.msra.mxu0 0
    %1871 = vmatprep.subr.bf16.mxu0 0
    %1872 = vmatpush1.bf16.msra.mxu0 0
    %1873 = vmatprep.subr.bf16.mxu0 0
    %1874 = vmatpush1.bf16.msra.mxu0 0
    %1875 = vmatprep.subr.bf16.mxu0 0
    %1876 = vmatpush1.bf16.msra.mxu0 0
    %1877 = vmatprep.subr.bf16.mxu0 0
    %1878 = vmatpush1.bf16.msra.mxu0 0
    %1879 = vmatprep.subr.bf16.mxu0 0
    %1880 = vmatpush1.bf16.msra.mxu0 0
    %1881 = vmatprep.subr.bf16.mxu0 0
    %1882 = vmatpush1.bf16.msra.mxu0 0
    %1883 = vmatprep.subr.bf16.mxu0 0
    %1884 = vmatpush1.bf16.msra.mxu0 0
    %1885 = vmatprep.subr.bf16.mxu0 0
    %1886 = vmatpush1.bf16.msra.mxu0 0
    %1887 = vmatprep.subr.bf16.mxu0 0
    %1888 = vmatpush1.bf16.msra.mxu0 0
    %1889 = vmatprep.subr.bf16.mxu0 0
    %1890 = vmatpush1.bf16.msra.mxu0 0
    %1891 = vmatprep.subr.bf16.mxu0 0
    %1892 = vmatpush1.bf16.msra.mxu0 0
    %1893 = vmatprep.subr.bf16.mxu0 0
    %1894 = vmatpush1.bf16.msra.mxu0 0
    %1895 = vmatprep.subr.bf16.mxu0 0
    %1896 = vmatpush1.bf16.msra.mxu0 0
    %1897 = vmatprep.mubr.bf16.mxu0 0
    %1898 = vmatmul.mubr.bf16.gmra.mrb[0].mxu0 %v1863
    %v1899 = vpop.f32.mrb[0].mxu0
    %v1900 = vadd.f32 0.0, %v1899
    %v1901 = vpop.f32.mrb[0].mxu0
    %v1902 = vpop.f32.mrb[0].mxu0
    %v1903 = vpop.f32.mrb[0].mxu0
    %1904 = vdwg.mxu0
    %v1905 = vadd.f32 %v1857, %v1900
    %v1906 = vld [vmem:[%s445 + $0x8] sm:$0xff]
    %v1907 = vpack.c.bf16 %v1845, %v1845
    %1909 = vrot.lane.b32.xlu0 %v1907, 64
    %v1910 = vpop.permute.xlu0 %1909
    %v1912 = vsel %vm103, %v1910, 0
    %1914 = vmatprep.subr.bf16.mxu0 0
    %1915 = vmatpush1.bf16.msra.mxu0 %v1753
    %1916 = vmatprep.subr.bf16.mxu0 0
    %1917 = vmatpush1.bf16.msra.mxu0 %v1754
    %1918 = vmatprep.subr.bf16.mxu0 0
    %1919 = vmatpush1.bf16.msra.mxu0 0
    %1920 = vmatprep.subr.bf16.mxu0 0
    %1921 = vmatpush1.bf16.msra.mxu0 0
    %1922 = vmatprep.subr.bf16.mxu0 0
    %1923 = vmatpush1.bf16.msra.mxu0 0
    %1924 = vmatprep.subr.bf16.mxu0 0
    %1925 = vmatpush1.bf16.msra.mxu0 0
    %1926 = vmatprep.subr.bf16.mxu0 0
    %1927 = vmatpush1.bf16.msra.mxu0 0
    %1928 = vmatprep.subr.bf16.mxu0 0
    %1929 = vmatpush1.bf16.msra.mxu0 0
    %1930 = vmatprep.subr.bf16.mxu0 0
    %1931 = vmatpush1.bf16.msra.mxu0 0
    %1932 = vmatprep.subr.bf16.mxu0 0
    %1933 = vmatpush1.bf16.msra.mxu0 0
    %1934 = vmatprep.subr.bf16.mxu0 0
    %1935 = vmatpush1.bf16.msra.mxu0 0
    %1936 = vmatprep.subr.bf16.mxu0 0
    %1937 = vmatpush1.bf16.msra.mxu0 0
    %1938 = vmatprep.subr.bf16.mxu0 0
    %1939 = vmatpush1.bf16.msra.mxu0 0
    %1940 = vmatprep.subr.bf16.mxu0 0
    %1941 = vmatpush1.bf16.msra.mxu0 0
    %1942 = vmatprep.subr.bf16.mxu0 0
    %1943 = vmatpush1.bf16.msra.mxu0 0
    %1944 = vmatprep.subr.bf16.mxu0 0
    %1945 = vmatpush1.bf16.msra.mxu0 0
    %1946 = vmatprep.mubr.bf16.mxu0 0
    %1947 = vmatmul.mubr.bf16.gmra.mrb[0].mxu0 %v1912
    %v1948 = vpop.f32.mrb[0].mxu0
    %v1949 = vadd.f32 0.0, %v1948
    %v1950 = vpop.f32.mrb[0].mxu0
    %v1951 = vpop.f32.mrb[0].mxu0
    %v1952 = vpop.f32.mrb[0].mxu0
    %1953 = vdwg.mxu0
    %v1954 = vadd.f32 %v1906, %v1949
    %v1955 = vxor.u32 %v1905, 2147483648
    %v1956 = vmul.f32 %v1955, 1.442695
    %v1957 = vpow.pop %v1956
    %v1958 = vadd.f32 %v1957, 1.0
    %v1959 = vrcp.pop %v1958
    %v1960 = vmul.f32 1.0, %v1959
    %v1961 = vxor.u32 %v1954, 2147483648
    %v1962 = vmul.f32 %v1961, 1.442695
    %v1963 = vpow.pop %v1962
    %v1964 = vadd.f32 %v1963, 1.0
    %v1965 = vrcp.pop %v1964
    %v1966 = vmul.f32 1.0, %v1965
    %v1967 = vtanh.pop %v1905
    %v1968 = vtanh.pop %v1954
    %v1969 = vmul.f32 %v1960, %v1822
    %1971 = vrot.lane.b32.xlu0 %v1967, 32
    %v1972 = vpop.permute.xlu0 %1971
    %v1974 = vmul.f32 %v1960, %v1972
    %1976 = vrot.lane.b32.xlu0 %v1974, 32
    %v1977 = vpop.permute.xlu0 %1976
    %v1979 = vadd.f32 %v1969, %v1977
    %v1980 = vmul.f32 %v1966, %v1833
    %1982 = vrot.lane.b32.xlu0 %v1968, 32
    %v1983 = vpop.permute.xlu0 %1982
    %v1985 = vmul.f32 %v1966, %v1983
    %1987 = vrot.lane.b32.xlu0 %v1985, 32
    %v1988 = vpop.permute.xlu0 %1987
    %v1990 = vadd.f32 %v1980, %v1988
    %v1991 = vtanh.pop %v1979
    %1993 = vrot.lane.b32.xlu0 %v1991, 32
    %v1994 = vpop.permute.xlu0 %1993
    %v1996 = vmul.f32 %v1960, %v1994
    %v1997 = vtanh.pop %v1990
    %1999 = vrot.lane.b32.xlu0 %v1997, 32
    %v2000 = vpop.permute.xlu0 %1999
    %v2002 = vmul.f32 %v1966, %v2000
    %2004 = vrot.lane.b32.xlu0 %v1996, 64
    %v2005 = vpop.permute.xlu0 %2004
    %s2007 = scalar_lea.vmem %s7, 8
    %2008 = vst.msk [vmem:[%s2007] sm:$0xff] %vm103, %v2005
    %2010 = vrot.lane.b32.xlu0 %v2002, 96
    %v2011 = vpop.permute.xlu0 %2010
    %s2013 = scalar_lea.vmem %s7, 48
    %2014 = vst.msk [vmem:[%s2013] sm:$0xff] %vm389, %v2011
    %v2015 = vld [vmem:[%s557] sm:$0xff]
    %v2016 = vpack.c.bf16 %v1996, %v1996
    %2018 = vrot.lane.b32.xlu0 %v2016, 64
    %v2019 = vpop.permute.xlu0 %2018
    %v2021 = vsel %vm103, %v2019, 0
    %2023 = vmatprep.subr.bf16.mxu0 0
    %2024 = vmatpush1.bf16.msra.mxu0 %v1699
    %2025 = vmatprep.subr.bf16.mxu0 0
    %2026 = vmatpush1.bf16.msra.mxu0 %v1700
    %2027 = vmatprep.subr.bf16.mxu0 0
    %2028 = vmatpush1.bf16.msra.mxu0 0
    %2029 = vmatprep.subr.bf16.mxu0 0
    %2030 = vmatpush1.bf16.msra.mxu0 0
    %2031 = vmatprep.subr.bf16.mxu0 0
    %2032 = vmatpush1.bf16.msra.mxu0 0
    %2033 = vmatprep.subr.bf16.mxu0 0
    %2034 = vmatpush1.bf16.msra.mxu0 0
    %2035 = vmatprep.subr.bf16.mxu0 0
    %2036 = vmatpush1.bf16.msra.mxu0 0
    %2037 = vmatprep.subr.bf16.mxu0 0
    %2038 = vmatpush1.bf16.msra.mxu0 0
    %2039 = vmatprep.subr.bf16.mxu0 0
    %2040 = vmatpush1.bf16.msra.mxu0 0
    %2041 = vmatprep.subr.bf16.mxu0 0
    %2042 = vmatpush1.bf16.msra.mxu0 0
    %2043 = vmatprep.subr.bf16.mxu0 0
    %2044 = vmatpush1.bf16.msra.mxu0 0
    %2045 = vmatprep.subr.bf16.mxu0 0
    %2046 = vmatpush1.bf16.msra.mxu0 0
    %2047 = vmatprep.subr.bf16.mxu0 0
    %2048 = vmatpush1.bf16.msra.mxu0 0
    %2049 = vmatprep.subr.bf16.mxu0 0
    %2050 = vmatpush1.bf16.msra.mxu0 0
    %2051 = vmatprep.subr.bf16.mxu0 0
    %2052 = vmatpush1.bf16.msra.mxu0 0
    %2053 = vmatprep.subr.bf16.mxu0 0
    %2054 = vmatpush1.bf16.msra.mxu0 0
    %2055 = vmatprep.mubr.bf16.mxu0 0
    %2056 = vmatmul.mubr.bf16.gmra.mrb[0].mxu0 %v2021
    %v2057 = vpop.f32.mrb[0].mxu0
    %v2058 = vadd.f32 0.0, %v2057
    %v2059 = vpop.f32.mrb[0].mxu0
    %v2060 = vpop.f32.mrb[0].mxu0
    %v2061 = vpop.f32.mrb[0].mxu0
    %2062 = vdwg.mxu0
    %v2063 = vadd.f32 %v2015, %v2058
    %v2064 = vld [vmem:[%s609 + $0x8] sm:$0xff]
    %v2065 = vpack.c.bf16 %v2002, %v2002
    %2067 = vrot.lane.b32.xlu0 %v2065, 64
    %v2068 = vpop.permute.xlu0 %2067
    %v2070 = vsel %vm103, %v2068, 0
    %2072 = vmatprep.subr.bf16.mxu0 0
    %2073 = vmatpush1.bf16.msra.mxu0 %v1753
    %2074 = vmatprep.subr.bf16.mxu0 0
    %2075 = vmatpush1.bf16.msra.mxu0 %v1754
    %2076 = vmatprep.subr.bf16.mxu0 0
    %2077 = vmatpush1.bf16.msra.mxu0 0
    %2078 = vmatprep.subr.bf16.mxu0 0
    %2079 = vmatpush1.bf16.msra.mxu0 0
    %2080 = vmatprep.subr.bf16.mxu0 0
    %2081 = vmatpush1.bf16.msra.mxu0 0
    %2082 = vmatprep.subr.bf16.mxu0 0
    %2083 = vmatpush1.bf16.msra.mxu0 0
    %2084 = vmatprep.subr.bf16.mxu0 0
    %2085 = vmatpush1.bf16.msra.mxu0 0
    %2086 = vmatprep.subr.bf16.mxu0 0
    %2087 = vmatpush1.bf16.msra.mxu0 0
    %2088 = vmatprep.subr.bf16.mxu0 0
    %2089 = vmatpush1.bf16.msra.mxu0 0
    %2090 = vmatprep.subr.bf16.mxu0 0
    %2091 = vmatpush1.bf16.msra.mxu0 0
    %2092 = vmatprep.subr.bf16.mxu0 0
    %2093 = vmatpush1.bf16.msra.mxu0 0
    %2094 = vmatprep.subr.bf16.mxu0 0
    %2095 = vmatpush1.bf16.msra.mxu0 0
    %2096 = vmatprep.subr.bf16.mxu0 0
    %2097 = vmatpush1.bf16.msra.mxu0 0
    %2098 = vmatprep.subr.bf16.mxu0 0
    %2099 = vmatpush1.bf16.msra.mxu0 0
    %2100 = vmatprep.subr.bf16.mxu0 0
    %2101 = vmatpush1.bf16.msra.mxu0 0
    %2102 = vmatprep.subr.bf16.mxu0 0
    %2103 = vmatpush1.bf16.msra.mxu0 0
    %2104 = vmatprep.mubr.bf16.mxu0 0
    %2105 = vmatmul.mubr.bf16.gmra.mrb[0].mxu0 %v2070
    %v2106 = vpop.f32.mrb[0].mxu0
    %v2107 = vadd.f32 0.0, %v2106
    %v2108 = vpop.f32.mrb[0].mxu0
    %v2109 = vpop.f32.mrb[0].mxu0
    %v2110 = vpop.f32.mrb[0].mxu0
    %2111 = vdwg.mxu0
    %v2112 = vadd.f32 %v2064, %v2107
    %v2113 = vxor.u32 %v2063, 2147483648
    %v2114 = vmul.f32 %v2113, 1.442695
    %v2115 = vpow.pop %v2114
    %v2116 = vadd.f32 %v2115, 1.0
    %v2117 = vrcp.pop %v2116
    %v2118 = vmul.f32 1.0, %v2117
    %v2119 = vxor.u32 %v2112, 2147483648
    %v2120 = vmul.f32 %v2119, 1.442695
    %v2121 = vpow.pop %v2120
    %v2122 = vadd.f32 %v2121, 1.0
    %v2123 = vrcp.pop %v2122
    %v2124 = vmul.f32 1.0, %v2123
    %v2125 = vtanh.pop %v2063
    %v2126 = vtanh.pop %v2112
    %v2127 = vmul.f32 %v2118, %v1979
    %2129 = vrot.lane.b32.xlu0 %v2125, 32
    %v2130 = vpop.permute.xlu0 %2129
    %v2132 = vmul.f32 %v2118, %v2130
    %2134 = vrot.lane.b32.xlu0 %v2132, 32
    %v2135 = vpop.permute.xlu0 %2134
    %v2137 = vadd.f32 %v2127, %v2135
    %v2138 = vmul.f32 %v2124, %v1990
    %2140 = vrot.lane.b32.xlu0 %v2126, 32
    %v2141 = vpop.permute.xlu0 %2140
    %v2143 = vmul.f32 %v2124, %v2141
    %2145 = vrot.lane.b32.xlu0 %v2143, 32
    %v2146 = vpop.permute.xlu0 %2145
    %v2148 = vadd.f32 %v2138, %v2146
    %v2149 = vtanh.pop %v2137
    %2151 = vrot.lane.b32.xlu0 %v2149, 32
    %v2152 = vpop.permute.xlu0 %2151
    %v2154 = vmul.f32 %v2118, %v2152
    %v2155 = vtanh.pop %v2148
    %2157 = vrot.lane.b32.xlu0 %v2155, 32
    %v2158 = vpop.permute.xlu0 %2157
    %v2160 = vmul.f32 %v2124, %v2158
    %2162 = vrot.lane.b32.xlu0 %v2154, 64
    %v2163 = vpop.permute.xlu0 %2162
    %s2165 = scalar_lea.vmem %s7, 16
    %2166 = vst.msk [vmem:[%s2165] sm:$0xff] %vm103, %v2163
    %2168 = vrot.lane.b32.xlu0 %v2160, 96
    %v2169 = vpop.permute.xlu0 %2168
    %s2171 = scalar_lea.vmem %s7, 40
    %2172 = vst.msk [vmem:[%s2171] sm:$0xff] %vm389, %v2169
    %v2173 = vld [vmem:[%s721] sm:$0xff]
    %v2174 = vpack.c.bf16 %v2154, %v2154
    %2176 = vrot.lane.b32.xlu0 %v2174, 64
    %v2177 = vpop.permute.xlu0 %2176
    %v2179 = vsel %vm103, %v2177, 0
    %2181 = vmatprep.subr.bf16.mxu0 0
    %2182 = vmatpush1.bf16.msra.mxu0 %v1699
    %2183 = vmatprep.subr.bf16.mxu0 0
    %2184 = vmatpush1.bf16.msra.mxu0 %v1700
    %2185 = vmatprep.subr.bf16.mxu0 0
    %2186 = vmatpush1.bf16.msra.mxu0 0
    %2187 = vmatprep.subr.bf16.mxu0 0
    %2188 = vmatpush1.bf16.msra.mxu0 0
    %2189 = vmatprep.subr.bf16.mxu0 0
    %2190 = vmatpush1.bf16.msra.mxu0 0
    %2191 = vmatprep.subr.bf16.mxu0 0
    %2192 = vmatpush1.bf16.msra.mxu0 0
    %2193 = vmatprep.subr.bf16.mxu0 0
    %2194 = vmatpush1.bf16.msra.mxu0 0
    %2195 = vmatprep.subr.bf16.mxu0 0
    %2196 = vmatpush1.bf16.msra.mxu0 0
    %2197 = vmatprep.subr.bf16.mxu0 0
    %2198 = vmatpush1.bf16.msra.mxu0 0
    %2199 = vmatprep.subr.bf16.mxu0 0
    %2200 = vmatpush1.bf16.msra.mxu0 0
    %2201 = vmatprep.subr.bf16.mxu0 0
    %2202 = vmatpush1.bf16.msra.mxu0 0
    %2203 = vmatprep.subr.bf16.mxu0 0
    %2204 = vmatpush1.bf16.msra.mxu0 0
    %2205 = vmatprep.subr.bf16.mxu0 0
    %2206 = vmatpush1.bf16.msra.mxu0 0
    %2207 = vmatprep.subr.bf16.mxu0 0
    %2208 = vmatpush1.bf16.msra.mxu0 0
    %2209 = vmatprep.subr.bf16.mxu0 0
    %2210 = vmatpush1.bf16.msra.mxu0 0
    %2211 = vmatprep.subr.bf16.mxu0 0
    %2212 = vmatpush1.bf16.msra.mxu0 0
    %2213 = vmatprep.mubr.bf16.mxu0 0
    %2214 = vmatmul.mubr.bf16.gmra.mrb[0].mxu0 %v2179
    %v2215 = vpop.f32.mrb[0].mxu0
    %v2216 = vadd.f32 0.0, %v2215
    %v2217 = vpop.f32.mrb[0].mxu0
    %v2218 = vpop.f32.mrb[0].mxu0
    %v2219 = vpop.f32.mrb[0].mxu0
    %2220 = vdwg.mxu0
    %v2221 = vadd.f32 %v2173, %v2216
    %v2222 = vld [vmem:[%s773 + $0x8] sm:$0xff]
    %v2223 = vpack.c.bf16 %v2160, %v2160
    %2225 = vrot.lane.b32.xlu0 %v2223, 64
    %v2226 = vpop.permute.xlu0 %2225
    %v2228 = vsel %vm103, %v2226, 0
    %2230 = vmatprep.subr.bf16.mxu0 0
    %2231 = vmatpush1.bf16.msra.mxu0 %v1753
    %2232 = vmatprep.subr.bf16.mxu0 0
    %2233 = vmatpush1.bf16.msra.mxu0 %v1754
    %2234 = vmatprep.subr.bf16.mxu0 0
    %2235 = vmatpush1.bf16.msra.mxu0 0
    %2236 = vmatprep.subr.bf16.mxu0 0
    %2237 = vmatpush1.bf16.msra.mxu0 0
    %2238 = vmatprep.subr.bf16.mxu0 0
    %2239 = vmatpush1.bf16.msra.mxu0 0
    %2240 = vmatprep.subr.bf16.mxu0 0
    %2241 = vmatpush1.bf16.msra.mxu0 0
    %2242 = vmatprep.subr.bf16.mxu0 0
    %2243 = vmatpush1.bf16.msra.mxu0 0
    %2244 = vmatprep.subr.bf16.mxu0 0
    %2245 = vmatpush1.bf16.msra.mxu0 0
    %2246 = vmatprep.subr.bf16.mxu0 0
    %2247 = vmatpush1.bf16.msra.mxu0 0
    %2248 = vmatprep.subr.bf16.mxu0 0
    %2249 = vmatpush1.bf16.msra.mxu0 0
    %2250 = vmatprep.subr.bf16.mxu0 0
    %2251 = vmatpush1.bf16.msra.mxu0 0
    %2252 = vmatprep.subr.bf16.mxu0 0
    %2253 = vmatpush1.bf16.msra.mxu0 0
    %2254 = vmatprep.subr.bf16.mxu0 0
    %2255 = vmatpush1.bf16.msra.mxu0 0
    %2256 = vmatprep.subr.bf16.mxu0 0
    %2257 = vmatpush1.bf16.msra.mxu0 0
    %2258 = vmatprep.subr.bf16.mxu0 0
    %2259 = vmatpush1.bf16.msra.mxu0 0
    %2260 = vmatprep.subr.bf16.mxu0 0
    %2261 = vmatpush1.bf16.msra.mxu0 0
    %2262 = vmatprep.mubr.bf16.mxu0 0
    %2263 = vmatmul.mubr.bf16.gmra.mrb[0].mxu0 %v2228
    %v2264 = vpop.f32.mrb[0].mxu0
    %v2265 = vadd.f32 0.0, %v2264
    %v2266 = vpop.f32.mrb[0].mxu0
    %v2267 = vpop.f32.mrb[0].mxu0
    %v2268 = vpop.f32.mrb[0].mxu0
    %2269 = vdwg.mxu0
    %v2270 = vadd.f32 %v2222, %v2265
    %v2271 = vxor.u32 %v2221, 2147483648
    %v2272 = vmul.f32 %v2271, 1.442695
    %v2273 = vpow.pop %v2272
    %v2274 = vadd.f32 %v2273, 1.0
    %v2275 = vrcp.pop %v2274
    %v2276 = vmul.f32 1.0, %v2275
    %v2277 = vxor.u32 %v2270, 2147483648
    %v2278 = vmul.f32 %v2277, 1.442695
    %v2279 = vpow.pop %v2278
    %v2280 = vadd.f32 %v2279, 1.0
    %v2281 = vrcp.pop %v2280
    %v2282 = vmul.f32 1.0, %v2281
    %v2283 = vtanh.pop %v2221
    %v2284 = vtanh.pop %v2270
    %v2285 = vmul.f32 %v2276, %v2137
    %2287 = vrot.lane.b32.xlu0 %v2283, 32
    %v2288 = vpop.permute.xlu0 %2287
    %v2290 = vmul.f32 %v2276, %v2288
    %2292 = vrot.lane.b32.xlu0 %v2290, 32
    %v2293 = vpop.permute.xlu0 %2292
    %v2295 = vadd.f32 %v2285, %v2293
    %v2296 = vmul.f32 %v2282, %v2148
    %2298 = vrot.lane.b32.xlu0 %v2284, 32
    %v2299 = vpop.permute.xlu0 %2298
    %v2301 = vmul.f32 %v2282, %v2299
    %2303 = vrot.lane.b32.xlu0 %v2301, 32
    %v2304 = vpop.permute.xlu0 %2303
    %v2306 = vadd.f32 %v2296, %v2304
    %v2307 = vtanh.pop %v2295
    %2309 = vrot.lane.b32.xlu0 %v2307, 32
    %v2310 = vpop.permute.xlu0 %2309
    %v2312 = vmul.f32 %v2276, %v2310
    %v2313 = vtanh.pop %v2306
    %2315 = vrot.lane.b32.xlu0 %v2313, 32
    %v2316 = vpop.permute.xlu0 %2315
    %v2318 = vmul.f32 %v2282, %v2316
    %2320 = vrot.lane.b32.xlu0 %v2312, 64
    %v2321 = vpop.permute.xlu0 %2320
    %s2323 = scalar_lea.vmem %s7, 24
    %2324 = vst.msk [vmem:[%s2323] sm:$0xff] %vm103, %v2321
    %2326 = vrot.lane.b32.xlu0 %v2318, 96
    %v2327 = vpop.permute.xlu0 %2326
    %s2329 = scalar_lea.vmem %s7, 32
    %2330 = vst.msk [vmem:[%s2329] sm:$0xff] %vm389, %v2327
    %v2331 = vld [vmem:[%s773] sm:$0xff]
    %v2332 = vpack.c.bf16 %v2312, %v2312
    %2334 = vrot.lane.b32.xlu0 %v2332, 64
    %v2335 = vpop.permute.xlu0 %2334
    %v2337 = vsel %vm103, %v2335, 0
    %2339 = vmatprep.subr.bf16.mxu0 0
    %2340 = vmatpush1.bf16.msra.mxu0 %v1699
    %2341 = vmatprep.subr.bf16.mxu0 0
    %2342 = vmatpush1.bf16.msra.mxu0 %v1700
    %2343 = vmatprep.subr.bf16.mxu0 0
    %2344 = vmatpush1.bf16.msra.mxu0 0
    %2345 = vmatprep.subr.bf16.mxu0 0
    %2346 = vmatpush1.bf16.msra.mxu0 0
    %2347 = vmatprep.subr.bf16.mxu0 0
    %2348 = vmatpush1.bf16.msra.mxu0 0
    %2349 = vmatprep.subr.bf16.mxu0 0
    %2350 = vmatpush1.bf16.msra.mxu0 0
    %2351 = vmatprep.subr.bf16.mxu0 0
    %2352 = vmatpush1.bf16.msra.mxu0 0
    %2353 = vmatprep.subr.bf16.mxu0 0
    %2354 = vmatpush1.bf16.msra.mxu0 0
    %2355 = vmatprep.subr.bf16.mxu0 0
    %2356 = vmatpush1.bf16.msra.mxu0 0
    %2357 = vmatprep.subr.bf16.mxu0 0
    %2358 = vmatpush1.bf16.msra.mxu0 0
    %2359 = vmatprep.subr.bf16.mxu0 0
    %2360 = vmatpush1.bf16.msra.mxu0 0
    %2361 = vmatprep.subr.bf16.mxu0 0
    %2362 = vmatpush1.bf16.msra.mxu0 0
    %2363 = vmatprep.subr.bf16.mxu0 0
    %2364 = vmatpush1.bf16.msra.mxu0 0
    %2365 = vmatprep.subr.bf16.mxu0 0
    %2366 = vmatpush1.bf16.msra.mxu0 0
    %2367 = vmatprep.subr.bf16.mxu0 0
    %2368 = vmatpush1.bf16.msra.mxu0 0
    %2369 = vmatprep.subr.bf16.mxu0 0
    %2370 = vmatpush1.bf16.msra.mxu0 0
    %2371 = vmatprep.mubr.bf16.mxu0 0
    %2372 = vmatmul.mubr.bf16.gmra.mrb[0].mxu0 %v2337
    %v2373 = vpop.f32.mrb[0].mxu0
    %v2374 = vadd.f32 0.0, %v2373
    %v2375 = vpop.f32.mrb[0].mxu0
    %v2376 = vpop.f32.mrb[0].mxu0
    %v2377 = vpop.f32.mrb[0].mxu0
    %2378 = vdwg.mxu0
    %v2379 = vadd.f32 %v2331, %v2374
    %v2380 = vld [vmem:[%s721 + $0x8] sm:$0xff]
    %v2381 = vpack.c.bf16 %v2318, %v2318
    %2383 = vrot.lane.b32.xlu0 %v2381, 64
    %v2384 = vpop.permute.xlu0 %2383
    %v2386 = vsel %vm103, %v2384, 0
    %2388 = vmatprep.subr.bf16.mxu0 0
    %2389 = vmatpush1.bf16.msra.mxu0 %v1753
    %2390 = vmatprep.subr.bf16.mxu0 0
    %2391 = vmatpush1.bf16.msra.mxu0 %v1754
    %2392 = vmatprep.subr.bf16.mxu0 0
    %2393 = vmatpush1.bf16.msra.mxu0 0
    %2394 = vmatprep.subr.bf16.mxu0 0
    %2395 = vmatpush1.bf16.msra.mxu0 0
    %2396 = vmatprep.subr.bf16.mxu0 0
    %2397 = vmatpush1.bf16.msra.mxu0 0
    %2398 = vmatprep.subr.bf16.mxu0 0
    %2399 = vmatpush1.bf16.msra.mxu0 0
    %2400 = vmatprep.subr.bf16.mxu0 0
    %2401 = vmatpush1.bf16.msra.mxu0 0
    %2402 = vmatprep.subr.bf16.mxu0 0
    %2403 = vmatpush1.bf16.msra.mxu0 0
    %2404 = vmatprep.subr.bf16.mxu0 0
    %2405 = vmatpush1.bf16.msra.mxu0 0
    %2406 = vmatprep.subr.bf16.mxu0 0
    %2407 = vmatpush1.bf16.msra.mxu0 0
    %2408 = vmatprep.subr.bf16.mxu0 0
    %2409 = vmatpush1.bf16.msra.mxu0 0
    %2410 = vmatprep.subr.bf16.mxu0 0
    %2411 = vmatpush1.bf16.msra.mxu0 0
    %2412 = vmatprep.subr.bf16.mxu0 0
    %2413 = vmatpush1.bf16.msra.mxu0 0
    %2414 = vmatprep.subr.bf16.mxu0 0
    %2415 = vmatpush1.bf16.msra.mxu0 0
    %2416 = vmatprep.subr.bf16.mxu0 0
    %2417 = vmatpush1.bf16.msra.mxu0 0
    %2418 = vmatprep.subr.bf16.mxu0 0
    %2419 = vmatpush1.bf16.msra.mxu0 0
    %2420 = vmatprep.mubr.bf16.mxu0 0
    %2421 = vmatmul.mubr.bf16.gmra.mrb[0].mxu0 %v2386
    %v2422 = vpop.f32.mrb[0].mxu0
    %v2423 = vadd.f32 0.0, %v2422
    %v2424 = vpop.f32.mrb[0].mxu0
    %v2425 = vpop.f32.mrb[0].mxu0
    %v2426 = vpop.f32.mrb[0].mxu0
    %2427 = vdwg.mxu0
    %v2428 = vadd.f32 %v2380, %v2423
    %v2429 = vxor.u32 %v2379, 2147483648
    %v2430 = vmul.f32 %v2429, 1.442695
    %v2431 = vpow.pop %v2430
    %v2432 = vadd.f32 %v2431, 1.0
    %v2433 = vrcp.pop %v2432
    %v2434 = vmul.f32 1.0, %v2433
    %v2435 = vxor.u32 %v2428, 2147483648
    %v2436 = vmul.f32 %v2435, 1.442695
    %v2437 = vpow.pop %v2436
    %v2438 = vadd.f32 %v2437, 1.0
    %v2439 = vrcp.pop %v2438
    %v2440 = vmul.f32 1.0, %v2439
    %v2441 = vtanh.pop %v2379
    %v2442 = vtanh.pop %v2428
    %v2443 = vmul.f32 %v2434, %v2295
    %2445 = vrot.lane.b32.xlu0 %v2441, 32
    %v2446 = vpop.permute.xlu0 %2445
    %v2448 = vmul.f32 %v2434, %v2446
    %2450 = vrot.lane.b32.xlu0 %v2448, 32
    %v2451 = vpop.permute.xlu0 %2450
    %v2453 = vadd.f32 %v2443, %v2451
    %v2454 = vmul.f32 %v2440, %v2306
    %2456 = vrot.lane.b32.xlu0 %v2442, 32
    %v2457 = vpop.permute.xlu0 %2456
    %v2459 = vmul.f32 %v2440, %v2457
    %2461 = vrot.lane.b32.xlu0 %v2459, 32
    %v2462 = vpop.permute.xlu0 %2461
    %v2464 = vadd.f32 %v2454, %v2462
    %v2465 = vtanh.pop %v2453
    %2467 = vrot.lane.b32.xlu0 %v2465, 32
    %v2468 = vpop.permute.xlu0 %2467
    %v2470 = vmul.f32 %v2434, %v2468
    %v2471 = vtanh.pop %v2464
    %2473 = vrot.lane.b32.xlu0 %v2471, 32
    %v2474 = vpop.permute.xlu0 %2473
    %v2476 = vmul.f32 %v2440, %v2474
    %2478 = vrot.lane.b32.xlu0 %v2470, 64
    %v2479 = vpop.permute.xlu0 %2478
    %2481 = vst.msk [vmem:[%s2329] sm:$0xff] %vm103, %v2479
    %2483 = vrot.lane.b32.xlu0 %v2476, 96
    %v2484 = vpop.permute.xlu0 %2483
    %2486 = vst.msk [vmem:[%s2323] sm:$0xff] %vm389, %v2484
    %v2487 = vld [vmem:[%s609] sm:$0xff]
    %v2488 = vpack.c.bf16 %v2470, %v2470
    %2490 = vrot.lane.b32.xlu0 %v2488, 64
    %v2491 = vpop.permute.xlu0 %2490
    %v2493 = vsel %vm103, %v2491, 0
    %2495 = vmatprep.subr.bf16.mxu0 0
    %2496 = vmatpush1.bf16.msra.mxu0 %v1699
    %2497 = vmatprep.subr.bf16.mxu0 0
    %2498 = vmatpush1.bf16.msra.mxu0 %v1700
    %2499 = vmatprep.subr.bf16.mxu0 0
    %2500 = vmatpush1.bf16.msra.mxu0 0
    %2501 = vmatprep.subr.bf16.mxu0 0
    %2502 = vmatpush1.bf16.msra.mxu0 0
    %2503 = vmatprep.subr.bf16.mxu0 0
    %2504 = vmatpush1.bf16.msra.mxu0 0
    %2505 = vmatprep.subr.bf16.mxu0 0
    %2506 = vmatpush1.bf16.msra.mxu0 0
    %2507 = vmatprep.subr.bf16.mxu0 0
    %2508 = vmatpush1.bf16.msra.mxu0 0
    %2509 = vmatprep.subr.bf16.mxu0 0
    %2510 = vmatpush1.bf16.msra.mxu0 0
    %2511 = vmatprep.subr.bf16.mxu0 0
    %2512 = vmatpush1.bf16.msra.mxu0 0
    %2513 = vmatprep.subr.bf16.mxu0 0
    %2514 = vmatpush1.bf16.msra.mxu0 0
    %2515 = vmatprep.subr.bf16.mxu0 0
    %2516 = vmatpush1.bf16.msra.mxu0 0
    %2517 = vmatprep.subr.bf16.mxu0 0
    %2518 = vmatpush1.bf16.msra.mxu0 0
    %2519 = vmatprep.subr.bf16.mxu0 0
    %2520 = vmatpush1.bf16.msra.mxu0 0
    %2521 = vmatprep.subr.bf16.mxu0 0
    %2522 = vmatpush1.bf16.msra.mxu0 0
    %2523 = vmatprep.subr.bf16.mxu0 0
    %2524 = vmatpush1.bf16.msra.mxu0 0
    %2525 = vmatprep.subr.bf16.mxu0 0
    %2526 = vmatpush1.bf16.msra.mxu0 0
    %2527 = vmatprep.mubr.bf16.mxu0 0
    %2528 = vmatmul.mubr.bf16.gmra.mrb[0].mxu0 %v2493
    %v2529 = vpop.f32.mrb[0].mxu0
    %v2530 = vadd.f32 0.0, %v2529
    %v2531 = vpop.f32.mrb[0].mxu0
    %v2532 = vpop.f32.mrb[0].mxu0
    %v2533 = vpop.f32.mrb[0].mxu0
    %2534 = vdwg.mxu0
    %v2535 = vadd.f32 %v2487, %v2530
    %v2536 = vld [vmem:[%s557 + $0x8] sm:$0xff]
    %v2537 = vpack.c.bf16 %v2476, %v2476
    %2539 = vrot.lane.b32.xlu0 %v2537, 64
    %v2540 = vpop.permute.xlu0 %2539
    %v2542 = vsel %vm103, %v2540, 0
    %2544 = vmatprep.subr.bf16.mxu0 0
    %2545 = vmatpush1.bf16.msra.mxu0 %v1753
    %2546 = vmatprep.subr.bf16.mxu0 0
    %2547 = vmatpush1.bf16.msra.mxu0 %v1754
    %2548 = vmatprep.subr.bf16.mxu0 0
    %2549 = vmatpush1.bf16.msra.mxu0 0
    %2550 = vmatprep.subr.bf16.mxu0 0
    %2551 = vmatpush1.bf16.msra.mxu0 0
    %2552 = vmatprep.subr.bf16.mxu0 0
    %2553 = vmatpush1.bf16.msra.mxu0 0
    %2554 = vmatprep.subr.bf16.mxu0 0
    %2555 = vmatpush1.bf16.msra.mxu0 0
    %2556 = vmatprep.subr.bf16.mxu0 0
    %2557 = vmatpush1.bf16.msra.mxu0 0
    %2558 = vmatprep.subr.bf16.mxu0 0
    %2559 = vmatpush1.bf16.msra.mxu0 0
    %2560 = vmatprep.subr.bf16.mxu0 0
    %2561 = vmatpush1.bf16.msra.mxu0 0
    %2562 = vmatprep.subr.bf16.mxu0 0
    %2563 = vmatpush1.bf16.msra.mxu0 0
    %2564 = vmatprep.subr.bf16.mxu0 0
    %2565 = vmatpush1.bf16.msra.mxu0 0
    %2566 = vmatprep.subr.bf16.mxu0 0
    %2567 = vmatpush1.bf16.msra.mxu0 0
    %2568 = vmatprep.subr.bf16.mxu0 0
    %2569 = vmatpush1.bf16.msra.mxu0 0
    %2570 = vmatprep.subr.bf16.mxu0 0
    %2571 = vmatpush1.bf16.msra.mxu0 0
    %2572 = vmatprep.subr.bf16.mxu0 0
    %2573 = vmatpush1.bf16.msra.mxu0 0
    %2574 = vmatprep.subr.bf16.mxu0 0
    %2575 = vmatpush1.bf16.msra.mxu0 0
    %2576 = vmatprep.mubr.bf16.mxu0 0
    %2577 = vmatmul.mubr.bf16.gmra.mrb[0].mxu0 %v2542
    %v2578 = vpop.f32.mrb[0].mxu0
    %v2579 = vadd.f32 0.0, %v2578
    %v2580 = vpop.f32.mrb[0].mxu0
    %v2581 = vpop.f32.mrb[0].mxu0
    %v2582 = vpop.f32.mrb[0].mxu0
    %2583 = vdwg.mxu0
    %v2584 = vadd.f32 %v2536, %v2579
    %v2585 = vxor.u32 %v2535, 2147483648
    %v2586 = vmul.f32 %v2585, 1.442695
    %v2587 = vpow.pop %v2586
    %v2588 = vadd.f32 %v2587, 1.0
    %v2589 = vrcp.pop %v2588
    %v2590 = vmul.f32 1.0, %v2589
    %v2591 = vxor.u32 %v2584, 2147483648
    %v2592 = vmul.f32 %v2591, 1.442695
    %v2593 = vpow.pop %v2592
    %v2594 = vadd.f32 %v2593, 1.0
    %v2595 = vrcp.pop %v2594
    %v2596 = vmul.f32 1.0, %v2595
    %v2597 = vtanh.pop %v2535
    %v2598 = vtanh.pop %v2584
    %v2599 = vmul.f32 %v2590, %v2453
    %2601 = vrot.lane.b32.xlu0 %v2597, 32
    %v2602 = vpop.permute.xlu0 %2601
    %v2604 = vmul.f32 %v2590, %v2602
    %2606 = vrot.lane.b32.xlu0 %v2604, 32
    %v2607 = vpop.permute.xlu0 %2606
    %v2609 = vadd.f32 %v2599, %v2607
    %v2610 = vmul.f32 %v2596, %v2464
    %2612 = vrot.lane.b32.xlu0 %v2598, 32
    %v2613 = vpop.permute.xlu0 %2612
    %v2615 = vmul.f32 %v2596, %v2613
    %2617 = vrot.lane.b32.xlu0 %v2615, 32
    %v2618 = vpop.permute.xlu0 %2617
    %v2620 = vadd.f32 %v2610, %v2618
    %v2621 = vtanh.pop %v2609
    %2623 = vrot.lane.b32.xlu0 %v2621, 32
    %v2624 = vpop.permute.xlu0 %2623
    %v2626 = vmul.f32 %v2590, %v2624
    %v2627 = vtanh.pop %v2620
    %2629 = vrot.lane.b32.xlu0 %v2627, 32
    %v2630 = vpop.permute.xlu0 %2629
    %v2632 = vmul.f32 %v2596, %v2630
    %2634 = vrot.lane.b32.xlu0 %v2626, 64
    %v2635 = vpop.permute.xlu0 %2634
    %2637 = vst.msk [vmem:[%s2171] sm:$0xff] %vm103, %v2635
    %2639 = vrot.lane.b32.xlu0 %v2632, 96
    %v2640 = vpop.permute.xlu0 %2639
    %2642 = vst.msk [vmem:[%s2165] sm:$0xff] %vm389, %v2640
    %v2643 = vld [vmem:[%s445] sm:$0xff]
    %v2644 = vpack.c.bf16 %v2626, %v2626
    %2646 = vrot.lane.b32.xlu0 %v2644, 64
    %v2647 = vpop.permute.xlu0 %2646
    %v2649 = vsel %vm103, %v2647, 0
    %2651 = vmatprep.subr.bf16.mxu0 0
    %2652 = vmatpush1.bf16.msra.mxu0 %v1699
    %2653 = vmatprep.subr.bf16.mxu0 0
    %2654 = vmatpush1.bf16.msra.mxu0 %v1700
    %2655 = vmatprep.subr.bf16.mxu0 0
    %2656 = vmatpush1.bf16.msra.mxu0 0
    %2657 = vmatprep.subr.bf16.mxu0 0
    %2658 = vmatpush1.bf16.msra.mxu0 0
    %2659 = vmatprep.subr.bf16.mxu0 0
    %2660 = vmatpush1.bf16.msra.mxu0 0
    %2661 = vmatprep.subr.bf16.mxu0 0
    %2662 = vmatpush1.bf16.msra.mxu0 0
    %2663 = vmatprep.subr.bf16.mxu0 0
    %2664 = vmatpush1.bf16.msra.mxu0 0
    %2665 = vmatprep.subr.bf16.mxu0 0
    %2666 = vmatpush1.bf16.msra.mxu0 0
    %2667 = vmatprep.subr.bf16.mxu0 0
    %2668 = vmatpush1.bf16.msra.mxu0 0
    %2669 = vmatprep.subr.bf16.mxu0 0
    %2670 = vmatpush1.bf16.msra.mxu0 0
    %2671 = vmatprep.subr.bf16.mxu0 0
    %2672 = vmatpush1.bf16.msra.mxu0 0
    %2673 = vmatprep.subr.bf16.mxu0 0
    %2674 = vmatpush1.bf16.msra.mxu0 0
    %2675 = vmatprep.subr.bf16.mxu0 0
    %2676 = vmatpush1.bf16.msra.mxu0 0
    %2677 = vmatprep.subr.bf16.mxu0 0
    %2678 = vmatpush1.bf16.msra.mxu0 0
    %2679 = vmatprep.subr.bf16.mxu0 0
    %2680 = vmatpush1.bf16.msra.mxu0 0
    %2681 = vmatprep.subr.bf16.mxu0 0
    %2682 = vmatpush1.bf16.msra.mxu0 0
    %2683 = vmatprep.mubr.bf16.mxu0 0
    %2684 = vmatmul.mubr.bf16.gmra.mrb[0].mxu0 %v2649
    %v2685 = vpop.f32.mrb[0].mxu0
    %v2686 = vadd.f32 0.0, %v2685
    %v2687 = vpop.f32.mrb[0].mxu0
    %v2688 = vpop.f32.mrb[0].mxu0
    %v2689 = vpop.f32.mrb[0].mxu0
    %2690 = vdwg.mxu0
    %v2691 = vadd.f32 %v2643, %v2686
    %v2692 = vld [vmem:[%s393 + $0x8] sm:$0xff]
    %v2693 = vpack.c.bf16 %v2632, %v2632
    %2695 = vrot.lane.b32.xlu0 %v2693, 64
    %v2696 = vpop.permute.xlu0 %2695
    %v2698 = vsel %vm103, %v2696, 0
    %2700 = vmatprep.subr.bf16.mxu0 0
    %2701 = vmatpush1.bf16.msra.mxu0 %v1753
    %2702 = vmatprep.subr.bf16.mxu0 0
    %2703 = vmatpush1.bf16.msra.mxu0 %v1754
    %2704 = vmatprep.subr.bf16.mxu0 0
    %2705 = vmatpush1.bf16.msra.mxu0 0
    %2706 = vmatprep.subr.bf16.mxu0 0
    %2707 = vmatpush1.bf16.msra.mxu0 0
    %2708 = vmatprep.subr.bf16.mxu0 0
    %2709 = vmatpush1.bf16.msra.mxu0 0
    %2710 = vmatprep.subr.bf16.mxu0 0
    %2711 = vmatpush1.bf16.msra.mxu0 0
    %2712 = vmatprep.subr.bf16.mxu0 0
    %2713 = vmatpush1.bf16.msra.mxu0 0
    %2714 = vmatprep.subr.bf16.mxu0 0
    %2715 = vmatpush1.bf16.msra.mxu0 0
    %2716 = vmatprep.subr.bf16.mxu0 0
    %2717 = vmatpush1.bf16.msra.mxu0 0
    %2718 = vmatprep.subr.bf16.mxu0 0
    %2719 = vmatpush1.bf16.msra.mxu0 0
    %2720 = vmatprep.subr.bf16.mxu0 0
    %2721 = vmatpush1.bf16.msra.mxu0 0
    %2722 = vmatprep.subr.bf16.mxu0 0
    %2723 = vmatpush1.bf16.msra.mxu0 0
    %2724 = vmatprep.subr.bf16.mxu0 0
    %2725 = vmatpush1.bf16.msra.mxu0 0
    %2726 = vmatprep.subr.bf16.mxu0 0
    %2727 = vmatpush1.bf16.msra.mxu0 0
    %2728 = vmatprep.subr.bf16.mxu0 0
    %2729 = vmatpush1.bf16.msra.mxu0 0
    %2730 = vmatprep.subr.bf16.mxu0 0
    %2731 = vmatpush1.bf16.msra.mxu0 0
    %2732 = vmatprep.mubr.bf16.mxu0 0
    %2733 = vmatmul.mubr.bf16.gmra.mrb[0].mxu0 %v2698
    %v2734 = vpop.f32.mrb[0].mxu0
    %v2735 = vadd.f32 0.0, %v2734
    %v2736 = vpop.f32.mrb[0].mxu0
    %v2737 = vpop.f32.mrb[0].mxu0
    %v2738 = vpop.f32.mrb[0].mxu0
    %2739 = vdwg.mxu0
    %v2740 = vadd.f32 %v2692, %v2735
    %v2741 = vxor.u32 %v2691, 2147483648
    %v2742 = vmul.f32 %v2741, 1.442695
    %v2743 = vpow.pop %v2742
    %v2744 = vadd.f32 %v2743, 1.0
    %v2745 = vrcp.pop %v2744
    %v2746 = vmul.f32 1.0, %v2745
    %v2747 = vxor.u32 %v2740, 2147483648
    %v2748 = vmul.f32 %v2747, 1.442695
    %v2749 = vpow.pop %v2748
    %v2750 = vadd.f32 %v2749, 1.0
    %v2751 = vrcp.pop %v2750
    %v2752 = vmul.f32 1.0, %v2751
    %v2753 = vtanh.pop %v2691
    %v2754 = vtanh.pop %v2740
    %v2755 = vmul.f32 %v2746, %v2609
    %2757 = vrot.lane.b32.xlu0 %v2753, 32
    %v2758 = vpop.permute.xlu0 %2757
    %v2760 = vmul.f32 %v2746, %v2758
    %2762 = vrot.lane.b32.xlu0 %v2760, 32
    %v2763 = vpop.permute.xlu0 %2762
    %v2765 = vadd.f32 %v2755, %v2763
    %v2766 = vmul.f32 %v2752, %v2620
    %2768 = vrot.lane.b32.xlu0 %v2754, 32
    %v2769 = vpop.permute.xlu0 %2768
    %v2771 = vmul.f32 %v2752, %v2769
    %2773 = vrot.lane.b32.xlu0 %v2771, 32
    %v2774 = vpop.permute.xlu0 %2773
    %v2776 = vadd.f32 %v2766, %v2774
    %v2777 = vtanh.pop %v2765
    %2779 = vrot.lane.b32.xlu0 %v2777, 32
    %v2780 = vpop.permute.xlu0 %2779
    %v2782 = vmul.f32 %v2746, %v2780
    %v2783 = vtanh.pop %v2776
    %2785 = vrot.lane.b32.xlu0 %v2783, 32
    %v2786 = vpop.permute.xlu0 %2785
    %v2788 = vmul.f32 %v2752, %v2786
    %2790 = vrot.lane.b32.xlu0 %v2782, 64
    %v2791 = vpop.permute.xlu0 %2790
    %2793 = vst.msk [vmem:[%s2013] sm:$0xff] %vm103, %v2791
    %2795 = vrot.lane.b32.xlu0 %v2788, 96
    %v2796 = vpop.permute.xlu0 %2795
    %2798 = vst.msk [vmem:[%s2007] sm:$0xff] %vm389, %v2796
    %v2799 = vld [vmem:[%s276] sm:$0xff]
    %v2800 = vpack.c.bf16 %v2782, %v2782
    %2802 = vrot.lane.b32.xlu0 %v2800, 64
    %v2803 = vpop.permute.xlu0 %2802
    %v2805 = vsel %vm103, %v2803, 0
    %2807 = vmatprep.subr.bf16.mxu0 0
    %2808 = vmatpush1.bf16.msra.mxu0 %v1699
    %2809 = vmatprep.subr.bf16.mxu0 0
    %2810 = vmatpush1.bf16.msra.mxu0 %v1700
    %2811 = vmatprep.subr.bf16.mxu0 0
    %2812 = vmatpush1.bf16.msra.mxu0 0
    %2813 = vmatprep.subr.bf16.mxu0 0
    %2814 = vmatpush1.bf16.msra.mxu0 0
    %2815 = vmatprep.subr.bf16.mxu0 0
    %2816 = vmatpush1.bf16.msra.mxu0 0
    %2817 = vmatprep.subr.bf16.mxu0 0
    %2818 = vmatpush1.bf16.msra.mxu0 0
    %2819 = vmatprep.subr.bf16.mxu0 0
    %2820 = vmatpush1.bf16.msra.mxu0 0
    %2821 = vmatprep.subr.bf16.mxu0 0
    %2822 = vmatpush1.bf16.msra.mxu0 0
    %2823 = vmatprep.subr.bf16.mxu0 0
    %2824 = vmatpush1.bf16.msra.mxu0 0
    %2825 = vmatprep.subr.bf16.mxu0 0
    %2826 = vmatpush1.bf16.msra.mxu0 0
    %2827 = vmatprep.subr.bf16.mxu0 0
    %2828 = vmatpush1.bf16.msra.mxu0 0
    %2829 = vmatprep.subr.bf16.mxu0 0
    %2830 = vmatpush1.bf16.msra.mxu0 0
    %2831 = vmatprep.subr.bf16.mxu0 0
    %2832 = vmatpush1.bf16.msra.mxu0 0
    %2833 = vmatprep.subr.bf16.mxu0 0
    %2834 = vmatpush1.bf16.msra.mxu0 0
    %2835 = vmatprep.subr.bf16.mxu0 0
    %2836 = vmatpush1.bf16.msra.mxu0 0
    %2837 = vmatprep.subr.bf16.mxu0 0
    %2838 = vmatpush1.bf16.msra.mxu0 0
    %2839 = vmatprep.mubr.bf16.mxu0 0
    %2840 = vmatmul.mubr.bf16.gmra.mrb[0].mxu0 %v2805
    %v2841 = vpop.f32.mrb[0].mxu0
    %v2842 = vadd.f32 0.0, %v2841
    %v2843 = vpop.f32.mrb[0].mxu0
    %v2844 = vpop.f32.mrb[0].mxu0
    %v2845 = vpop.f32.mrb[0].mxu0
    %2846 = vdwg.mxu0
    %v2847 = vadd.f32 %v2799, %v2842
    %v2848 = vld [vmem:[%s216 + $0x8] sm:$0xff]
    %v2849 = vpack.c.bf16 %v2788, %v2788
    %2851 = vrot.lane.b32.xlu0 %v2849, 64
    %v2852 = vpop.permute.xlu0 %2851
    %v2854 = vsel %vm103, %v2852, 0
    %2856 = vmatprep.subr.bf16.mxu0 0
    %2857 = vmatpush1.bf16.msra.mxu0 %v1753
    %2858 = vmatprep.subr.bf16.mxu0 0
    %2859 = vmatpush1.bf16.msra.mxu0 %v1754
    %2860 = vmatprep.subr.bf16.mxu0 0
    %2861 = vmatpush1.bf16.msra.mxu0 0
    %2862 = vmatprep.subr.bf16.mxu0 0
    %2863 = vmatpush1.bf16.msra.mxu0 0
    %2864 = vmatprep.subr.bf16.mxu0 0
    %2865 = vmatpush1.bf16.msra.mxu0 0
    %2866 = vmatprep.subr.bf16.mxu0 0
    %2867 = vmatpush1.bf16.msra.mxu0 0
    %2868 = vmatprep.subr.bf16.mxu0 0
    %2869 = vmatpush1.bf16.msra.mxu0 0
    %2870 = vmatprep.subr.bf16.mxu0 0
    %2871 = vmatpush1.bf16.msra.mxu0 0
    %2872 = vmatprep.subr.bf16.mxu0 0
    %2873 = vmatpush1.bf16.msra.mxu0 0
    %2874 = vmatprep.subr.bf16.mxu0 0
    %2875 = vmatpush1.bf16.msra.mxu0 0
    %2876 = vmatprep.subr.bf16.mxu0 0
    %2877 = vmatpush1.bf16.msra.mxu0 0
    %2878 = vmatprep.subr.bf16.mxu0 0
    %2879 = vmatpush1.bf16.msra.mxu0 0
    %2880 = vmatprep.subr.bf16.mxu0 0
    %2881 = vmatpush1.bf16.msra.mxu0 0
    %2882 = vmatprep.subr.bf16.mxu0 0
    %2883 = vmatpush1.bf16.msra.mxu0 0
    %2884 = vmatprep.subr.bf16.mxu0 0
    %2885 = vmatpush1.bf16.msra.mxu0 0
    %2886 = vmatprep.subr.bf16.mxu0 0
    %2887 = vmatpush1.bf16.msra.mxu0 0
    %2888 = vmatprep.mubr.bf16.mxu0 0
    %2889 = vmatmul.mubr.bf16.gmra.mrb[0].mxu0 %v2854
    %v2890 = vpop.f32.mrb[0].mxu0
    %v2891 = vadd.f32 0.0, %v2890
    %v2892 = vpop.f32.mrb[0].mxu0
    %v2893 = vpop.f32.mrb[0].mxu0
    %v2894 = vpop.f32.mrb[0].mxu0
    %2895 = vdwg.mxu0
    %v2896 = vadd.f32 %v2848, %v2891
    %v2897 = vxor.u32 %v2847, 2147483648
    %v2898 = vmul.f32 %v2897, 1.442695
    %v2899 = vpow.pop %v2898
    %v2900 = vadd.f32 %v2899, 1.0
    %v2901 = vrcp.pop %v2900
    %v2902 = vmul.f32 1.0, %v2901
    %v2903 = vxor.u32 %v2896, 2147483648
    %v2904 = vmul.f32 %v2903, 1.442695
    %v2905 = vpow.pop %v2904
    %v2906 = vadd.f32 %v2905, 1.0
    %v2907 = vrcp.pop %v2906
    %v2908 = vmul.f32 1.0, %v2907
    %v2909 = vtanh.pop %v2847
    %v2910 = vtanh.pop %v2896
    %v2911 = vmul.f32 %v2902, %v2765
    %2913 = vrot.lane.b32.xlu0 %v2909, 32
    %v2914 = vpop.permute.xlu0 %2913
    %v2916 = vmul.f32 %v2902, %v2914
    %2918 = vrot.lane.b32.xlu0 %v2916, 32
    %v2919 = vpop.permute.xlu0 %2918
    %v2921 = vadd.f32 %v2911, %v2919
    %v2922 = vmul.f32 %v2908, %v2776
    %2924 = vrot.lane.b32.xlu0 %v2910, 32
    %v2925 = vpop.permute.xlu0 %2924
    %v2927 = vmul.f32 %v2908, %v2925
    %2929 = vrot.lane.b32.xlu0 %v2927, 32
    %v2930 = vpop.permute.xlu0 %2929
    %v2932 = vadd.f32 %v2922, %v2930
    %v2933 = vtanh.pop %v2921
    %2935 = vrot.lane.b32.xlu0 %v2933, 32
    %v2936 = vpop.permute.xlu0 %2935
    %v2938 = vmul.f32 %v2902, %v2936
    %v2939 = vtanh.pop %v2932
    %2941 = vrot.lane.b32.xlu0 %v2939, 32
    %v2942 = vpop.permute.xlu0 %2941
    %v2944 = vmul.f32 %v2908, %v2942
    %2946 = vrot.lane.b32.xlu0 %v2938, 64
    %v2947 = vpop.permute.xlu0 %2946
    %2949 = vst.msk [vmem:[%s1855] sm:$0xff] %vm103, %v2947
    %2951 = vrot.lane.b32.xlu0 %v2944, 96
    %v2952 = vpop.permute.xlu0 %2951
    %2954 = vst.msk [vmem:[%s7] sm:$0xff] %vm389, %v2952
    // Predicated region
    $region38: #{shared_encoder_forward.1} parent=1 // pred_check
      _
    $region39: #{shared_encoder_forward.1} parent=1 // pred_check_branch
      %2956 = sbr.rel (0) target = $region41
    $region40: #{shared_encoder_forward.1} parent=1 // pred_region
      _
    $region41: #{shared_encoder_forward.1} parent=1 // pred_fallthru
      _
    // Predicated region
    $region42: #{shared_encoder_forward.1} parent=1 // pred_check
      _
    $region43: #{shared_encoder_forward.1} parent=1 // pred_check_branch
      %2958 = sbr.rel (0) target = $region45
    $region44: #{shared_encoder_forward.1} parent=1 // pred_region
      _
    $region45: #{shared_encoder_forward.1} parent=1 // pred_fallthru
      _
    %2959 = vsyncpa [#allocation5], 1
    %2960 = vsyncpa [#allocation7], 1

</llo_original>
